<compile_context>
chip_gen: v5e
topology: v5e:2x2
jax: 0.10.0
libtpu: 0.0.40
codegen_flags: <defaults>
</compile_context>

<pallas_src>
import functools

import jax
import jax.numpy as jnp
from jax.experimental import pallas as pl
from jax.experimental.pallas import tpu as pltpu

_EPS = 1e-5


# ---------------------------------------------------------------------------
# Kernel A: (optional fused input BN+ReLU) -> 3x3 conv (single im2col matmul)
#           -> conv output + per-sample BN partial statistics.
# One batch element per grid step.
# ---------------------------------------------------------------------------
def _conv3x3_kernel(*refs, apply_input_bn_relu):
    if apply_input_bn_relu:
        (x_ref, s_ref, t_ref, w_ref, b_ref,
         y_ref, ssum_ref, ssq_ref, xp_ref, im_ref) = refs
    else:
        (x_ref, w_ref, b_ref,
         y_ref, ssum_ref, ssq_ref, xp_ref, im_ref) = refs

    H, W, Cin = x_ref.shape[1], x_ref.shape[2], x_ref.shape[3]

    xin = x_ref[...]                                        # (1, H, W, Cin)
    if apply_input_bn_relu:
        # Previous layer's folded BN + ReLU fused into this conv's input path
        # (VPU work that hides under DMA/MXU slots).  Must run BEFORE zero
        # padding so padded positions stay exactly zero.
        xin = jnp.maximum(xin * s_ref[...] + t_ref[...], 0.0)

    # In-kernel 'SAME' zero padding: zeroed VMEM scratch + interior copy
    # (no padded HBM copy of the activation tensor).
    xp_ref[...] = jnp.zeros_like(xp_ref)
    xp_ref[1:H + 1, 1:W + 1, :] = xin[0]
    xp = xp_ref[...]                                        # (H+2, W+2, Cin)

    # im2col gather into VMEM scratch: tap-major / channel-minor layout that
    # matches w.reshape(9*Cin, Cout).
    for k in range(9):                                      # static unroll
        dy, dx = k // 3, k % 3
        im_ref[:, k * Cin:(k + 1) * Cin] = (
            xp[dy:dy + H, dx:dx + W, :].reshape(H * W, Cin))

    # One MXU contraction with K = 9*Cin instead of nine K=Cin matmuls.
    acc = jnp.dot(im_ref[...], w_ref[...],
                  preferred_element_type=jnp.float32) + b_ref[...]

    y_ref[0] = acc                                          # (H*W, Cout)

    # Per-sample partial BN statistics; the tiny cross-batch finish happens in
    # JAX so the conv output is never re-read from HBM for mean/var.
    ssum_ref[0] = jnp.sum(acc, axis=0, keepdims=True)       # (1, Cout)
    ssq_ref[0] = jnp.sum(acc * acc, axis=0, keepdims=True)  # (1, Cout)


def conv3x3_bn_stats(x, w, b, bn_scale=None, bn_shift=None):
    """3x3 SAME conv with optional fused input BN+ReLU and BN-stat outputs.

    x: (N, H, W, Cin) f32.  w: (3, 3, Cin, Cout) HWIO.  b: (Cout,).
    bn_scale / bn_shift: optional (Cin,) folded BN affine applied (with ReLU)
    to the input tile before the conv.

    Returns:
      y    : (N, H*W, Cout) f32   (channel-minor flattened NHWC)
      ssum : (N, 1, Cout)  per-sample sum over pixels
      ssq  : (N, 1, Cout)  per-sample sum of squares over pixels
    """
    N, H, W, Cin = x.shape
    Cout = w.shape[-1]
    wr = w.reshape(9 * Cin, Cout)      # (dy,dx)-major, Cin-minor: matches im2col
    br = b.reshape(1, Cout).astype(jnp.float32)

    fused = bn_scale is not None
    kernel = functools.partial(_conv3x3_kernel, apply_input_bn_relu=fused)

    in_specs = [pl.BlockSpec((1, H, W, Cin), lambda n: (n, 0, 0, 0))]
    args = [x]
    if fused:
        in_specs += [pl.BlockSpec((1, 1, 1, Cin), lambda n: (0, 0, 0, 0)),
                     pl.BlockSpec((1, 1, 1, Cin), lambda n: (0, 0, 0, 0))]
        args += [bn_scale.reshape(1, 1, 1, Cin).astype(jnp.float32),
                 bn_shift.reshape(1, 1, 1, Cin).astype(jnp.float32)]
    in_specs += [pl.BlockSpec((9 * Cin, Cout), lambda n: (0, 0)),
                 pl.BlockSpec((1, Cout), lambda n: (0, 0))]
    args += [wr, br]

    grid_spec = pltpu.PrefetchScalarGridSpec(
        num_scalar_prefetch=0,
        grid=(N,),
        in_specs=in_specs,
        out_specs=(pl.BlockSpec((1, H * W, Cout), lambda n: (n, 0, 0)),
                   pl.BlockSpec((1, 1, Cout), lambda n: (n, 0, 0)),
                   pl.BlockSpec((1, 1, Cout), lambda n: (n, 0, 0))),
        scratch_shapes=[pltpu.VMEM((H + 2, W + 2, Cin), jnp.float32),
                        pltpu.VMEM((H * W, 9 * Cin), jnp.float32)],
    )

    y, ssum, ssq = pl.pallas_call(
        kernel,
        out_shape=(jax.ShapeDtypeStruct((N, H * W, Cout), jnp.float32),
                   jax.ShapeDtypeStruct((N, 1, Cout), jnp.float32),
                   jax.ShapeDtypeStruct((N, 1, Cout), jnp.float32)),
        grid_spec=grid_spec,
        compiler_params=pltpu.CompilerParams(
            dimension_semantics=("parallel",),
            vmem_limit_bytes=32 * 1024 * 1024),
    )(*args)
    return y, ssum, ssq


# ---------------------------------------------------------------------------
# Kernel B: final BN + ReLU, lane-dense elementwise on a (rows, W*C) view.
# scale/shift are pre-tiled across W so the kernel is a full-width VPU op.
# ---------------------------------------------------------------------------
def _bn_relu_kernel(y_ref, s_ref, t_ref, o_ref):
    o_ref[...] = jnp.maximum(y_ref[...] * s_ref[...] + t_ref[...], 0.0)


def bn_relu_lane_dense(y_flat, scale, shift, rows_per_block):
    """y_flat: (R, L) channel-minor flattening (L = W*C); scale/shift: (C,)."""
    R, L = y_flat.shape
    C = scale.shape[0]
    reps = L // C
    st = jnp.tile(scale.astype(jnp.float32), reps).reshape(1, L)
    tt = jnp.tile(shift.astype(jnp.float32), reps).reshape(1, L)
    return pl.pallas_call(
        _bn_relu_kernel,
        out_shape=jax.ShapeDtypeStruct((R, L), jnp.float32),
        grid=(R // rows_per_block,),
        in_specs=[pl.BlockSpec((rows_per_block, L), lambda r: (r, 0)),
                  pl.BlockSpec((1, L), lambda r: (0, 0)),
                  pl.BlockSpec((1, L), lambda r: (0, 0))],
        out_specs=pl.BlockSpec((rows_per_block, L), lambda r: (r, 0)),
        compiler_params=pltpu.CompilerParams(
            dimension_semantics=("parallel",),
            vmem_limit_bytes=32 * 1024 * 1024),
    )(y_flat, st, tt)


# ---------------------------------------------------------------------------
# BN fold from fused partial statistics (training-mode, biased variance).
# ---------------------------------------------------------------------------
def _bn_fold_from_stats(ssum, ssq, count, gamma, beta):
    s = jnp.sum(ssum, axis=(0, 1))
    q = jnp.sum(ssq, axis=(0, 1))
    mean = s / count
    var = q / count - mean * mean            # biased variance over (N, H, W)
    var = jnp.maximum(var, 0.0)              # guard tiny negatives (roundoff)
    scale = gamma * jax.lax.rsqrt(var + _EPS)
    shift = beta - mean * scale
    return scale, shift


# ---------------------------------------------------------------------------
# DoubleConv forward (Pallas)
# ---------------------------------------------------------------------------
@jax.jit
def double_conv_pallas(x_nchw, params):
    N, _, H, W = x_nchw.shape
    Cmid = params["w1"].shape[-1]
    Cout = params["w2"].shape[-1]
    npix = N * H * W

    x = jnp.transpose(x_nchw, (0, 2, 3, 1)).astype(jnp.float32)     # NCHW->NHWC

    # conv1 + per-sample BN1 partial statistics (one pass over x / y1).
    y1, s1sum, s1sq = conv3x3_bn_stats(x, params["w1"], params["b1"])
    sc1, sh1 = _bn_fold_from_stats(s1sum, s1sq, npix, params["g1"], params["bt1"])

    # BN1 + ReLU fused into conv2's input path; a1 never materializes in HBM.
    y2, s2sum, s2sq = conv3x3_bn_stats(
        y1.reshape(N, H, W, Cmid),            # free: identical memory layout
        params["w2"], params["b2"], bn_scale=sc1, bn_shift=sh1)
    sc2, sh2 = _bn_fold_from_stats(s2sum, s2sq, npix, params["g2"], params["bt2"])

    # Final BN2 + ReLU on a lane-dense (N*H, W*Cout) view.
    rows = N * H
    rpb = H if H % 8 == 0 else rows
    a2 = bn_relu_lane_dense(y2.reshape(rows, W * Cout), sc2, sh2, rpb)

    a2 = a2.reshape(N, H, W, Cout)
    return jnp.transpose(a2, (0, 3, 1, 2))                          # NHWC->NCHW


# ---------------------------------------------------------------------------
# Pure-JAX reference (PyTorch semantics: training-mode BN, biased variance)
# ---------------------------------------------------------------------------
def double_conv_ref(x_nchw, params):
    x = jnp.transpose(x_nchw, (0, 2, 3, 1)).astype(jnp.float32)

    def conv(z, w, b):
        return jax.lax.conv_general_dilated(
            z, w, window_strides=(1, 1), padding="SAME",
            dimension_numbers=("NHWC", "HWIO", "NHWC")) + b

    def bn_relu(y, gamma, beta):
        mean = jnp.mean(y, axis=(0, 1, 2))
        var = jnp.mean((y - mean) ** 2, axis=(0, 1, 2))
        yn = (y - mean) / jnp.sqrt(var + _EPS)
        return jnp.maximum(yn * gamma + beta, 0.0)

    a1 = bn_relu(conv(x, params["w1"], params["b1"]), params["g1"], params["bt1"])
    a2 = bn_relu(conv(a1, params["w2"], params["b2"]), params["g2"], params["bt2"])
    return jnp.transpose(a2, (0, 3, 1, 2))


# ---------------------------------------------------------------------------
# Deterministic parameter init (shapes follow nn.Conv2d / nn.BatchNorm2d)
# ---------------------------------------------------------------------------
def init_params(key, in_channels, mid_channels, out_channels):
    k1, k2, k3, k4 = jax.random.split(key, 4)
    return {
        # Conv weights stored HWIO (3, 3, Cin, Cout)
        "w1": 0.1 * jax.random.normal(k1, (3, 3, in_channels, mid_channels), jnp.float32),
        "b1": 0.1 * jax.random.normal(k2, (mid_channels,), jnp.float32),
        "g1": jnp.ones((mid_channels,), jnp.float32),     # BN gamma init = 1
        "bt1": jnp.zeros((mid_channels,), jnp.float32),   # BN beta  init = 0
        "w2": 0.1 * jax.random.normal(k3, (3, 3, mid_channels, out_channels), jnp.float32),
        "b2": 0.1 * jax.random.normal(k4, (out_channels,), jnp.float32),
        "g2": jnp.ones((out_channels,), jnp.float32),
        "bt2": jnp.zeros((out_channels,), jnp.float32),
    }


if __name__ == "__main__":
    key = jax.random.PRNGKey(0)
    kx, kp = jax.random.split(key)

    N, Cin, H, W = 2, 4, 16, 16
    Cmid = Cout = 8

    x = jax.random.normal(kx, (N, Cin, H, W), jnp.float32)   # NCHW, like PyTorch
    params = init_params(kp, Cin, Cmid, Cout)

    out = jax.block_until_ready(double_conv_pallas(x, params))
    ref = double_conv_ref(x, params)

    assert out.shape == (N, Cout, H, W), out.shape
    max_err = float(jnp.max(jnp.abs(out - ref)))
    assert max_err < 2e-4, max_err

    print("KERNEL_OK")
</pallas_src>

<mosaic_0001>
module attributes {stable_mosaic.version = 11 : i64} {
  func.func @_conv3x3_kernel(%arg0: i32, %arg1: memref<1x16x16x4xf32, #tpu.memory_space<vmem>>, %arg2: memref<36x8xf32, #tpu.memory_space<vmem>>, %arg3: memref<1x8xf32, #tpu.memory_space<vmem>>, %arg4: memref<1x256x8xf32, #tpu.memory_space<vmem>>, %arg5: memref<1x1x8xf32, #tpu.memory_space<vmem>>, %arg6: memref<1x1x8xf32, #tpu.memory_space<vmem>>, %arg7: memref<18x18x4xf32, #tpu.memory_space<vmem>>, %arg8: memref<256x36xf32, #tpu.memory_space<vmem>>) attributes {dimension_semantics = [#tpu.dimension_semantics<parallel>], iteration_bounds = array<i64: 2>, scalar_prefetch = 0 : i64, scratch_operands = 2 : i64, tpu.core_type = #tpu.core_type<tc>, window_params = [{transform_indices = @transform_0, window_bounds = array<i64: 1, 16, 16, 4>}, {pipeline_mode = #tpu.pipeline_mode<synchronous>, transform_indices = @transform_1, window_bounds = array<i64: 36, 8>}, {pipeline_mode = #tpu.pipeline_mode<synchronous>, transform_indices = @transform_2, window_bounds = array<i64: 1, 8>}, {transform_indices = @transform_3, window_bounds = array<i64: 1, 256, 8>}, {transform_indices = @transform_4, window_bounds = array<i64: 1, 1, 8>}, {transform_indices = @transform_5, window_bounds = array<i64: 1, 1, 8>}]} {
    %c0 = arith.constant 0 : index
    %c0_0 = arith.constant 0 : index
    %c0_1 = arith.constant 0 : index
    %c0_2 = arith.constant 0 : index
    %0 = vector.load %arg1[%c0, %c0_0, %c0_1, %c0_2] : memref<1x16x16x4xf32, #tpu.memory_space<vmem>>, vector<1x16x16x4xf32>
    %cst = arith.constant 0.000000e+00 : f32
    %1 = vector.broadcast %cst : f32 to vector<18x18x4xf32>
    %c0_3 = arith.constant 0 : index
    %c0_4 = arith.constant 0 : index
    %c0_5 = arith.constant 0 : index
    %2 = vector.load %arg7[%c0_3, %c0_4, %c0_5] : memref<18x18x4xf32, #tpu.memory_space<vmem>>, vector<18x18x4xf32>
    tpu.vector_store %arg7[%c0_3, %c0_4, %c0_5], %1 {strides = array<i32>} : memref<18x18x4xf32, #tpu.memory_space<vmem>>, vector<18x18x4xf32>,
    %3 = vector.shape_cast %0 : vector<1x16x16x4xf32> to vector<16x16x4xf32>
    %c1 = arith.constant 1 : index
    %c1_6 = arith.constant 1 : index
    %c0_7 = arith.constant 0 : index
    %4 = vector.load %arg7[%c1, %c1_6, %c0_7] : memref<18x18x4xf32, #tpu.memory_space<vmem>>, vector<16x16x4xf32>
    tpu.vector_store %arg7[%c1, %c1_6, %c0_7], %3 {strides = array<i32>} : memref<18x18x4xf32, #tpu.memory_space<vmem>>, vector<16x16x4xf32>,
    %c0_8 = arith.constant 0 : index
    %c0_9 = arith.constant 0 : index
    %c0_10 = arith.constant 0 : index
    %5 = vector.load %arg7[%c0_8, %c0_9, %c0_10] : memref<18x18x4xf32, #tpu.memory_space<vmem>>, vector<18x18x4xf32>
    %6 = vector.extract_strided_slice %5 {offsets = [0, 0, 0], sizes = [16, 16, 4], strides = [1, 1, 1]} : vector<18x18x4xf32> to vector<16x16x4xf32>
    %7 = vector.shape_cast %6 : vector<16x16x4xf32> to vector<256x4xf32>
    %c0_11 = arith.constant 0 : index
    %c0_12 = arith.constant 0 : index
    %8 = vector.load %arg8[%c0_11, %c0_12] : memref<256x36xf32, #tpu.memory_space<vmem>>, vector<256x4xf32>
    tpu.vector_store %arg8[%c0_11, %c0_12], %7 {strides = array<i32>} : memref<256x36xf32, #tpu.memory_space<vmem>>, vector<256x4xf32>,
    %9 = vector.extract_strided_slice %5 {offsets = [0, 1, 0], sizes = [16, 16, 4], strides = [1, 1, 1]} : vector<18x18x4xf32> to vector<16x16x4xf32>
    %10 = vector.shape_cast %9 : vector<16x16x4xf32> to vector<256x4xf32>
    %c0_13 = arith.constant 0 : index
    %c4 = arith.constant 4 : index
    %11 = vector.load %arg8[%c0_13, %c4] : memref<256x36xf32, #tpu.memory_space<vmem>>, vector<256x4xf32>
    tpu.vector_store %arg8[%c0_13, %c4], %10 {strides = array<i32>} : memref<256x36xf32, #tpu.memory_space<vmem>>, vector<256x4xf32>,
    %12 = vector.extract_strided_slice %5 {offsets = [0, 2, 0], sizes = [16, 16, 4], strides = [1, 1, 1]} : vector<18x18x4xf32> to vector<16x16x4xf32>
    %13 = vector.shape_cast %12 : vector<16x16x4xf32> to vector<256x4xf32>
    %c0_14 = arith.constant 0 : index
    %c8 = arith.constant 8 : index
    %14 = vector.load %arg8[%c0_14, %c8] : memref<256x36xf32, #tpu.memory_space<vmem>>, vector<256x4xf32>
    tpu.vector_store %arg8[%c0_14, %c8], %13 {strides = array<i32>} : memref<256x36xf32, #tpu.memory_space<vmem>>, vector<256x4xf32>,
    %15 = vector.extract_strided_slice %5 {offsets = [1, 0, 0], sizes = [16, 16, 4], strides = [1, 1, 1]} : vector<18x18x4xf32> to vector<16x16x4xf32>
    %16 = vector.shape_cast %15 : vector<16x16x4xf32> to vector<256x4xf32>
    %c0_15 = arith.constant 0 : index
    %c12 = arith.constant 12 : index
    %17 = vector.load %arg8[%c0_15, %c12] : memref<256x36xf32, #tpu.memory_space<vmem>>, vector<256x4xf32>
    tpu.vector_store %arg8[%c0_15, %c12], %16 {strides = array<i32>} : memref<256x36xf32, #tpu.memory_space<vmem>>, vector<256x4xf32>,
    %18 = vector.extract_strided_slice %5 {offsets = [1, 1, 0], sizes = [16, 16, 4], strides = [1, 1, 1]} : vector<18x18x4xf32> to vector<16x16x4xf32>
    %19 = vector.shape_cast %18 : vector<16x16x4xf32> to vector<256x4xf32>
    %c0_16 = arith.constant 0 : index
    %c16 = arith.constant 16 : index
    %20 = vector.load %arg8[%c0_16, %c16] : memref<256x36xf32, #tpu.memory_space<vmem>>, vector<256x4xf32>
    tpu.vector_store %arg8[%c0_16, %c16], %19 {strides = array<i32>} : memref<256x36xf32, #tpu.memory_space<vmem>>, vector<256x4xf32>,
    %21 = vector.extract_strided_slice %5 {offsets = [1, 2, 0], sizes = [16, 16, 4], strides = [1, 1, 1]} : vector<18x18x4xf32> to vector<16x16x4xf32>
    %22 = vector.shape_cast %21 : vector<16x16x4xf32> to vector<256x4xf32>
    %c0_17 = arith.constant 0 : index
    %c20 = arith.constant 20 : index
    %23 = vector.load %arg8[%c0_17, %c20] : memref<256x36xf32, #tpu.memory_space<vmem>>, vector<256x4xf32>
    tpu.vector_store %arg8[%c0_17, %c20], %22 {strides = array<i32>} : memref<256x36xf32, #tpu.memory_space<vmem>>, vector<256x4xf32>,
    %24 = vector.extract_strided_slice %5 {offsets = [2, 0, 0], sizes = [16, 16, 4], strides = [1, 1, 1]} : vector<18x18x4xf32> to vector<16x16x4xf32>
    %25 = vector.shape_cast %24 : vector<16x16x4xf32> to vector<256x4xf32>
    %c0_18 = arith.constant 0 : index
    %c24 = arith.constant 24 : index
    %26 = vector.load %arg8[%c0_18, %c24] : memref<256x36xf32, #tpu.memory_space<vmem>>, vector<256x4xf32>
    tpu.vector_store %arg8[%c0_18, %c24], %25 {strides = array<i32>} : memref<256x36xf32, #tpu.memory_space<vmem>>, vector<256x4xf32>,
    %27 = vector.extract_strided_slice %5 {offsets = [2, 1, 0], sizes = [16, 16, 4], strides = [1, 1, 1]} : vector<18x18x4xf32> to vector<16x16x4xf32>
    %28 = vector.shape_cast %27 : vector<16x16x4xf32> to vector<256x4xf32>
    %c0_19 = arith.constant 0 : index
    %c28 = arith.constant 28 : index
    %29 = vector.load %arg8[%c0_19, %c28] : memref<256x36xf32, #tpu.memory_space<vmem>>, vector<256x4xf32>
    tpu.vector_store %arg8[%c0_19, %c28], %28 {strides = array<i32>} : memref<256x36xf32, #tpu.memory_space<vmem>>, vector<256x4xf32>,
    %30 = vector.extract_strided_slice %5 {offsets = [2, 2, 0], sizes = [16, 16, 4], strides = [1, 1, 1]} : vector<18x18x4xf32> to vector<16x16x4xf32>
    %31 = vector.shape_cast %30 : vector<16x16x4xf32> to vector<256x4xf32>
    %c0_20 = arith.constant 0 : index
    %c32 = arith.constant 32 : index
    %32 = vector.load %arg8[%c0_20, %c32] : memref<256x36xf32, #tpu.memory_space<vmem>>, vector<256x4xf32>
    tpu.vector_store %arg8[%c0_20, %c32], %31 {strides = array<i32>} : memref<256x36xf32, #tpu.memory_space<vmem>>, vector<256x4xf32>,
    %c0_21 = arith.constant 0 : index
    %c0_22 = arith.constant 0 : index
    %33 = vector.load %arg8[%c0_21, %c0_22] : memref<256x36xf32, #tpu.memory_space<vmem>>, vector<256x36xf32>
    %c0_23 = arith.constant 0 : index
    %c0_24 = arith.constant 0 : index
    %34 = vector.load %arg2[%c0_23, %c0_24] : memref<36x8xf32, #tpu.memory_space<vmem>>, vector<36x8xf32>
    %cst_25 = arith.constant dense<0.000000e+00> : vector<256x8xf32>
    %35 = tpu.matmul %33, %34, %cst_25 {dimension_numbers = #tpu.dot_dimension_numbers<[1], [0], [0], [1], [0, 0, 1, 1], [], []>} : vector<256x36xf32>, vector<36x8xf32>, vector<256x8xf32> -> vector<256x8xf32>
    %c0_26 = arith.constant 0 : index
    %c0_27 = arith.constant 0 : index
    %36 = vector.load %arg3[%c0_26, %c0_27] : memref<1x8xf32, #tpu.memory_space<vmem>>, vector<1x8xf32>
    %37 = vector.broadcast %36 : vector<1x8xf32> to vector<256x8xf32>
    %38 = arith.addf %35, %37 : vector<256x8xf32>
    %c0_28 = arith.constant 0 : index
    %c0_29 = arith.constant 0 : index
    %c0_30 = arith.constant 0 : index
    %39 = vector.load %arg4[%c0_28, %c0_29, %c0_30] : memref<1x256x8xf32, #tpu.memory_space<vmem>>, vector<1x256x8xf32>
    %40 = vector.shape_cast %39 : vector<1x256x8xf32> to vector<256x8xf32>
    %41 = vector.shape_cast %38 : vector<256x8xf32> to vector<1x256x8xf32>
    tpu.vector_store %arg4[%c0_28, %c0_29, %c0_30], %41 {strides = array<i32>} : memref<1x256x8xf32, #tpu.memory_space<vmem>>, vector<1x256x8xf32>,
    %cst_31 = arith.constant dense<0.000000e+00> : vector<8xf32>
    %42 = vector.multi_reduction <add>, %38, %cst_31 [0] : vector<256x8xf32> to vector<8xf32>
    %43 = vector.shape_cast %42 : vector<8xf32> to vector<1x8xf32>
    %c0_32 = arith.constant 0 : index
    %c0_33 = arith.constant 0 : index
    %c0_34 = arith.constant 0 : index
    %44 = vector.load %arg5[%c0_32, %c0_33, %c0_34] : memref<1x1x8xf32, #tpu.memory_space<vmem>>, vector<1x1x8xf32>
    %45 = vector.shape_cast %44 : vector<1x1x8xf32> to vector<1x8xf32>
    %46 = vector.shape_cast %43 : vector<1x8xf32> to vector<1x1x8xf32>
    tpu.vector_store %arg5[%c0_32, %c0_33, %c0_34], %46 {strides = array<i32>} : memref<1x1x8xf32, #tpu.memory_space<vmem>>, vector<1x1x8xf32>,
    %47 = arith.mulf %38, %38 : vector<256x8xf32>
    %cst_35 = arith.constant dense<0.000000e+00> : vector<8xf32>
    %48 = vector.multi_reduction <add>, %47, %cst_35 [0] : vector<256x8xf32> to vector<8xf32>
    %49 = vector.shape_cast %48 : vector<8xf32> to vector<1x8xf32>
    %c0_36 = arith.constant 0 : index
    %c0_37 = arith.constant 0 : index
    %c0_38 = arith.constant 0 : index
    %50 = vector.load %arg6[%c0_36, %c0_37, %c0_38] : memref<1x1x8xf32, #tpu.memory_space<vmem>>, vector<1x1x8xf32>
    %51 = vector.shape_cast %50 : vector<1x1x8xf32> to vector<1x8xf32>
    %52 = vector.shape_cast %49 : vector<1x8xf32> to vector<1x1x8xf32>
    tpu.vector_store %arg6[%c0_36, %c0_37, %c0_38], %52 {strides = array<i32>} : memref<1x1x8xf32, #tpu.memory_space<vmem>>, vector<1x1x8xf32>,
    return
  }
  func.func @transform_0(%arg0: i32) -> (i32, i32, i32, i32) {
    %c0_i32 = arith.constant 0 : i32
    %c0_i32_0 = arith.constant 0 : i32
    %c0_i32_1 = arith.constant 0 : i32
    %c0_i32_2 = arith.constant 0 : i32
    return %arg0, %c0_i32, %c0_i32_0, %c0_i32_1 : i32, i32, i32, i32
  }
  func.func @transform_1(%arg0: i32) -> (i32, i32) {
    %c0_i32 = arith.constant 0 : i32
    %c0_i32_0 = arith.constant 0 : i32
    %c0_i32_1 = arith.constant 0 : i32
    return %c0_i32, %c0_i32_0 : i32, i32
  }
  func.func @transform_2(%arg0: i32) -> (i32, i32) {
    %c0_i32 = arith.constant 0 : i32
    %c0_i32_0 = arith.constant 0 : i32
    %c0_i32_1 = arith.constant 0 : i32
    return %c0_i32, %c0_i32_0 : i32, i32
  }
  func.func @transform_3(%arg0: i32) -> (i32, i32, i32) {
    %c0_i32 = arith.constant 0 : i32
    %c0_i32_0 = arith.constant 0 : i32
    %c0_i32_1 = arith.constant 0 : i32
    return %arg0, %c0_i32, %c0_i32_0 : i32, i32, i32
  }
  func.func @transform_4(%arg0: i32) -> (i32, i32, i32) {
    %c0_i32 = arith.constant 0 : i32
    %c0_i32_0 = arith.constant 0 : i32
    %c0_i32_1 = arith.constant 0 : i32
    return %arg0, %c0_i32, %c0_i32_0 : i32, i32, i32
  }
  func.func @transform_5(%arg0: i32) -> (i32, i32, i32) {
    %c0_i32 = arith.constant 0 : i32
    %c0_i32_0 = arith.constant 0 : i32
    %c0_i32_1 = arith.constant 0 : i32
    return %arg0, %c0_i32, %c0_i32_0 : i32, i32, i32
  }
}

module attributes {stable_mosaic.version = 11 : i64} {
  func.func @_conv3x3_kernel(%arg0: i32, %arg1: memref<1x16x16x8xf32, #tpu.memory_space<vmem>>, %arg2: memref<1x1x1x8xf32, #tpu.memory_space<vmem>>, %arg3: memref<1x1x1x8xf32, #tpu.memory_space<vmem>>, %arg4: memref<72x8xf32, #tpu.memory_space<vmem>>, %arg5: memref<1x8xf32, #tpu.memory_space<vmem>>, %arg6: memref<1x256x8xf32, #tpu.memory_space<vmem>>, %arg7: memref<1x1x8xf32, #tpu.memory_space<vmem>>, %arg8: memref<1x1x8xf32, #tpu.memory_space<vmem>>, %arg9: memref<18x18x8xf32, #tpu.memory_space<vmem>>, %arg10: memref<256x72xf32, #tpu.memory_space<vmem>>) attributes {dimension_semantics = [#tpu.dimension_semantics<parallel>], iteration_bounds = array<i64: 2>, scalar_prefetch = 0 : i64, scratch_operands = 2 : i64, tpu.core_type = #tpu.core_type<tc>, window_params = [{transform_indices = @transform_0, window_bounds = array<i64: 1, 16, 16, 8>}, {pipeline_mode = #tpu.pipeline_mode<synchronous>, transform_indices = @transform_1, window_bounds = array<i64: 1, 1, 1, 8>}, {pipeline_mode = #tpu.pipeline_mode<synchronous>, transform_indices = @transform_2, window_bounds = array<i64: 1, 1, 1, 8>}, {pipeline_mode = #tpu.pipeline_mode<synchronous>, transform_indices = @transform_3, window_bounds = array<i64: 72, 8>}, {pipeline_mode = #tpu.pipeline_mode<synchronous>, transform_indices = @transform_4, window_bounds = array<i64: 1, 8>}, {transform_indices = @transform_5, window_bounds = array<i64: 1, 256, 8>}, {transform_indices = @transform_6, window_bounds = array<i64: 1, 1, 8>}, {transform_indices = @transform_7, window_bounds = array<i64: 1, 1, 8>}]} {
    %c0 = arith.constant 0 : index
    %c0_0 = arith.constant 0 : index
    %c0_1 = arith.constant 0 : index
    %c0_2 = arith.constant 0 : index
    %0 = vector.load %arg1[%c0, %c0_0, %c0_1, %c0_2] : memref<1x16x16x8xf32, #tpu.memory_space<vmem>>, vector<1x16x16x8xf32>
    %c0_3 = arith.constant 0 : index
    %c0_4 = arith.constant 0 : index
    %c0_5 = arith.constant 0 : index
    %c0_6 = arith.constant 0 : index
    %1 = vector.load %arg2[%c0_3, %c0_4, %c0_5, %c0_6] : memref<1x1x1x8xf32, #tpu.memory_space<vmem>>, vector<1x1x1x8xf32>
    %2 = vector.broadcast %1 : vector<1x1x1x8xf32> to vector<1x16x16x8xf32>
    %3 = arith.mulf %0, %2 : vector<1x16x16x8xf32>
    %c0_7 = arith.constant 0 : index
    %c0_8 = arith.constant 0 : index
    %c0_9 = arith.constant 0 : index
    %c0_10 = arith.constant 0 : index
    %4 = vector.load %arg3[%c0_7, %c0_8, %c0_9, %c0_10] : memref<1x1x1x8xf32, #tpu.memory_space<vmem>>, vector<1x1x1x8xf32>
    %5 = vector.broadcast %4 : vector<1x1x1x8xf32> to vector<1x16x16x8xf32>
    %6 = arith.addf %3, %5 : vector<1x16x16x8xf32>
    %cst = arith.constant 0.000000e+00 : f32
    %7 = vector.broadcast %cst : f32 to vector<1x16x16x8xf32>
    %8 = arith.maximumf %6, %7 : vector<1x16x16x8xf32>
    %cst_11 = arith.constant 0.000000e+00 : f32
    %9 = vector.broadcast %cst_11 : f32 to vector<18x18x8xf32>
    %c0_12 = arith.constant 0 : index
    %c0_13 = arith.constant 0 : index
    %c0_14 = arith.constant 0 : index
    %10 = vector.load %arg9[%c0_12, %c0_13, %c0_14] : memref<18x18x8xf32, #tpu.memory_space<vmem>>, vector<18x18x8xf32>
    tpu.vector_store %arg9[%c0_12, %c0_13, %c0_14], %9 {strides = array<i32>} : memref<18x18x8xf32, #tpu.memory_space<vmem>>, vector<18x18x8xf32>,
    %11 = vector.shape_cast %8 : vector<1x16x16x8xf32> to vector<16x16x8xf32>
    %c1 = arith.constant 1 : index
    %c1_15 = arith.constant 1 : index
    %c0_16 = arith.constant 0 : index
    %12 = vector.load %arg9[%c1, %c1_15, %c0_16] : memref<18x18x8xf32, #tpu.memory_space<vmem>>, vector<16x16x8xf32>
    tpu.vector_store %arg9[%c1, %c1_15, %c0_16], %11 {strides = array<i32>} : memref<18x18x8xf32, #tpu.memory_space<vmem>>, vector<16x16x8xf32>,
    %c0_17 = arith.constant 0 : index
    %c0_18 = arith.constant 0 : index
    %c0_19 = arith.constant 0 : index
    %13 = vector.load %arg9[%c0_17, %c0_18, %c0_19] : memref<18x18x8xf32, #tpu.memory_space<vmem>>, vector<18x18x8xf32>
    %14 = vector.extract_strided_slice %13 {offsets = [0, 0, 0], sizes = [16, 16, 8], strides = [1, 1, 1]} : vector<18x18x8xf32> to vector<16x16x8xf32>
    %15 = vector.shape_cast %14 : vector<16x16x8xf32> to vector<256x8xf32>
    %c0_20 = arith.constant 0 : index
    %c0_21 = arith.constant 0 : index
    %16 = vector.load %arg10[%c0_20, %c0_21] : memref<256x72xf32, #tpu.memory_space<vmem>>, vector<256x8xf32>
    tpu.vector_store %arg10[%c0_20, %c0_21], %15 {strides = array<i32>} : memref<256x72xf32, #tpu.memory_space<vmem>>, vector<256x8xf32>,
    %17 = vector.extract_strided_slice %13 {offsets = [0, 1, 0], sizes = [16, 16, 8], strides = [1, 1, 1]} : vector<18x18x8xf32> to vector<16x16x8xf32>
    %18 = vector.shape_cast %17 : vector<16x16x8xf32> to vector<256x8xf32>
    %c0_22 = arith.constant 0 : index
    %c8 = arith.constant 8 : index
    %19 = vector.load %arg10[%c0_22, %c8] : memref<256x72xf32, #tpu.memory_space<vmem>>, vector<256x8xf32>
    tpu.vector_store %arg10[%c0_22, %c8], %18 {strides = array<i32>} : memref<256x72xf32, #tpu.memory_space<vmem>>, vector<256x8xf32>,
    %20 = vector.extract_strided_slice %13 {offsets = [0, 2, 0], sizes = [16, 16, 8], strides = [1, 1, 1]} : vector<18x18x8xf32> to vector<16x16x8xf32>
    %21 = vector.shape_cast %20 : vector<16x16x8xf32> to vector<256x8xf32>
    %c0_23 = arith.constant 0 : index
    %c16 = arith.constant 16 : index
    %22 = vector.load %arg10[%c0_23, %c16] : memref<256x72xf32, #tpu.memory_space<vmem>>, vector<256x8xf32>
    tpu.vector_store %arg10[%c0_23, %c16], %21 {strides = array<i32>} : memref<256x72xf32, #tpu.memory_space<vmem>>, vector<256x8xf32>,
    %23 = vector.extract_strided_slice %13 {offsets = [1, 0, 0], sizes = [16, 16, 8], strides = [1, 1, 1]} : vector<18x18x8xf32> to vector<16x16x8xf32>
    %24 = vector.shape_cast %23 : vector<16x16x8xf32> to vector<256x8xf32>
    %c0_24 = arith.constant 0 : index
    %c24 = arith.constant 24 : index
    %25 = vector.load %arg10[%c0_24, %c24] : memref<256x72xf32, #tpu.memory_space<vmem>>, vector<256x8xf32>
    tpu.vector_store %arg10[%c0_24, %c24], %24 {strides = array<i32>} : memref<256x72xf32, #tpu.memory_space<vmem>>, vector<256x8xf32>,
    %26 = vector.extract_strided_slice %13 {offsets = [1, 1, 0], sizes = [16, 16, 8], strides = [1, 1, 1]} : vector<18x18x8xf32> to vector<16x16x8xf32>
    %27 = vector.shape_cast %26 : vector<16x16x8xf32> to vector<256x8xf32>
    %c0_25 = arith.constant 0 : index
    %c32 = arith.constant 32 : index
    %28 = vector.load %arg10[%c0_25, %c32] : memref<256x72xf32, #tpu.memory_space<vmem>>, vector<256x8xf32>
    tpu.vector_store %arg10[%c0_25, %c32], %27 {strides = array<i32>} : memref<256x72xf32, #tpu.memory_space<vmem>>, vector<256x8xf32>,
    %29 = vector.extract_strided_slice %13 {offsets = [1, 2, 0], sizes = [16, 16, 8], strides = [1, 1, 1]} : vector<18x18x8xf32> to vector<16x16x8xf32>
    %30 = vector.shape_cast %29 : vector<16x16x8xf32> to vector<256x8xf32>
    %c0_26 = arith.constant 0 : index
    %c40 = arith.constant 40 : index
    %31 = vector.load %arg10[%c0_26, %c40] : memref<256x72xf32, #tpu.memory_space<vmem>>, vector<256x8xf32>
    tpu.vector_store %arg10[%c0_26, %c40], %30 {strides = array<i32>} : memref<256x72xf32, #tpu.memory_space<vmem>>, vector<256x8xf32>,
    %32 = vector.extract_strided_slice %13 {offsets = [2, 0, 0], sizes = [16, 16, 8], strides = [1, 1, 1]} : vector<18x18x8xf32> to vector<16x16x8xf32>
    %33 = vector.shape_cast %32 : vector<16x16x8xf32> to vector<256x8xf32>
    %c0_27 = arith.constant 0 : index
    %c48 = arith.constant 48 : index
    %34 = vector.load %arg10[%c0_27, %c48] : memref<256x72xf32, #tpu.memory_space<vmem>>, vector<256x8xf32>
    tpu.vector_store %arg10[%c0_27, %c48], %33 {strides = array<i32>} : memref<256x72xf32, #tpu.memory_space<vmem>>, vector<256x8xf32>,
    %35 = vector.extract_strided_slice %13 {offsets = [2, 1, 0], sizes = [16, 16, 8], strides = [1, 1, 1]} : vector<18x18x8xf32> to vector<16x16x8xf32>
    %36 = vector.shape_cast %35 : vector<16x16x8xf32> to vector<256x8xf32>
    %c0_28 = arith.constant 0 : index
    %c56 = arith.constant 56 : index
    %37 = vector.load %arg10[%c0_28, %c56] : memref<256x72xf32, #tpu.memory_space<vmem>>, vector<256x8xf32>
    tpu.vector_store %arg10[%c0_28, %c56], %36 {strides = array<i32>} : memref<256x72xf32, #tpu.memory_space<vmem>>, vector<256x8xf32>,
    %38 = vector.extract_strided_slice %13 {offsets = [2, 2, 0], sizes = [16, 16, 8], strides = [1, 1, 1]} : vector<18x18x8xf32> to vector<16x16x8xf32>
    %39 = vector.shape_cast %38 : vector<16x16x8xf32> to vector<256x8xf32>
    %c0_29 = arith.constant 0 : index
    %c64 = arith.constant 64 : index
    %40 = vector.load %arg10[%c0_29, %c64] : memref<256x72xf32, #tpu.memory_space<vmem>>, vector<256x8xf32>
    tpu.vector_store %arg10[%c0_29, %c64], %39 {strides = array<i32>} : memref<256x72xf32, #tpu.memory_space<vmem>>, vector<256x8xf32>,
    %c0_30 = arith.constant 0 : index
    %c0_31 = arith.constant 0 : index
    %41 = vector.load %arg10[%c0_30, %c0_31] : memref<256x72xf32, #tpu.memory_space<vmem>>, vector<256x72xf32>
    %c0_32 = arith.constant 0 : index
    %c0_33 = arith.constant 0 : index
    %42 = vector.load %arg4[%c0_32, %c0_33] : memref<72x8xf32, #tpu.memory_space<vmem>>, vector<72x8xf32>
    %cst_34 = arith.constant dense<0.000000e+00> : vector<256x8xf32>
    %43 = tpu.matmul %41, %42, %cst_34 {dimension_numbers = #tpu.dot_dimension_numbers<[1], [0], [0], [1], [0, 0, 1, 1], [], []>} : vector<256x72xf32>, vector<72x8xf32>, vector<256x8xf32> -> vector<256x8xf32>
    %c0_35 = arith.constant 0 : index
    %c0_36 = arith.constant 0 : index
    %44 = vector.load %arg5[%c0_35, %c0_36] : memref<1x8xf32, #tpu.memory_space<vmem>>, vector<1x8xf32>
    %45 = vector.broadcast %44 : vector<1x8xf32> to vector<256x8xf32>
    %46 = arith.addf %43, %45 : vector<256x8xf32>
    %c0_37 = arith.constant 0 : index
    %c0_38 = arith.constant 0 : index
    %c0_39 = arith.constant 0 : index
    %47 = vector.load %arg6[%c0_37, %c0_38, %c0_39] : memref<1x256x8xf32, #tpu.memory_space<vmem>>, vector<1x256x8xf32>
    %48 = vector.shape_cast %47 : vector<1x256x8xf32> to vector<256x8xf32>
    %49 = vector.shape_cast %46 : vector<256x8xf32> to vector<1x256x8xf32>
    tpu.vector_store %arg6[%c0_37, %c0_38, %c0_39], %49 {strides = array<i32>} : memref<1x256x8xf32, #tpu.memory_space<vmem>>, vector<1x256x8xf32>,
    %cst_40 = arith.constant dense<0.000000e+00> : vector<8xf32>
    %50 = vector.multi_reduction <add>, %46, %cst_40 [0] : vector<256x8xf32> to vector<8xf32>
    %51 = vector.shape_cast %50 : vector<8xf32> to vector<1x8xf32>
    %c0_41 = arith.constant 0 : index
    %c0_42 = arith.constant 0 : index
    %c0_43 = arith.constant 0 : index
    %52 = vector.load %arg7[%c0_41, %c0_42, %c0_43] : memref<1x1x8xf32, #tpu.memory_space<vmem>>, vector<1x1x8xf32>
    %53 = vector.shape_cast %52 : vector<1x1x8xf32> to vector<1x8xf32>
    %54 = vector.shape_cast %51 : vector<1x8xf32> to vector<1x1x8xf32>
    tpu.vector_store %arg7[%c0_41, %c0_42, %c0_43], %54 {strides = array<i32>} : memref<1x1x8xf32, #tpu.memory_space<vmem>>, vector<1x1x8xf32>,
    %55 = arith.mulf %46, %46 : vector<256x8xf32>
    %cst_44 = arith.constant dense<0.000000e+00> : vector<8xf32>
    %56 = vector.multi_reduction <add>, %55, %cst_44 [0] : vector<256x8xf32> to vector<8xf32>
    %57 = vector.shape_cast %56 : vector<8xf32> to vector<1x8xf32>
    %c0_45 = arith.constant 0 : index
    %c0_46 = arith.constant 0 : index
    %c0_47 = arith.constant 0 : index
    %58 = vector.load %arg8[%c0_45, %c0_46, %c0_47] : memref<1x1x8xf32, #tpu.memory_space<vmem>>, vector<1x1x8xf32>
    %59 = vector.shape_cast %58 : vector<1x1x8xf32> to vector<1x8xf32>
    %60 = vector.shape_cast %57 : vector<1x8xf32> to vector<1x1x8xf32>
    tpu.vector_store %arg8[%c0_45, %c0_46, %c0_47], %60 {strides = array<i32>} : memref<1x1x8xf32, #tpu.memory_space<vmem>>, vector<1x1x8xf32>,
    return
  }
  func.func @transform_0(%arg0: i32) -> (i32, i32, i32, i32) {
    %c0_i32 = arith.constant 0 : i32
    %c0_i32_0 = arith.constant 0 : i32
    %c0_i32_1 = arith.constant 0 : i32
    %c0_i32_2 = arith.constant 0 : i32
    return %arg0, %c0_i32, %c0_i32_0, %c0_i32_1 : i32, i32, i32, i32
  }
  func.func @transform_1(%arg0: i32) -> (i32, i32, i32, i32) {
    %c0_i32 = arith.constant 0 : i32
    %c0_i32_0 = arith.constant 0 : i32
    %c0_i32_1 = arith.constant 0 : i32
    %c0_i32_2 = arith.constant 0 : i32
    %c0_i32_3 = arith.constant 0 : i32
    return %c0_i32, %c0_i32_0, %c0_i32_1, %c0_i32_2 : i32, i32, i32, i32
  }
  func.func @transform_2(%arg0: i32) -> (i32, i32, i32, i32) {
    %c0_i32 = arith.constant 0 : i32
    %c0_i32_0 = arith.constant 0 : i32
    %c0_i32_1 = arith.constant 0 : i32
    %c0_i32_2 = arith.constant 0 : i32
    %c0_i32_3 = arith.constant 0 : i32
    return %c0_i32, %c0_i32_0, %c0_i32_1, %c0_i32_2 : i32, i32, i32, i32
  }
  func.func @transform_3(%arg0: i32) -> (i32, i32) {
    %c0_i32 = arith.constant 0 : i32
    %c0_i32_0 = arith.constant 0 : i32
    %c0_i32_1 = arith.constant 0 : i32
    return %c0_i32, %c0_i32_0 : i32, i32
  }
  func.func @transform_4(%arg0: i32) -> (i32, i32) {
    %c0_i32 = arith.constant 0 : i32
    %c0_i32_0 = arith.constant 0 : i32
    %c0_i32_1 = arith.constant 0 : i32
    return %c0_i32, %c0_i32_0 : i32, i32
  }
  func.func @transform_5(%arg0: i32) -> (i32, i32, i32) {
    %c0_i32 = arith.constant 0 : i32
    %c0_i32_0 = arith.constant 0 : i32
    %c0_i32_1 = arith.constant 0 : i32
    return %arg0, %c0_i32, %c0_i32_0 : i32, i32, i32
  }
  func.func @transform_6(%arg0: i32) -> (i32, i32, i32) {
    %c0_i32 = arith.constant 0 : i32
    %c0_i32_0 = arith.constant 0 : i32
    %c0_i32_1 = arith.constant 0 : i32
    return %arg0, %c0_i32, %c0_i32_0 : i32, i32, i32
  }
  func.func @transform_7(%arg0: i32) -> (i32, i32, i32) {
    %c0_i32 = arith.constant 0 : i32
    %c0_i32_0 = arith.constant 0 : i32
    %c0_i32_1 = arith.constant 0 : i32
    return %arg0, %c0_i32, %c0_i32_0 : i32, i32, i32
  }
}

module attributes {stable_mosaic.version = 11 : i64} {
  func.func @_bn_relu_kernel(%arg0: i32, %arg1: memref<16x128xf32, #tpu.memory_space<vmem>>, %arg2: memref<1x128xf32, #tpu.memory_space<vmem>>, %arg3: memref<1x128xf32, #tpu.memory_space<vmem>>, %arg4: memref<16x128xf32, #tpu.memory_space<vmem>>) attributes {dimension_semantics = [#tpu.dimension_semantics<parallel>], iteration_bounds = array<i64: 2>, scalar_prefetch = 0 : i64, scratch_operands = 0 : i64, tpu.core_type = #tpu.core_type<tc>, window_params = [{transform_indices = @transform_0, window_bounds = array<i64: 16, 128>}, {pipeline_mode = #tpu.pipeline_mode<synchronous>, transform_indices = @transform_1, window_bounds = array<i64: 1, 128>}, {pipeline_mode = #tpu.pipeline_mode<synchronous>, transform_indices = @transform_2, window_bounds = array<i64: 1, 128>}, {transform_indices = @transform_3, window_bounds = array<i64: 16, 128>}]} {
    %c0 = arith.constant 0 : index
    %c0_0 = arith.constant 0 : index
    %0 = vector.load %arg1[%c0, %c0_0] : memref<16x128xf32, #tpu.memory_space<vmem>>, vector<16x128xf32>
    %c0_1 = arith.constant 0 : index
    %c0_2 = arith.constant 0 : index
    %1 = vector.load %arg2[%c0_1, %c0_2] : memref<1x128xf32, #tpu.memory_space<vmem>>, vector<1x128xf32>
    %2 = vector.broadcast %1 : vector<1x128xf32> to vector<16x128xf32>
    %3 = arith.mulf %0, %2 : vector<16x128xf32>
    %c0_3 = arith.constant 0 : index
    %c0_4 = arith.constant 0 : index
    %4 = vector.load %arg3[%c0_3, %c0_4] : memref<1x128xf32, #tpu.memory_space<vmem>>, vector<1x128xf32>
    %5 = vector.broadcast %4 : vector<1x128xf32> to vector<16x128xf32>
    %6 = arith.addf %3, %5 : vector<16x128xf32>
    %cst = arith.constant 0.000000e+00 : f32
    %7 = vector.broadcast %cst : f32 to vector<16x128xf32>
    %8 = arith.maximumf %6, %7 : vector<16x128xf32>
    %c0_5 = arith.constant 0 : index
    %c0_6 = arith.constant 0 : index
    %9 = vector.load %arg4[%c0_5, %c0_6] : memref<16x128xf32, #tpu.memory_space<vmem>>, vector<16x128xf32>
    tpu.vector_store %arg4[%c0_5, %c0_6], %8 {strides = array<i32>} : memref<16x128xf32, #tpu.memory_space<vmem>>, vector<16x128xf32>,
    return
  }
  func.func @transform_0(%arg0: i32) -> (i32, i32) {
    %c0_i32 = arith.constant 0 : i32
    %c0_i32_0 = arith.constant 0 : i32
    return %arg0, %c0_i32 : i32, i32
  }
  func.func @transform_1(%arg0: i32) -> (i32, i32) {
    %c0_i32 = arith.constant 0 : i32
    %c0_i32_0 = arith.constant 0 : i32
    %c0_i32_1 = arith.constant 0 : i32
    return %c0_i32, %c0_i32_0 : i32, i32
  }
  func.func @transform_2(%arg0: i32) -> (i32, i32) {
    %c0_i32 = arith.constant 0 : i32
    %c0_i32_0 = arith.constant 0 : i32
    %c0_i32_1 = arith.constant 0 : i32
    return %c0_i32, %c0_i32_0 : i32, i32
  }
  func.func @transform_3(%arg0: i32) -> (i32, i32) {
    %c0_i32 = arith.constant 0 : i32
    %c0_i32_0 = arith.constant 0 : i32
    return %arg0, %c0_i32 : i32, i32
  }
}

</mosaic_0001>

<llo_original>
// kernel: tile.18
$region0: #{tile.18}
  #allocation0 [shape = 's32[1]{0}', space=sflag, size = 0x4, scoped, tag = 'scoped memory for tile.18']
  %s0 = inlined_call_operand.vmem [shape: f32[8], index: 0, kind: input, shape index: {}]
  %s1 = inlined_call_operand.vmem [shape: f32[16,8], index: 1, kind: output, shape index: {}]
  // Predicated region
  $region2: #{tile.18} parent=0 // pred_check
    _
  $region3: #{tile.18} parent=0 // pred_check_branch
    %3 = sbr.rel (0) target = $region5
  $region4: #{tile.18} parent=0 // pred_region
    _
  $region5: #{tile.18} parent=0 // pred_fallthru
    _
  %v4 = vld [vmem:[%s0] ss:$0 sm:$0xff]
  %5 = vst [vmem:[%s1] sm:$0xff] %v4
  %s6 = scalar_lea.vmem %s1, 8
  %7 = vst [vmem:[%s6] sm:$0xff] %v4

// kernel: tile.19
$region0: #{tile.19}
  %s0 = inlined_call_operand.vmem [shape: f32[16,8], index: 0, kind: input, shape index: {}]
  %s1 = inlined_call_operand.vmem [shape: f32[1,128], index: 1, kind: output, shape index: {}]
  $region1: #{tile.19} parent=0
    #allocation0 [shape = 'u8[4096]{0}', space=vmem, size = 0x1000, scoped, tag = 'scoped mem for output reshape']
    %v2 = vld [vmem:[%s0] sm:$0x1]
    %vm3 = vcmask 64512
    %4 = vst.msk [vmem:[#allocation0] sm:$0x1] %vm3, %v2
    %s5 = scalar_lea.vmem %s0, 15
    %v6 = vld [vmem:[%s5] sm:$0x1]
    %7 = vrot.lane.b32.xlu0 %v6, 120
    %v8 = vpop.permute.xlu0 %7
    %vm9 = vcmask 1048512
    %10 = vst.msk [vmem:[#allocation0] sm:$0x1] %vm9, %v8
    %s11 = scalar_lea.vmem %s0, 14
    %v12 = vld [vmem:[%s11] sm:$0x1]
    %13 = vrot.lane.b32.xlu0 %v12, 112
    %v14 = vpop.permute.xlu0 %13
    %vm15 = vcmask 982912
    %16 = vst.msk [vmem:[#allocation0] sm:$0x1] %vm15, %v14
    %s17 = scalar_lea.vmem %s0, 13
    %v18 = vld [vmem:[%s17] sm:$0x1]
    %19 = vrot.lane.b32.xlu0 %v18, 104
    %v20 = vpop.permute.xlu0 %19
    %vm21 = vcmask 917312
    %22 = vst.msk [vmem:[#allocation0] sm:$0x1] %vm21, %v20
    %s23 = scalar_lea.vmem %s0, 12
    %v24 = vld [vmem:[%s23] sm:$0x1]
    %25 = vrot.lane.b32.xlu0 %v24, 96
    %v26 = vpop.permute.xlu0 %25
    %vm27 = vcmask 851712
    %28 = vst.msk [vmem:[#allocation0] sm:$0x1] %vm27, %v26
    %s29 = scalar_lea.vmem %s0, 11
    %v30 = vld [vmem:[%s29] sm:$0x1]
    %31 = vrot.lane.b32.xlu0 %v30, 88
    %v32 = vpop.permute.xlu0 %31
    %vm33 = vcmask 786112
    %34 = vst.msk [vmem:[#allocation0] sm:$0x1] %vm33, %v32
    %s35 = scalar_lea.vmem %s0, 10
    %v36 = vld [vmem:[%s35] sm:$0x1]
    %37 = vrot.lane.b32.xlu0 %v36, 80
    %v38 = vpop.permute.xlu0 %37
    %vm39 = vcmask 720512
    %40 = vst.msk [vmem:[#allocation0] sm:$0x1] %vm39, %v38
    %s41 = scalar_lea.vmem %s0, 9
    %v42 = vld [vmem:[%s41] sm:$0x1]
    %43 = vrot.lane.b32.xlu0 %v42, 72
    %v44 = vpop.permute.xlu0 %43
    %vm45 = vcmask 654912
    %46 = vst.msk [vmem:[#allocation0] sm:$0x1] %vm45, %v44
    %s47 = scalar_lea.vmem %s0, 8
    %v48 = vld [vmem:[%s47] sm:$0x1]
    %49 = vrot.lane.b32.xlu0 %v48, 64
    %v50 = vpop.permute.xlu0 %49
    %vm51 = vcmask 589312
    %52 = vst.msk [vmem:[#allocation0] sm:$0x1] %vm51, %v50
    %s53 = scalar_lea.vmem %s0, 7
    %v54 = vld [vmem:[%s53] sm:$0x1]
    %55 = vrot.lane.b32.xlu0 %v54, 56
    %v56 = vpop.permute.xlu0 %55
    %vm57 = vcmask 523712
    %58 = vst.msk [vmem:[#allocation0] sm:$0x1] %vm57, %v56
    %s59 = scalar_lea.vmem %s0, 6
    %v60 = vld [vmem:[%s59] sm:$0x1]
    %61 = vrot.lane.b32.xlu0 %v60, 48
    %v62 = vpop.permute.xlu0 %61
    %vm63 = vcmask 458112
    %64 = vst.msk [vmem:[#allocation0] sm:$0x1] %vm63, %v62
    %s65 = scalar_lea.vmem %s0, 5
    %v66 = vld [vmem:[%s65] sm:$0x1]
    %67 = vrot.lane.b32.xlu0 %v66, 40
    %v68 = vpop.permute.xlu0 %67
    %vm69 = vcmask 392512
    %70 = vst.msk [vmem:[#allocation0] sm:$0x1] %vm69, %v68
    %s71 = scalar_lea.vmem %s0, 4
    %v72 = vld [vmem:[%s71] sm:$0x1]
    %73 = vrot.lane.b32.xlu0 %v72, 32
    %v74 = vpop.permute.xlu0 %73
    %vm75 = vcmask 326912
    %76 = vst.msk [vmem:[#allocation0] sm:$0x1] %vm75, %v74
    %s77 = scalar_lea.vmem %s0, 3
    %v78 = vld [vmem:[%s77] sm:$0x1]
    %79 = vrot.lane.b32.xlu0 %v78, 24
    %v80 = vpop.permute.xlu0 %79
    %vm81 = vcmask 261312
    %82 = vst.msk [vmem:[#allocation0] sm:$0x1] %vm81, %v80
    %s83 = scalar_lea.vmem %s0, 2
    %v84 = vld [vmem:[%s83] sm:$0x1]
    %85 = vrot.lane.b32.xlu0 %v84, 16
    %v86 = vpop.permute.xlu0 %85
    %vm87 = vcmask 195712
    %88 = vst.msk [vmem:[#allocation0] sm:$0x1] %vm87, %v86
    %s89 = scalar_lea.vmem %s0, 1
    %v90 = vld [vmem:[%s89] sm:$0x1]
    %91 = vrot.lane.b32.xlu0 %v90, 8
    %v92 = vpop.permute.xlu0 %91
    %vm93 = vcmask 130112
    %94 = vst.msk [vmem:[#allocation0] sm:$0x1] %vm93, %v92
    %s96 = ssub.s32 2, 1
    %v97 = vld [vmem:[#allocation0] sm:%s96]
    %s99 = ssub.s32 2, 1
    %100 = vst [vmem:[%s1] sm:%s99] %v97

// kernel: double_conv_pallas.5
$region0: #{double_conv_pallas.5}
  #allocation0 [shape = 'u32[]', space=smem, size = 0x4, offset = 0x4, fixed_abs, tag = 'smem constant byte address 0x4 - core index']
  #allocation1 [shape = 'u32[72,128]{1,0:T(1,128)}', space=vmem, size = 0x9000, scoped, tag = 'internal scratch']
  %s0 = inlined_call_operand.vmem [shape: f32[32,128], index: 0, kind: input, shape index: {}]
  %s1 = inlined_call_operand.vmem [shape: f32[1,128], index: 1, kind: input, shape index: {}]
  %s2 = inlined_call_operand.vmem [shape: f32[1,128], index: 2, kind: input, shape index: {}]
  %s3 = inlined_call_operand.vmem [shape: f32[32,128], index: 3, kind: output, shape index: {}]
  %s4 = sld [smem:[#allocation0]]
  $region45: #{double_conv_pallas.5} parent=0
    _
  %s6 = ssub.s32 1, %s4
  %s7 = scalar_select 0, %s6, %s4
  loop: start=0, step=1, limit=4
  $region2: #{double_conv_pallas.5} parent=0 // loop_pre_header
    _
  $region3: #{double_conv_pallas.5} parent=0 // loop_header
    %s9 = sphi 0, %s13
    %p10 = scmp.ge.s32.totalorder %s9, 4
    %s19 = sphi 0, %s21
    %s22 = sphi 0, %s19
    %s23 = sphi 0, %s22
    %s39 = sphi 0, %s23
    %s43 = sphi 0, %s43
    %s45 = sphi 0, %s43
    %s46 = sphi 0, %s45
    %s60 = sphi 0, %s46
    %s64 = sphi 0, %s64
    %s66 = sphi 0, %s64
    %s67 = sphi 0, %s66
    %s81 = sphi 0, %s67
    %s87 = sphi 0, %s89
    %s90 = sphi 0, %s87
    %s91 = sphi 0, %s90
    %s107 = sphi 0, %s91
  $region4: #{double_conv_pallas.5} parent=0 // loop_header_branch
    %12 = sbr.rel (%p10) target = $region8
  $region5: #{double_conv_pallas.5} parent=0 // loop_body
    %s14 = ssub.s32 %s9, 1
    %s15 = ssub.s32 %s9, 2
    %s16 = sadd.s32 %s9, 1
    %s17 = ssub.s32 %s9, %s16
    %p18 = scmp.eq.s32.totalorder %s17, 0
    %s20 = sadd.s32 %s19, 1
    %s21 = scalar_select %p18, %s19, %s20
    %p24 = pneg %p18
    %p25 = scmp.eq.s32.totalorder %s9, 1
    %p26 = por %p24, %p25
    %p27 = scmp.ne.s32.totalorder %s19, %s22
    %p28 = scmp.eq.s32.totalorder %s9, 0
    %p29 = por %p27, %p28
    %p30 = scmp.ne.s32.totalorder %s19, %s22
    %p31 = scmp.eq.s32.totalorder %s14, 1
    %p32 = por %p30, %p31
    %p33 = scmp.ne.s32.totalorder %s22, %s23
    %p34 = scmp.eq.s32.totalorder %s14, 0
    %p35 = por %p33, %p34
    %p36 = scmp.ne.s32.totalorder %s22, %s23
    %p37 = scmp.eq.s32.totalorder %s15, 1
    %p38 = por %p36, %p37
    %p40 = scmp.ne.s32.totalorder %s23, %s39
    %p41 = scmp.eq.s32.totalorder %s15, 0
    %p42 = por %p40, %p41
    %s44 = sadd.s32 %s43, 1
    %p47 = scmp.eq.s32.totalorder %s9, 1
    %p48 = scmp.ne.s32.totalorder %s43, %s45
    %p49 = scmp.eq.s32.totalorder %s9, 0
    %p50 = por %p48, %p49
    %p51 = scmp.ne.s32.totalorder %s43, %s45
    %p52 = scmp.eq.s32.totalorder %s14, 1
    %p53 = por %p51, %p52
    %p54 = scmp.ne.s32.totalorder %s45, %s46
    %p55 = scmp.eq.s32.totalorder %s14, 0
    %p56 = por %p54, %p55
    %p57 = scmp.ne.s32.totalorder %s45, %s46
    %p58 = scmp.eq.s32.totalorder %s15, 1
    %p59 = por %p57, %p58
    %p61 = scmp.ne.s32.totalorder %s46, %s60
    %p62 = scmp.eq.s32.totalorder %s15, 0
    %p63 = por %p61, %p62
    %s65 = sadd.s32 %s64, 1
    %p68 = scmp.eq.s32.totalorder %s9, 1
    %p69 = scmp.ne.s32.totalorder %s64, %s66
    %p70 = scmp.eq.s32.totalorder %s9, 0
    %p71 = por %p69, %p70
    %p72 = scmp.ne.s32.totalorder %s64, %s66
    %p73 = scmp.eq.s32.totalorder %s14, 1
    %p74 = por %p72, %p73
    %p75 = scmp.ne.s32.totalorder %s66, %s67
    %p76 = scmp.eq.s32.totalorder %s14, 0
    %p77 = por %p75, %p76
    %p78 = scmp.ne.s32.totalorder %s66, %s67
    %p79 = scmp.eq.s32.totalorder %s15, 1
    %p80 = por %p78, %p79
    %p82 = scmp.ne.s32.totalorder %s67, %s81
    %p83 = scmp.eq.s32.totalorder %s15, 0
    %p84 = por %p82, %p83
    %s85 = ssub.s32 %s9, %s16
    %p86 = scmp.eq.s32.totalorder %s85, 0
    %s88 = sadd.s32 %s87, 1
    %s89 = scalar_select %p86, %s87, %s88
    %p92 = pneg %p86
    %p93 = scmp.eq.s32.totalorder %s9, 1
    %p94 = por %p92, %p93
    %p95 = scmp.ne.s32.totalorder %s87, %s90
    %p96 = scmp.eq.s32.totalorder %s9, 0
    %p97 = por %p95, %p96
    %p98 = scmp.ne.s32.totalorder %s87, %s90
    %p99 = scmp.eq.s32.totalorder %s14, 1
    %p100 = por %p98, %p99
    %p101 = scmp.ne.s32.totalorder %s90, %s91
    %p102 = scmp.eq.s32.totalorder %s14, 0
    %p103 = por %p101, %p102
    %p104 = scmp.ne.s32.totalorder %s90, %s91
    %p105 = scmp.eq.s32.totalorder %s15, 1
    %p106 = por %p104, %p105
    %p108 = scmp.ne.s32.totalorder %s91, %s107
    %p109 = scmp.eq.s32.totalorder %s15, 0
    %p110 = por %p108, %p109
    %p111 = scmp.le.s32.totalorder 1, %s9
    %p112 = scmp.lt.s32.totalorder %s9, 3
    %p113 = pnand %p111, %p112
    %p114 = pneg %p113
    // Predicated region
    $region9: #{double_conv_pallas.5} parent=5 // pred_check
      _
    $region10: #{double_conv_pallas.5} parent=5 // pred_check_branch
      %116 = sbr.rel (%p113) target = $region12
    $region11: #{double_conv_pallas.5} parent=5 // pred_region
      %s117 = ssub.s32 %s9, 1
      // Predicated region
      $region13: #{double_conv_pallas.5} parent=11 // pred_check
        %p118 = pneg %p56
      $region14: #{double_conv_pallas.5} parent=11 // pred_check_branch
        %120 = sbr.rel (%p118) target = $region16
      $region15: #{double_conv_pallas.5} parent=11 // pred_region
        _
      $region16: #{double_conv_pallas.5} parent=11 // pred_fallthru
        _
      // Predicated region
      $region17: #{double_conv_pallas.5} parent=11 // pred_check
        %p121 = pneg %p77
      $region18: #{double_conv_pallas.5} parent=11 // pred_check_branch
        %123 = sbr.rel (%p121) target = $region20
      $region19: #{double_conv_pallas.5} parent=11 // pred_region
        _
      $region20: #{double_conv_pallas.5} parent=11 // pred_fallthru
        _
    $region12: #{double_conv_pallas.5} parent=5 // pred_fallthru
      _
    %p124 = scmp.lt.s32.totalorder %s9, 2
    // Predicated region
    $region21: #{double_conv_pallas.5} parent=5 // pred_check
      %p125 = pneg %p124
    $region22: #{double_conv_pallas.5} parent=5 // pred_check_branch
      %127 = sbr.rel (%p125) target = $region24
    $region23: #{double_conv_pallas.5} parent=5 // pred_region
      // Predicated region
      $region25: #{double_conv_pallas.5} parent=23 // pred_check
        %p128 = pneg %p29
      $region26: #{double_conv_pallas.5} parent=23 // pred_check_branch
        %130 = sbr.rel (%p128) target = $region28
      $region27: #{double_conv_pallas.5} parent=23 // pred_region
        %s131 = smul.u32 2, %s9
        %p132 = scmp.lt.s32.totalorder %s131, 3
        %s133 = scalar_select %p132, %s131, 3
        %s134 = smul.addr %s133, 8
        %s135 = scalar_lea.vmem %s0, %s134
        %s136 = smul.u32 2, %s9
      $region28: #{double_conv_pallas.5} parent=23 // pred_fallthru
        _
    $region24: #{double_conv_pallas.5} parent=5 // pred_fallthru
      _
    %p137 = scmp.le.s32.totalorder 1, %s9
    %p138 = scmp.lt.s32.totalorder %s9, 3
    %p139 = pnand %p137, %p138
    %p140 = pneg %p139
    // Predicated region
    $region29: #{double_conv_pallas.5} parent=5 // pred_check
      _
    $region30: #{double_conv_pallas.5} parent=5 // pred_check_branch
      %142 = sbr.rel (%p139) target = $region32
    $region31: #{double_conv_pallas.5} parent=5 // pred_region
      %s143 = ssub.s32 %s9, 1
      %s144 = smul.u32 2, %s14
      %p145 = scmp.lt.s32.totalorder %s144, 3
      %s146 = scalar_select %p145, %s144, 3
      %s147 = smul.addr %s146, 8
      %s148 = scalar_lea.vmem %s0, %s147
      %p149 = pneg %p35
      %p150 = pneg %p32
      %p151 = pneg %p56
      %p152 = pneg %p53
      %p153 = pneg %p77
      %p154 = pneg %p74
      %p155 = pneg %p103
      %p156 = pneg %p100
      %s157 = smul.u32 2, %s14
      %p158 = scmp.lt.s32.totalorder %s157, 3
      %s159 = scalar_select %p158, %s157, 3
      %s160 = smul.addr %s159, 8
      %s161 = scalar_lea.vmem %s3, %s160
      %s162 = smul.u32 2, %s14
      %p163 = scmp.lt.s32.totalorder %s162, 3
      %s164 = scalar_select %p163, %s162, 3
      %s165 = smul.addr %s164, 8
      %s166 = scalar_lea.vmem %s0, %s165
      %s167 = smul.u32 2, %s14
      %s168 = smul.u32 2, %s14
      %p169 = scmp.lt.s32.totalorder %s168, 3
      %s170 = scalar_select %p169, %s168, 3
      %s171 = smul.addr %s170, 8
      %s172 = scalar_lea.vmem %s3, %s171
      %s173 = smul.u32 2, %s14
      %v174 = vld [vmem:[%s166] sm:$0xff]
      %v175 = vld [vmem:[%s166 + $0x8] sm:$0xff]
      %v176 = vld [vmem:[%s1] sm:$0x1]
      %v178 = vperm.slane %v176, 0
      %v180 = vmul.f32 %v174, %v178
      %v181 = vmul.f32 %v175, %v178
      %v182 = vld [vmem:[%s2] sm:$0x1]
      %v184 = vperm.slane %v182, 0
      %v186 = vadd.f32 %v180, %v184
      %v187 = vadd.f32 %v181, %v184
      %v188 = vmax.f32 %v186, 0.0
      %v189 = vmax.f32 %v187, 0.0
      %190 = vst [vmem:[%s172] sm:$0xff] %v188
      %191 = vst [vmem:[%s172 + $0x8] sm:$0xff] %v189
      %s192 = smul.u32 2, %s14
      %p193 = scmp.lt.s32.totalorder %s192, 3
      %s194 = scalar_select %p193, %s192, 3
      %s195 = smul.addr %s194, 8
      %s196 = scalar_lea.vmem %s3, %s195
      // Predicated region
      $region33: #{double_conv_pallas.5} parent=31 // pred_check
        %p197 = pneg %p100
      $region34: #{double_conv_pallas.5} parent=31 // pred_check_branch
        %199 = sbr.rel (%p197) target = $region36
      $region35: #{double_conv_pallas.5} parent=31 // pred_region
        %s200 = smul.u32 2, %s14
      $region36: #{double_conv_pallas.5} parent=31 // pred_fallthru
        _
    $region32: #{double_conv_pallas.5} parent=5 // pred_fallthru
      _
    %p201 = scmp.le.s32.totalorder 2, %s9
    // Predicated region
    $region37: #{double_conv_pallas.5} parent=5 // pred_check
      %p202 = pneg %p201
    $region38: #{double_conv_pallas.5} parent=5 // pred_check_branch
      %204 = sbr.rel (%p202) target = $region40
    $region39: #{double_conv_pallas.5} parent=5 // pred_region
      %s205 = ssub.s32 %s9, 2
      // Predicated region
      $region41: #{double_conv_pallas.5} parent=39 // pred_check
        %p206 = pneg %p106
      $region42: #{double_conv_pallas.5} parent=39 // pred_check_branch
        %208 = sbr.rel (%p206) target = $region44
      $region43: #{double_conv_pallas.5} parent=39 // pred_region
        %s209 = smul.u32 2, %s15
        %p210 = scmp.lt.s32.totalorder %s209, 3
        %s211 = scalar_select %p210, %s209, 3
        %s212 = smul.addr %s211, 8
        %s213 = scalar_lea.vmem %s3, %s212
      $region44: #{double_conv_pallas.5} parent=39 // pred_fallthru
        _
    $region40: #{double_conv_pallas.5} parent=5 // pred_fallthru
      _
  $region6: #{double_conv_pallas.5} parent=0 // loop_footer
    %s13 = sadd.s32 1, %s9
  $region7: #{double_conv_pallas.5} parent=0 // loop_footer_branch
    %8 = sbr.rel target = $region3
  $region8: #{double_conv_pallas.5} parent=0 // loop_exit
    _

// kernel: double_conv_pallas.3
$region0: #{double_conv_pallas.3}
  #allocation0 [shape = 'u32[]', space=smem, size = 0x4, offset = 0x4, fixed_abs, tag = 'smem constant byte address 0x4 - core index']
  #allocation1 [shape = 'u32[72,128]{1,0:T(1,128)}', space=vmem, size = 0x9000, scoped, tag = 'internal scratch']
  #allocation2 [shape = 'f32[18,18,4]{2,1,0:T(8,128)}', space=vmem, size = 0x36000, scoped, tag = 'scratch operand']
  #allocation3 [shape = 'f32[256,36]{1,0:T(8,128)}', space=vmem, size = 0x20000, scoped, tag = 'scratch operand']
  %s0 = inlined_call_operand.vmem [shape: f32[2,16,16,4], index: 0, kind: input, shape index: {}]
  %s1 = inlined_call_operand.vmem [shape: f32[36,8], index: 1, kind: input, shape index: {}]
  %s2 = inlined_call_operand.vmem [shape: f32[1,8], index: 2, kind: input, shape index: {}]
  %s3 = inlined_call_operand.vmem [shape: f32[2,256,8], index: 3, kind: output, shape index: {0}]
  %s4 = inlined_call_operand.vmem [shape: f32[2,1,8], index: 4, kind: output, shape index: {1}]
  %s5 = inlined_call_operand.vmem [shape: f32[2,1,8], index: 5, kind: output, shape index: {2}]
  %6 = xla_tuple %s3, %s4, %s5
  %s7 = sld [smem:[#allocation0]]
  $region61: #{double_conv_pallas.3} parent=0
    _
  %s9 = ssub.s32 1, %s7
  %s10 = scalar_select 0, %s9, %s7
  loop: start=0, step=1, limit=4
  $region2: #{double_conv_pallas.3} parent=0 // loop_pre_header
    _
  $region3: #{double_conv_pallas.3} parent=0 // loop_header
    %s12 = sphi 0, %s16
    %p13 = scmp.ge.s32.totalorder %s12, 4
    %s22 = sphi 0, %s24
    %s25 = sphi 0, %s22
    %s26 = sphi 0, %s25
    %s42 = sphi 0, %s26
    %s46 = sphi 0, %s46
    %s48 = sphi 0, %s46
    %s49 = sphi 0, %s48
    %s63 = sphi 0, %s49
    %s67 = sphi 0, %s67
    %s69 = sphi 0, %s67
    %s70 = sphi 0, %s69
    %s84 = sphi 0, %s70
    %s90 = sphi 0, %s92
    %s93 = sphi 0, %s90
    %s94 = sphi 0, %s93
    %s110 = sphi 0, %s94
    %s116 = sphi 0, %s118
    %s119 = sphi 0, %s116
    %s120 = sphi 0, %s119
    %s136 = sphi 0, %s120
    %s142 = sphi 0, %s144
    %s145 = sphi 0, %s142
    %s146 = sphi 0, %s145
    %s162 = sphi 0, %s146
  $region4: #{double_conv_pallas.3} parent=0 // loop_header_branch
    %15 = sbr.rel (%p13) target = $region8
  $region5: #{double_conv_pallas.3} parent=0 // loop_body
    %s17 = ssub.s32 %s12, 1
    %s18 = ssub.s32 %s12, 2
    %s19 = sadd.s32 %s12, 1
    %s20 = ssub.s32 %s12, %s19
    %p21 = scmp.eq.s32.totalorder %s20, 0
    %s23 = sadd.s32 %s22, 1
    %s24 = scalar_select %p21, %s22, %s23
    %p27 = pneg %p21
    %p28 = scmp.eq.s32.totalorder %s12, 1
    %p29 = por %p27, %p28
    %p30 = scmp.ne.s32.totalorder %s22, %s25
    %p31 = scmp.eq.s32.totalorder %s12, 0
    %p32 = por %p30, %p31
    %p33 = scmp.ne.s32.totalorder %s22, %s25
    %p34 = scmp.eq.s32.totalorder %s17, 1
    %p35 = por %p33, %p34
    %p36 = scmp.ne.s32.totalorder %s25, %s26
    %p37 = scmp.eq.s32.totalorder %s17, 0
    %p38 = por %p36, %p37
    %p39 = scmp.ne.s32.totalorder %s25, %s26
    %p40 = scmp.eq.s32.totalorder %s18, 1
    %p41 = por %p39, %p40
    %p43 = scmp.ne.s32.totalorder %s26, %s42
    %p44 = scmp.eq.s32.totalorder %s18, 0
    %p45 = por %p43, %p44
    %s47 = sadd.s32 %s46, 1
    %p50 = scmp.eq.s32.totalorder %s12, 1
    %p51 = scmp.ne.s32.totalorder %s46, %s48
    %p52 = scmp.eq.s32.totalorder %s12, 0
    %p53 = por %p51, %p52
    %p54 = scmp.ne.s32.totalorder %s46, %s48
    %p55 = scmp.eq.s32.totalorder %s17, 1
    %p56 = por %p54, %p55
    %p57 = scmp.ne.s32.totalorder %s48, %s49
    %p58 = scmp.eq.s32.totalorder %s17, 0
    %p59 = por %p57, %p58
    %p60 = scmp.ne.s32.totalorder %s48, %s49
    %p61 = scmp.eq.s32.totalorder %s18, 1
    %p62 = por %p60, %p61
    %p64 = scmp.ne.s32.totalorder %s49, %s63
    %p65 = scmp.eq.s32.totalorder %s18, 0
    %p66 = por %p64, %p65
    %s68 = sadd.s32 %s67, 1
    %p71 = scmp.eq.s32.totalorder %s12, 1
    %p72 = scmp.ne.s32.totalorder %s67, %s69
    %p73 = scmp.eq.s32.totalorder %s12, 0
    %p74 = por %p72, %p73
    %p75 = scmp.ne.s32.totalorder %s67, %s69
    %p76 = scmp.eq.s32.totalorder %s17, 1
    %p77 = por %p75, %p76
    %p78 = scmp.ne.s32.totalorder %s69, %s70
    %p79 = scmp.eq.s32.totalorder %s17, 0
    %p80 = por %p78, %p79
    %p81 = scmp.ne.s32.totalorder %s69, %s70
    %p82 = scmp.eq.s32.totalorder %s18, 1
    %p83 = por %p81, %p82
    %p85 = scmp.ne.s32.totalorder %s70, %s84
    %p86 = scmp.eq.s32.totalorder %s18, 0
    %p87 = por %p85, %p86
    %s88 = ssub.s32 %s12, %s19
    %p89 = scmp.eq.s32.totalorder %s88, 0
    %s91 = sadd.s32 %s90, 1
    %s92 = scalar_select %p89, %s90, %s91
    %p95 = pneg %p89
    %p96 = scmp.eq.s32.totalorder %s12, 1
    %p97 = por %p95, %p96
    %p98 = scmp.ne.s32.totalorder %s90, %s93
    %p99 = scmp.eq.s32.totalorder %s12, 0
    %p100 = por %p98, %p99
    %p101 = scmp.ne.s32.totalorder %s90, %s93
    %p102 = scmp.eq.s32.totalorder %s17, 1
    %p103 = por %p101, %p102
    %p104 = scmp.ne.s32.totalorder %s93, %s94
    %p105 = scmp.eq.s32.totalorder %s17, 0
    %p106 = por %p104, %p105
    %p107 = scmp.ne.s32.totalorder %s93, %s94
    %p108 = scmp.eq.s32.totalorder %s18, 1
    %p109 = por %p107, %p108
    %p111 = scmp.ne.s32.totalorder %s94, %s110
    %p112 = scmp.eq.s32.totalorder %s18, 0
    %p113 = por %p111, %p112
    %s114 = ssub.s32 %s12, %s19
    %p115 = scmp.eq.s32.totalorder %s114, 0
    %s117 = sadd.s32 %s116, 1
    %s118 = scalar_select %p115, %s116, %s117
    %p121 = pneg %p115
    %p122 = scmp.eq.s32.totalorder %s12, 1
    %p123 = por %p121, %p122
    %p124 = scmp.ne.s32.totalorder %s116, %s119
    %p125 = scmp.eq.s32.totalorder %s12, 0
    %p126 = por %p124, %p125
    %p127 = scmp.ne.s32.totalorder %s116, %s119
    %p128 = scmp.eq.s32.totalorder %s17, 1
    %p129 = por %p127, %p128
    %p130 = scmp.ne.s32.totalorder %s119, %s120
    %p131 = scmp.eq.s32.totalorder %s17, 0
    %p132 = por %p130, %p131
    %p133 = scmp.ne.s32.totalorder %s119, %s120
    %p134 = scmp.eq.s32.totalorder %s18, 1
    %p135 = por %p133, %p134
    %p137 = scmp.ne.s32.totalorder %s120, %s136
    %p138 = scmp.eq.s32.totalorder %s18, 0
    %p139 = por %p137, %p138
    %s140 = ssub.s32 %s12, %s19
    %p141 = scmp.eq.s32.totalorder %s140, 0
    %s143 = sadd.s32 %s142, 1
    %s144 = scalar_select %p141, %s142, %s143
    %p147 = pneg %p141
    %p148 = scmp.eq.s32.totalorder %s12, 1
    %p149 = por %p147, %p148
    %p150 = scmp.ne.s32.totalorder %s142, %s145
    %p151 = scmp.eq.s32.totalorder %s12, 0
    %p152 = por %p150, %p151
    %p153 = scmp.ne.s32.totalorder %s142, %s145
    %p154 = scmp.eq.s32.totalorder %s17, 1
    %p155 = por %p153, %p154
    %p156 = scmp.ne.s32.totalorder %s145, %s146
    %p157 = scmp.eq.s32.totalorder %s17, 0
    %p158 = por %p156, %p157
    %p159 = scmp.ne.s32.totalorder %s145, %s146
    %p160 = scmp.eq.s32.totalorder %s18, 1
    %p161 = por %p159, %p160
    %p163 = scmp.ne.s32.totalorder %s146, %s162
    %p164 = scmp.eq.s32.totalorder %s18, 0
    %p165 = por %p163, %p164
    %p166 = scmp.le.s32.totalorder 1, %s12
    %p167 = scmp.lt.s32.totalorder %s12, 3
    %p168 = pnand %p166, %p167
    %p169 = pneg %p168
    // Predicated region
    $region9: #{double_conv_pallas.3} parent=5 // pred_check
      _
    $region10: #{double_conv_pallas.3} parent=5 // pred_check_branch
      %171 = sbr.rel (%p168) target = $region12
    $region11: #{double_conv_pallas.3} parent=5 // pred_region
      %s172 = ssub.s32 %s12, 1
      // Predicated region
      $region13: #{double_conv_pallas.3} parent=11 // pred_check
        %p173 = pneg %p59
      $region14: #{double_conv_pallas.3} parent=11 // pred_check_branch
        %175 = sbr.rel (%p173) target = $region16
      $region15: #{double_conv_pallas.3} parent=11 // pred_region
        _
      $region16: #{double_conv_pallas.3} parent=11 // pred_fallthru
        _
      // Predicated region
      $region17: #{double_conv_pallas.3} parent=11 // pred_check
        %p176 = pneg %p80
      $region18: #{double_conv_pallas.3} parent=11 // pred_check_branch
        %178 = sbr.rel (%p176) target = $region20
      $region19: #{double_conv_pallas.3} parent=11 // pred_region
        _
      $region20: #{double_conv_pallas.3} parent=11 // pred_fallthru
        _
    $region12: #{double_conv_pallas.3} parent=5 // pred_fallthru
      _
    %p179 = scmp.lt.s32.totalorder %s12, 2
    // Predicated region
    $region21: #{double_conv_pallas.3} parent=5 // pred_check
      %p180 = pneg %p179
    $region22: #{double_conv_pallas.3} parent=5 // pred_check_branch
      %182 = sbr.rel (%p180) target = $region24
    $region23: #{double_conv_pallas.3} parent=5 // pred_region
      // Predicated region
      $region25: #{double_conv_pallas.3} parent=23 // pred_check
        %p183 = pneg %p32
      $region26: #{double_conv_pallas.3} parent=23 // pred_check_branch
        %185 = sbr.rel (%p183) target = $region28
      $region27: #{double_conv_pallas.3} parent=23 // pred_region
        %p186 = scmp.lt.s32.totalorder %s12, 1
        %s187 = scalar_select %p186, %s12, 1
        %s188 = smul.addr %s187, 32
        %s189 = smul.addr %s188, 8
        %s190 = scalar_lea.vmem %s0, %s189
      $region28: #{double_conv_pallas.3} parent=23 // pred_fallthru
        _
    $region24: #{double_conv_pallas.3} parent=5 // pred_fallthru
      _
    %p191 = scmp.le.s32.totalorder 1, %s12
    %p192 = scmp.lt.s32.totalorder %s12, 3
    %p193 = pnand %p191, %p192
    %p194 = pneg %p193
    // Predicated region
    $region29: #{double_conv_pallas.3} parent=5 // pred_check
      _
    $region30: #{double_conv_pallas.3} parent=5 // pred_check_branch
      %196 = sbr.rel (%p193) target = $region32
    $region31: #{double_conv_pallas.3} parent=5 // pred_region
      %s197 = ssub.s32 %s12, 1
      %p198 = scmp.lt.s32.totalorder %s17, 1
      %s199 = scalar_select %p198, %s17, 1
      %s200 = smul.addr %s199, 32
      %s201 = smul.addr %s200, 8
      %s202 = scalar_lea.vmem %s0, %s201
      %p203 = pneg %p38
      %p204 = pneg %p35
      %p205 = pneg %p59
      %p206 = pneg %p56
      %p207 = pneg %p80
      %p208 = pneg %p77
      %p209 = pneg %p106
      %p210 = pneg %p103
      %p211 = scmp.lt.s32.totalorder %s17, 1
      %s212 = scalar_select %p211, %s17, 1
      %s213 = smul.addr %s212, 32
      %s214 = smul.addr %s213, 8
      %s215 = scalar_lea.vmem %s3, %s214
      %p216 = pneg %p132
      %p217 = pneg %p129
      %p218 = scmp.lt.s32.totalorder %s17, 1
      %s219 = scalar_select %p218, %s17, 1
      %s220 = scalar_lea.vmem %s4, %s219
      %p221 = pneg %p158
      %p222 = pneg %p155
      %p223 = scmp.lt.s32.totalorder %s17, 1
      %s224 = scalar_select %p223, %s17, 1
      %s225 = scalar_lea.vmem %s5, %s224
      %p226 = scmp.lt.s32.totalorder %s17, 1
      %s227 = scalar_select %p226, %s17, 1
      %s228 = smul.addr %s227, 32
      %s229 = smul.addr %s228, 8
      %s230 = scalar_lea.vmem %s0, %s229
      %p231 = scmp.lt.s32.totalorder %s17, 1
      %s232 = scalar_select %p231, %s17, 1
      %s233 = smul.addr %s232, 32
      %s234 = smul.addr %s233, 8
      %s235 = scalar_lea.vmem %s3, %s234
      %p236 = scmp.lt.s32.totalorder %s17, 1
      %s237 = scalar_select %p236, %s17, 1
      %s238 = scalar_lea.vmem %s4, %s237
      %p239 = scmp.lt.s32.totalorder %s17, 1
      %s240 = scalar_select %p239, %s17, 1
      %s241 = scalar_lea.vmem %s5, %s240
      %v242 = vld [vmem:[%s230] sm:$0xff]
      %v243 = vld [vmem:[%s230 + $0x8] sm:$0xff]
      %v244 = vld [vmem:[%s230 + $0x10] sm:$0xff]
      %v245 = vld [vmem:[%s230 + $0x18] sm:$0xff]
      %v246 = vld [vmem:[%s230 + $0x20] sm:$0xff]
      %v247 = vld [vmem:[%s230 + $0x28] sm:$0xff]
      %v248 = vld [vmem:[%s230 + $0x30] sm:$0xff]
      %v249 = vld [vmem:[%s230 + $0x38] sm:$0xff]
      %v250 = vld [vmem:[%s230 + $0x40] sm:$0xff]
      %v251 = vld [vmem:[%s230 + $0x48] sm:$0xff]
      %v252 = vld [vmem:[%s230 + $0x50] sm:$0xff]
      %v253 = vld [vmem:[%s230 + $0x58] sm:$0xff]
      %v254 = vld [vmem:[%s230 + $0x60] sm:$0xff]
      %v255 = vld [vmem:[%s230 + $0x68] sm:$0xff]
      %v256 = vld [vmem:[%s230 + $0x70] sm:$0xff]
      %v257 = vld [vmem:[%s230 + $0x78] sm:$0xff]
      %v258 = vld [vmem:[%s230 + $0x80] sm:$0xff]
      %v259 = vld [vmem:[%s230 + $0x88] sm:$0xff]
      %v260 = vld [vmem:[%s230 + $0x90] sm:$0xff]
      %v261 = vld [vmem:[%s230 + $0x98] sm:$0xff]
      %v262 = vld [vmem:[%s230 + $0xa0] sm:$0xff]
      %v263 = vld [vmem:[%s230 + $0xa8] sm:$0xff]
      %v264 = vld [vmem:[%s230 + $0xb0] sm:$0xff]
      %v265 = vld [vmem:[%s230 + $0xb8] sm:$0xff]
      %v266 = vld [vmem:[%s230 + $0xc0] sm:$0xff]
      %v267 = vld [vmem:[%s230 + $0xc8] sm:$0xff]
      %v268 = vld [vmem:[%s230 + $0xd0] sm:$0xff]
      %v269 = vld [vmem:[%s230 + $0xd8] sm:$0xff]
      %v270 = vld [vmem:[%s230 + $0xe0] sm:$0xff]
      %v271 = vld [vmem:[%s230 + $0xe8] sm:$0xff]
      %v272 = vld [vmem:[%s230 + $0xf0] sm:$0xff]
      %v273 = vld [vmem:[%s230 + $0xf8] sm:$0xff]
      %vm274 = vcmask 31744
      %275 = vst.msk [vmem:[#allocation2] sm:$0xff] %vm274, 0.0
      %276 = vst.msk [vmem:[#allocation2 + $0x8] sm:$0xff] %vm274, 0.0
      %vm277 = vcmask 25600
      %278 = vst.msk [vmem:[#allocation2 + $0x10] sm:$0x3] %vm277, 0.0
      %279 = vst.msk [vmem:[#allocation2 + $0x18] sm:$0xff] %vm274, 0.0
      %280 = vst.msk [vmem:[#allocation2 + $0x20] sm:$0xff] %vm274, 0.0
      %281 = vst.msk [vmem:[#allocation2 + $0x28] sm:$0x3] %vm277, 0.0
      %282 = vst.msk [vmem:[#allocation2 + $0x30] sm:$0xff] %vm274, 0.0
      %283 = vst.msk [vmem:[#allocation2 + $0x38] sm:$0xff] %vm274, 0.0
      %284 = vst.msk [vmem:[#allocation2 + $0x40] sm:$0x3] %vm277, 0.0
      %285 = vst.msk [vmem:[#allocation2 + $0x48] sm:$0xff] %vm274, 0.0
      %286 = vst.msk [vmem:[#allocation2 + $0x50] sm:$0xff] %vm274, 0.0
      %287 = vst.msk [vmem:[#allocation2 + $0x58] sm:$0x3] %vm277, 0.0
      %288 = vst.msk [vmem:[#allocation2 + $0x60] sm:$0xff] %vm274, 0.0
      %289 = vst.msk [vmem:[#allocation2 + $0x68] sm:$0xff] %vm274, 0.0
      %290 = vst.msk [vmem:[#allocation2 + $0x70] sm:$0x3] %vm277, 0.0
      %291 = vst.msk [vmem:[#allocation2 + $0x78] sm:$0xff] %vm274, 0.0
      %292 = vst.msk [vmem:[#allocation2 + $0x80] sm:$0xff] %vm274, 0.0
      %293 = vst.msk [vmem:[#allocation2 + $0x88] sm:$0x3] %vm277, 0.0
      %294 = vst.msk [vmem:[#allocation2 + $0x90] sm:$0xff] %vm274, 0.0
      %295 = vst.msk [vmem:[#allocation2 + $0x98] sm:$0xff] %vm274, 0.0
      %296 = vst.msk [vmem:[#allocation2 + $0xa0] sm:$0x3] %vm277, 0.0
      %297 = vst.msk [vmem:[#allocation2 + $0xa8] sm:$0xff] %vm274, 0.0
      %298 = vst.msk [vmem:[#allocation2 + $0xb0] sm:$0xff] %vm274, 0.0
      %299 = vst.msk [vmem:[#allocation2 + $0xb8] sm:$0x3] %vm277, 0.0
      %300 = vst.msk [vmem:[#allocation2 + $0xc0] sm:$0xff] %vm274, 0.0
      %301 = vst.msk [vmem:[#allocation2 + $0xc8] sm:$0xff] %vm274, 0.0
      %302 = vst.msk [vmem:[#allocation2 + $0xd0] sm:$0x3] %vm277, 0.0
      %303 = vst.msk [vmem:[#allocation2 + $0xd8] sm:$0xff] %vm274, 0.0
      %304 = vst.msk [vmem:[#allocation2 + $0xe0] sm:$0xff] %vm274, 0.0
      %305 = vst.msk [vmem:[#allocation2 + $0xe8] sm:$0x3] %vm277, 0.0
      %306 = vst.msk [vmem:[#allocation2 + $0xf0] sm:$0xff] %vm274, 0.0
      %307 = vst.msk [vmem:[#allocation2 + $0xf8] sm:$0xff] %vm274, 0.0
      %308 = vst.msk [vmem:[#allocation2 + $0x100] sm:$0x3] %vm277, 0.0
      %309 = vst.msk [vmem:[#allocation2 + $0x108] sm:$0xff] %vm274, 0.0
      %310 = vst.msk [vmem:[#allocation2 + $0x110] sm:$0xff] %vm274, 0.0
      %311 = vst.msk [vmem:[#allocation2 + $0x118] sm:$0x3] %vm277, 0.0
      %312 = vst.msk [vmem:[#allocation2 + $0x120] sm:$0xff] %vm274, 0.0
      %313 = vst.msk [vmem:[#allocation2 + $0x128] sm:$0xff] %vm274, 0.0
      %314 = vst.msk [vmem:[#allocation2 + $0x130] sm:$0x3] %vm277, 0.0
      %315 = vst.msk [vmem:[#allocation2 + $0x138] sm:$0xff] %vm274, 0.0
      %316 = vst.msk [vmem:[#allocation2 + $0x140] sm:$0xff] %vm274, 0.0
      %317 = vst.msk [vmem:[#allocation2 + $0x148] sm:$0x3] %vm277, 0.0
      %318 = vst.msk [vmem:[#allocation2 + $0x150] sm:$0xff] %vm274, 0.0
      %319 = vst.msk [vmem:[#allocation2 + $0x158] sm:$0xff] %vm274, 0.0
      %320 = vst.msk [vmem:[#allocation2 + $0x160] sm:$0x3] %vm277, 0.0
      %321 = vst.msk [vmem:[#allocation2 + $0x168] sm:$0xff] %vm274, 0.0
      %322 = vst.msk [vmem:[#allocation2 + $0x170] sm:$0xff] %vm274, 0.0
      %323 = vst.msk [vmem:[#allocation2 + $0x178] sm:$0x3] %vm277, 0.0
      %324 = vst.msk [vmem:[#allocation2 + $0x180] sm:$0xff] %vm274, 0.0
      %325 = vst.msk [vmem:[#allocation2 + $0x188] sm:$0xff] %vm274, 0.0
      %326 = vst.msk [vmem:[#allocation2 + $0x190] sm:$0x3] %vm277, 0.0
      %327 = vst.msk [vmem:[#allocation2 + $0x198] sm:$0xff] %vm274, 0.0
      %328 = vst.msk [vmem:[#allocation2 + $0x1a0] sm:$0xff] %vm274, 0.0
      %329 = vst.msk [vmem:[#allocation2 + $0x1a8] sm:$0x3] %vm277, 0.0
      %s330 = scalar_lea.vmem [#allocation2], 24
      %331 = vst.msk [vmem:[%s330 + $0x1] sm:$0xff] %vm274, %v242
      %332 = vst.msk [vmem:[%s330 + $0x9] sm:$0xff] %vm274, %v243
      %333 = vst.msk [vmem:[%s330 + $0x19] sm:$0xff] %vm274, %v244
      %334 = vst.msk [vmem:[%s330 + $0x21] sm:$0xff] %vm274, %v245
      %335 = vst.msk [vmem:[%s330 + $0x31] sm:$0xff] %vm274, %v246
      %336 = vst.msk [vmem:[%s330 + $0x39] sm:$0xff] %vm274, %v247
      %337 = vst.msk [vmem:[%s330 + $0x49] sm:$0xff] %vm274, %v248
      %338 = vst.msk [vmem:[%s330 + $0x51] sm:$0xff] %vm274, %v249
      %339 = vst.msk [vmem:[%s330 + $0x61] sm:$0xff] %vm274, %v250
      %340 = vst.msk [vmem:[%s330 + $0x69] sm:$0xff] %vm274, %v251
      %341 = vst.msk [vmem:[%s330 + $0x79] sm:$0xff] %vm274, %v252
      %342 = vst.msk [vmem:[%s330 + $0x81] sm:$0xff] %vm274, %v253
      %343 = vst.msk [vmem:[%s330 + $0x91] sm:$0xff] %vm274, %v254
      %344 = vst.msk [vmem:[%s330 + $0x99] sm:$0xff] %vm274, %v255
      %345 = vst.msk [vmem:[%s330 + $0xa9] sm:$0xff] %vm274, %v256
      %346 = vst.msk [vmem:[%s330 + $0xb1] sm:$0xff] %vm274, %v257
      %347 = vst.msk [vmem:[%s330 + $0xc1] sm:$0xff] %vm274, %v258
      %348 = vst.msk [vmem:[%s330 + $0xc9] sm:$0xff] %vm274, %v259
      %349 = vst.msk [vmem:[%s330 + $0xd9] sm:$0xff] %vm274, %v260
      %350 = vst.msk [vmem:[%s330 + $0xe1] sm:$0xff] %vm274, %v261
      %351 = vst.msk [vmem:[%s330 + $0xf1] sm:$0xff] %vm274, %v262
      %352 = vst.msk [vmem:[%s330 + $0xf9] sm:$0xff] %vm274, %v263
      %353 = vst.msk [vmem:[%s330 + $0x109] sm:$0xff] %vm274, %v264
      %354 = vst.msk [vmem:[%s330 + $0x111] sm:$0xff] %vm274, %v265
      %355 = vst.msk [vmem:[%s330 + $0x121] sm:$0xff] %vm274, %v266
      %356 = vst.msk [vmem:[%s330 + $0x129] sm:$0xff] %vm274, %v267
      %357 = vst.msk [vmem:[%s330 + $0x139] sm:$0xff] %vm274, %v268
      %358 = vst.msk [vmem:[%s330 + $0x141] sm:$0xff] %vm274, %v269
      %359 = vst.msk [vmem:[%s330 + $0x151] sm:$0xff] %vm274, %v270
      %360 = vst.msk [vmem:[%s330 + $0x159] sm:$0xff] %vm274, %v271
      %361 = vst.msk [vmem:[%s330 + $0x169] sm:$0xff] %vm274, %v272
      %362 = vst.msk [vmem:[%s330 + $0x171] sm:$0xff] %vm274, %v273
      %v363 = vld [vmem:[#allocation2] sm:$0xff]
      %v364 = vld [vmem:[#allocation2 + $0x8] sm:$0xff]
      %v365 = vld [vmem:[#allocation2 + $0x10] sm:$0x3]
      %v366 = vld [vmem:[#allocation2 + $0x18] sm:$0xff]
      %v367 = vld [vmem:[#allocation2 + $0x20] sm:$0xff]
      %v368 = vld [vmem:[#allocation2 + $0x28] sm:$0x3]
      %v369 = vld [vmem:[#allocation2 + $0x30] sm:$0xff]
      %v370 = vld [vmem:[#allocation2 + $0x38] sm:$0xff]
      %v371 = vld [vmem:[#allocation2 + $0x40] sm:$0x3]
      %v372 = vld [vmem:[#allocation2 + $0x48] sm:$0xff]
      %v373 = vld [vmem:[#allocation2 + $0x50] sm:$0xff]
      %v374 = vld [vmem:[#allocation2 + $0x58] sm:$0x3]
      %v375 = vld [vmem:[#allocation2 + $0x60] sm:$0xff]
      %v376 = vld [vmem:[#allocation2 + $0x68] sm:$0xff]
      %v377 = vld [vmem:[#allocation2 + $0x70] sm:$0x3]
      %v378 = vld [vmem:[#allocation2 + $0x78] sm:$0xff]
      %v379 = vld [vmem:[#allocation2 + $0x80] sm:$0xff]
      %v380 = vld [vmem:[#allocation2 + $0x88] sm:$0x3]
      %v381 = vld [vmem:[#allocation2 + $0x90] sm:$0xff]
      %v382 = vld [vmem:[#allocation2 + $0x98] sm:$0xff]
      %v383 = vld [vmem:[#allocation2 + $0xa0] sm:$0x3]
      %v384 = vld [vmem:[#allocation2 + $0xa8] sm:$0xff]
      %v385 = vld [vmem:[#allocation2 + $0xb0] sm:$0xff]
      %v386 = vld [vmem:[#allocation2 + $0xb8] sm:$0x3]
      %v387 = vld [vmem:[#allocation2 + $0xc0] sm:$0xff]
      %v388 = vld [vmem:[#allocation2 + $0xc8] sm:$0xff]
      %v389 = vld [vmem:[#allocation2 + $0xd0] sm:$0x3]
      %v390 = vld [vmem:[#allocation2 + $0xd8] sm:$0xff]
      %v391 = vld [vmem:[#allocation2 + $0xe0] sm:$0xff]
      %v392 = vld [vmem:[#allocation2 + $0xe8] sm:$0x3]
      %v393 = vld [vmem:[#allocation2 + $0xf0] sm:$0xff]
      %v394 = vld [vmem:[#allocation2 + $0xf8] sm:$0xff]
      %v395 = vld [vmem:[#allocation2 + $0x100] sm:$0x3]
      %v396 = vld [vmem:[#allocation2 + $0x108] sm:$0xff]
      %v397 = vld [vmem:[#allocation2 + $0x110] sm:$0xff]
      %v398 = vld [vmem:[#allocation2 + $0x118] sm:$0x3]
      %v399 = vld [vmem:[#allocation2 + $0x120] sm:$0xff]
      %v400 = vld [vmem:[#allocation2 + $0x128] sm:$0xff]
      %v401 = vld [vmem:[#allocation2 + $0x130] sm:$0x3]
      %v402 = vld [vmem:[#allocation2 + $0x138] sm:$0xff]
      %v403 = vld [vmem:[#allocation2 + $0x140] sm:$0xff]
      %v404 = vld [vmem:[#allocation2 + $0x148] sm:$0x3]
      %v405 = vld [vmem:[#allocation2 + $0x150] sm:$0xff]
      %v406 = vld [vmem:[#allocation2 + $0x158] sm:$0xff]
      %v407 = vld [vmem:[#allocation2 + $0x160] sm:$0x3]
      %v408 = vld [vmem:[#allocation2 + $0x168] sm:$0xff]
      %v409 = vld [vmem:[#allocation2 + $0x170] sm:$0xff]
      %v410 = vld [vmem:[#allocation2 + $0x178] sm:$0x3]
      %v411 = vld [vmem:[#allocation2 + $0x180] sm:$0xff]
      %v412 = vld [vmem:[#allocation2 + $0x188] sm:$0xff]
      %v413 = vld [vmem:[#allocation2 + $0x190] sm:$0x3]
      %v414 = vld [vmem:[#allocation2 + $0x198] sm:$0xff]
      %v415 = vld [vmem:[#allocation2 + $0x1a0] sm:$0xff]
      %v416 = vld [vmem:[#allocation2 + $0x1a8] sm:$0x3]
      %417 = vst.msk [vmem:[#allocation3] sm:$0xff] %vm274, %v363
      %418 = vst.msk [vmem:[#allocation3 + $0x8] sm:$0xff] %vm274, %v364
      %419 = vst.msk [vmem:[#allocation3 + $0x10] sm:$0xff] %vm274, %v366
      %420 = vst.msk [vmem:[#allocation3 + $0x18] sm:$0xff] %vm274, %v367
      %421 = vst.msk [vmem:[#allocation3 + $0x20] sm:$0xff] %vm274, %v369
      %422 = vst.msk [vmem:[#allocation3 + $0x28] sm:$0xff] %vm274, %v370
      %423 = vst.msk [vmem:[#allocation3 + $0x30] sm:$0xff] %vm274, %v372
      %424 = vst.msk [vmem:[#allocation3 + $0x38] sm:$0xff] %vm274, %v373
      %425 = vst.msk [vmem:[#allocation3 + $0x40] sm:$0xff] %vm274, %v375
      %426 = vst.msk [vmem:[#allocation3 + $0x48] sm:$0xff] %vm274, %v376
      %427 = vst.msk [vmem:[#allocation3 + $0x50] sm:$0xff] %vm274, %v378
      %428 = vst.msk [vmem:[#allocation3 + $0x58] sm:$0xff] %vm274, %v379
      %429 = vst.msk [vmem:[#allocation3 + $0x60] sm:$0xff] %vm274, %v381
      %430 = vst.msk [vmem:[#allocation3 + $0x68] sm:$0xff] %vm274, %v382
      %431 = vst.msk [vmem:[#allocation3 + $0x70] sm:$0xff] %vm274, %v384
      %432 = vst.msk [vmem:[#allocation3 + $0x78] sm:$0xff] %vm274, %v385
      %433 = vst.msk [vmem:[#allocation3 + $0x80] sm:$0xff] %vm274, %v387
      %434 = vst.msk [vmem:[#allocation3 + $0x88] sm:$0xff] %vm274, %v388
      %435 = vst.msk [vmem:[#allocation3 + $0x90] sm:$0xff] %vm274, %v390
      %436 = vst.msk [vmem:[#allocation3 + $0x98] sm:$0xff] %vm274, %v391
      %437 = vst.msk [vmem:[#allocation3 + $0xa0] sm:$0xff] %vm274, %v393
      %438 = vst.msk [vmem:[#allocation3 + $0xa8] sm:$0xff] %vm274, %v394
      %439 = vst.msk [vmem:[#allocation3 + $0xb0] sm:$0xff] %vm274, %v396
      %440 = vst.msk [vmem:[#allocation3 + $0xb8] sm:$0xff] %vm274, %v397
      %441 = vst.msk [vmem:[#allocation3 + $0xc0] sm:$0xff] %vm274, %v399
      %442 = vst.msk [vmem:[#allocation3 + $0xc8] sm:$0xff] %vm274, %v400
      %443 = vst.msk [vmem:[#allocation3 + $0xd0] sm:$0xff] %vm274, %v402
      %444 = vst.msk [vmem:[#allocation3 + $0xd8] sm:$0xff] %vm274, %v403
      %445 = vst.msk [vmem:[#allocation3 + $0xe0] sm:$0xff] %vm274, %v405
      %446 = vst.msk [vmem:[#allocation3 + $0xe8] sm:$0xff] %vm274, %v406
      %447 = vst.msk [vmem:[#allocation3 + $0xf0] sm:$0xff] %vm274, %v408
      %448 = vst.msk [vmem:[#allocation3 + $0xf8] sm:$0xff] %vm274, %v409
      %vm497 = vcmask 1046528
      %v498 = vrot.slane %v363, 1
      %v499 = vrot.slane %v364, 1
      %v500 = vsel %vm497, %v498, %v499
      %v501 = vrot.slane %v365, 1
      %v502 = vsel %vm497, %v499, %v501
      %v503 = vrot.slane %v366, 1
      %v504 = vrot.slane %v367, 1
      %v505 = vsel %vm497, %v503, %v504
      %v506 = vrot.slane %v368, 1
      %v507 = vsel %vm497, %v504, %v506
      %v508 = vrot.slane %v369, 1
      %v509 = vrot.slane %v370, 1
      %v510 = vsel %vm497, %v508, %v509
      %v511 = vrot.slane %v371, 1
      %v512 = vsel %vm497, %v509, %v511
      %v513 = vrot.slane %v372, 1
      %v514 = vrot.slane %v373, 1
      %v515 = vsel %vm497, %v513, %v514
      %v516 = vrot.slane %v374, 1
      %v517 = vsel %vm497, %v514, %v516
      %v518 = vrot.slane %v375, 1
      %v519 = vrot.slane %v376, 1
      %v520 = vsel %vm497, %v518, %v519
      %v521 = vrot.slane %v377, 1
      %v522 = vsel %vm497, %v519, %v521
      %v523 = vrot.slane %v378, 1
      %v524 = vrot.slane %v379, 1
      %v525 = vsel %vm497, %v523, %v524
      %v526 = vrot.slane %v380, 1
      %v527 = vsel %vm497, %v524, %v526
      %v528 = vrot.slane %v381, 1
      %v529 = vrot.slane %v382, 1
      %v530 = vsel %vm497, %v528, %v529
      %v531 = vrot.slane %v383, 1
      %v532 = vsel %vm497, %v529, %v531
      %v533 = vrot.slane %v384, 1
      %v534 = vrot.slane %v385, 1
      %v535 = vsel %vm497, %v533, %v534
      %v536 = vrot.slane %v386, 1
      %v537 = vsel %vm497, %v534, %v536
      %v538 = vrot.slane %v387, 1
      %v539 = vrot.slane %v388, 1
      %v540 = vsel %vm497, %v538, %v539
      %v541 = vrot.slane %v389, 1
      %v542 = vsel %vm497, %v539, %v541
      %v543 = vrot.slane %v390, 1
      %v544 = vrot.slane %v391, 1
      %v545 = vsel %vm497, %v543, %v544
      %v546 = vrot.slane %v392, 1
      %v547 = vsel %vm497, %v544, %v546
      %v548 = vrot.slane %v393, 1
      %v549 = vrot.slane %v394, 1
      %v550 = vsel %vm497, %v548, %v549
      %v551 = vrot.slane %v395, 1
      %v552 = vsel %vm497, %v549, %v551
      %v553 = vrot.slane %v396, 1
      %v554 = vrot.slane %v397, 1
      %v555 = vsel %vm497, %v553, %v554
      %v556 = vrot.slane %v398, 1
      %v557 = vsel %vm497, %v554, %v556
      %v558 = vrot.slane %v399, 1
      %v559 = vrot.slane %v400, 1
      %v560 = vsel %vm497, %v558, %v559
      %v561 = vrot.slane %v401, 1
      %v562 = vsel %vm497, %v559, %v561
      %v563 = vrot.slane %v402, 1
      %v564 = vrot.slane %v403, 1
      %v565 = vsel %vm497, %v563, %v564
      %v566 = vrot.slane %v404, 1
      %v567 = vsel %vm497, %v564, %v566
      %v568 = vrot.slane %v405, 1
      %v569 = vrot.slane %v406, 1
      %v570 = vsel %vm497, %v568, %v569
      %v571 = vrot.slane %v407, 1
      %v572 = vsel %vm497, %v569, %v571
      %v573 = vrot.slane %v408, 1
      %v574 = vrot.slane %v409, 1
      %v575 = vsel %vm497, %v573, %v574
      %v576 = vrot.slane %v410, 1
      %v577 = vsel %vm497, %v574, %v576
      %578 = vrot.lane.b32.xlu0 %v500, 4
      %v579 = vpop.permute.xlu0 %578
      %580 = vrot.lane.b32.xlu0 %v502, 4
      %v581 = vpop.permute.xlu0 %580
      %582 = vrot.lane.b32.xlu0 %v505, 4
      %v583 = vpop.permute.xlu0 %582
      %584 = vrot.lane.b32.xlu0 %v507, 4
      %v585 = vpop.permute.xlu0 %584
      %586 = vrot.lane.b32.xlu0 %v510, 4
      %v587 = vpop.permute.xlu0 %586
      %588 = vrot.lane.b32.xlu0 %v512, 4
      %v589 = vpop.permute.xlu0 %588
      %590 = vrot.lane.b32.xlu0 %v515, 4
      %v591 = vpop.permute.xlu0 %590
      %592 = vrot.lane.b32.xlu0 %v517, 4
      %v593 = vpop.permute.xlu0 %592
      %594 = vrot.lane.b32.xlu0 %v520, 4
      %v595 = vpop.permute.xlu0 %594
      %596 = vrot.lane.b32.xlu0 %v522, 4
      %v597 = vpop.permute.xlu0 %596
      %598 = vrot.lane.b32.xlu0 %v525, 4
      %v599 = vpop.permute.xlu0 %598
      %600 = vrot.lane.b32.xlu0 %v527, 4
      %v601 = vpop.permute.xlu0 %600
      %602 = vrot.lane.b32.xlu0 %v530, 4
      %v603 = vpop.permute.xlu0 %602
      %604 = vrot.lane.b32.xlu0 %v532, 4
      %v605 = vpop.permute.xlu0 %604
      %606 = vrot.lane.b32.xlu0 %v535, 4
      %v607 = vpop.permute.xlu0 %606
      %608 = vrot.lane.b32.xlu0 %v537, 4
      %v609 = vpop.permute.xlu0 %608
      %610 = vrot.lane.b32.xlu0 %v540, 4
      %v611 = vpop.permute.xlu0 %610
      %612 = vrot.lane.b32.xlu0 %v542, 4
      %v613 = vpop.permute.xlu0 %612
      %614 = vrot.lane.b32.xlu0 %v545, 4
      %v615 = vpop.permute.xlu0 %614
      %616 = vrot.lane.b32.xlu0 %v547, 4
      %v617 = vpop.permute.xlu0 %616
      %618 = vrot.lane.b32.xlu0 %v550, 4
      %v619 = vpop.permute.xlu0 %618
      %620 = vrot.lane.b32.xlu0 %v552, 4
      %v621 = vpop.permute.xlu0 %620
      %622 = vrot.lane.b32.xlu0 %v555, 4
      %v623 = vpop.permute.xlu0 %622
      %624 = vrot.lane.b32.xlu0 %v557, 4
      %v625 = vpop.permute.xlu0 %624
      %626 = vrot.lane.b32.xlu0 %v560, 4
      %v627 = vpop.permute.xlu0 %626
      %628 = vrot.lane.b32.xlu0 %v562, 4
      %v629 = vpop.permute.xlu0 %628
      %630 = vrot.lane.b32.xlu0 %v565, 4
      %v631 = vpop.permute.xlu0 %630
      %632 = vrot.lane.b32.xlu0 %v567, 4
      %v633 = vpop.permute.xlu0 %632
      %634 = vrot.lane.b32.xlu0 %v570, 4
      %v635 = vpop.permute.xlu0 %634
      %636 = vrot.lane.b32.xlu0 %v572, 4
      %v637 = vpop.permute.xlu0 %636
      %638 = vrot.lane.b32.xlu0 %v575, 4
      %v639 = vpop.permute.xlu0 %638
      %640 = vrot.lane.b32.xlu0 %v577, 4
      %v641 = vpop.permute.xlu0 %640
      %vm674 = vcmask 64544
      %675 = vst.msk [vmem:[#allocation3] sm:$0xff] %vm674, %v579
      %676 = vst.msk [vmem:[#allocation3 + $0x8] sm:$0xff] %vm674, %v581
      %677 = vst.msk [vmem:[#allocation3 + $0x10] sm:$0xff] %vm674, %v583
      %678 = vst.msk [vmem:[#allocation3 + $0x18] sm:$0xff] %vm674, %v585
      %679 = vst.msk [vmem:[#allocation3 + $0x20] sm:$0xff] %vm674, %v587
      %680 = vst.msk [vmem:[#allocation3 + $0x28] sm:$0xff] %vm674, %v589
      %681 = vst.msk [vmem:[#allocation3 + $0x30] sm:$0xff] %vm674, %v591
      %682 = vst.msk [vmem:[#allocation3 + $0x38] sm:$0xff] %vm674, %v593
      %683 = vst.msk [vmem:[#allocation3 + $0x40] sm:$0xff] %vm674, %v595
      %684 = vst.msk [vmem:[#allocation3 + $0x48] sm:$0xff] %vm674, %v597
      %685 = vst.msk [vmem:[#allocation3 + $0x50] sm:$0xff] %vm674, %v599
      %686 = vst.msk [vmem:[#allocation3 + $0x58] sm:$0xff] %vm674, %v601
      %687 = vst.msk [vmem:[#allocation3 + $0x60] sm:$0xff] %vm674, %v603
      %688 = vst.msk [vmem:[#allocation3 + $0x68] sm:$0xff] %vm674, %v605
      %689 = vst.msk [vmem:[#allocation3 + $0x70] sm:$0xff] %vm674, %v607
      %690 = vst.msk [vmem:[#allocation3 + $0x78] sm:$0xff] %vm674, %v609
      %691 = vst.msk [vmem:[#allocation3 + $0x80] sm:$0xff] %vm674, %v611
      %692 = vst.msk [vmem:[#allocation3 + $0x88] sm:$0xff] %vm674, %v613
      %693 = vst.msk [vmem:[#allocation3 + $0x90] sm:$0xff] %vm674, %v615
      %694 = vst.msk [vmem:[#allocation3 + $0x98] sm:$0xff] %vm674, %v617
      %695 = vst.msk [vmem:[#allocation3 + $0xa0] sm:$0xff] %vm674, %v619
      %696 = vst.msk [vmem:[#allocation3 + $0xa8] sm:$0xff] %vm674, %v621
      %697 = vst.msk [vmem:[#allocation3 + $0xb0] sm:$0xff] %vm674, %v623
      %698 = vst.msk [vmem:[#allocation3 + $0xb8] sm:$0xff] %vm674, %v625
      %699 = vst.msk [vmem:[#allocation3 + $0xc0] sm:$0xff] %vm674, %v627
      %700 = vst.msk [vmem:[#allocation3 + $0xc8] sm:$0xff] %vm674, %v629
      %701 = vst.msk [vmem:[#allocation3 + $0xd0] sm:$0xff] %vm674, %v631
      %702 = vst.msk [vmem:[#allocation3 + $0xd8] sm:$0xff] %vm674, %v633
      %703 = vst.msk [vmem:[#allocation3 + $0xe0] sm:$0xff] %vm674, %v635
      %704 = vst.msk [vmem:[#allocation3 + $0xe8] sm:$0xff] %vm674, %v637
      %705 = vst.msk [vmem:[#allocation3 + $0xf0] sm:$0xff] %vm674, %v639
      %706 = vst.msk [vmem:[#allocation3 + $0xf8] sm:$0xff] %vm674, %v641
      %vm707 = vcmask 1045504
      %v708 = vrot.slane %v363, 2
      %v709 = vrot.slane %v364, 2
      %v710 = vsel %vm707, %v708, %v709
      %v711 = vrot.slane %v365, 2
      %v712 = vsel %vm707, %v709, %v711
      %v713 = vrot.slane %v366, 2
      %v714 = vrot.slane %v367, 2
      %v715 = vsel %vm707, %v713, %v714
      %v716 = vrot.slane %v368, 2
      %v717 = vsel %vm707, %v714, %v716
      %v718 = vrot.slane %v369, 2
      %v719 = vrot.slane %v370, 2
      %v720 = vsel %vm707, %v718, %v719
      %v721 = vrot.slane %v371, 2
      %v722 = vsel %vm707, %v719, %v721
      %v723 = vrot.slane %v372, 2
      %v724 = vrot.slane %v373, 2
      %v725 = vsel %vm707, %v723, %v724
      %v726 = vrot.slane %v374, 2
      %v727 = vsel %vm707, %v724, %v726
      %v728 = vrot.slane %v375, 2
      %v729 = vrot.slane %v376, 2
      %v730 = vsel %vm707, %v728, %v729
      %v731 = vrot.slane %v377, 2
      %v732 = vsel %vm707, %v729, %v731
      %v733 = vrot.slane %v378, 2
      %v734 = vrot.slane %v379, 2
      %v735 = vsel %vm707, %v733, %v734
      %v736 = vrot.slane %v380, 2
      %v737 = vsel %vm707, %v734, %v736
      %v738 = vrot.slane %v381, 2
      %v739 = vrot.slane %v382, 2
      %v740 = vsel %vm707, %v738, %v739
      %v741 = vrot.slane %v383, 2
      %v742 = vsel %vm707, %v739, %v741
      %v743 = vrot.slane %v384, 2
      %v744 = vrot.slane %v385, 2
      %v745 = vsel %vm707, %v743, %v744
      %v746 = vrot.slane %v386, 2
      %v747 = vsel %vm707, %v744, %v746
      %v748 = vrot.slane %v387, 2
      %v749 = vrot.slane %v388, 2
      %v750 = vsel %vm707, %v748, %v749
      %v751 = vrot.slane %v389, 2
      %v752 = vsel %vm707, %v749, %v751
      %v753 = vrot.slane %v390, 2
      %v754 = vrot.slane %v391, 2
      %v755 = vsel %vm707, %v753, %v754
      %v756 = vrot.slane %v392, 2
      %v757 = vsel %vm707, %v754, %v756
      %v758 = vrot.slane %v393, 2
      %v759 = vrot.slane %v394, 2
      %v760 = vsel %vm707, %v758, %v759
      %v761 = vrot.slane %v395, 2
      %v762 = vsel %vm707, %v759, %v761
      %v763 = vrot.slane %v396, 2
      %v764 = vrot.slane %v397, 2
      %v765 = vsel %vm707, %v763, %v764
      %v766 = vrot.slane %v398, 2
      %v767 = vsel %vm707, %v764, %v766
      %v768 = vrot.slane %v399, 2
      %v769 = vrot.slane %v400, 2
      %v770 = vsel %vm707, %v768, %v769
      %v771 = vrot.slane %v401, 2
      %v772 = vsel %vm707, %v769, %v771
      %v773 = vrot.slane %v402, 2
      %v774 = vrot.slane %v403, 2
      %v775 = vsel %vm707, %v773, %v774
      %v776 = vrot.slane %v404, 2
      %v777 = vsel %vm707, %v774, %v776
      %v778 = vrot.slane %v405, 2
      %v779 = vrot.slane %v406, 2
      %v780 = vsel %vm707, %v778, %v779
      %v781 = vrot.slane %v407, 2
      %v782 = vsel %vm707, %v779, %v781
      %v783 = vrot.slane %v408, 2
      %v784 = vrot.slane %v409, 2
      %v785 = vsel %vm707, %v783, %v784
      %v786 = vrot.slane %v410, 2
      %v787 = vsel %vm707, %v784, %v786
      %788 = vrot.lane.b32.xlu0 %v710, 8
      %v789 = vpop.permute.xlu0 %788
      %790 = vrot.lane.b32.xlu0 %v712, 8
      %v791 = vpop.permute.xlu0 %790
      %792 = vrot.lane.b32.xlu0 %v715, 8
      %v793 = vpop.permute.xlu0 %792
      %794 = vrot.lane.b32.xlu0 %v717, 8
      %v795 = vpop.permute.xlu0 %794
      %796 = vrot.lane.b32.xlu0 %v720, 8
      %v797 = vpop.permute.xlu0 %796
      %798 = vrot.lane.b32.xlu0 %v722, 8
      %v799 = vpop.permute.xlu0 %798
      %800 = vrot.lane.b32.xlu0 %v725, 8
      %v801 = vpop.permute.xlu0 %800
      %802 = vrot.lane.b32.xlu0 %v727, 8
      %v803 = vpop.permute.xlu0 %802
      %804 = vrot.lane.b32.xlu0 %v730, 8
      %v805 = vpop.permute.xlu0 %804
      %806 = vrot.lane.b32.xlu0 %v732, 8
      %v807 = vpop.permute.xlu0 %806
      %808 = vrot.lane.b32.xlu0 %v735, 8
      %v809 = vpop.permute.xlu0 %808
      %810 = vrot.lane.b32.xlu0 %v737, 8
      %v811 = vpop.permute.xlu0 %810
      %812 = vrot.lane.b32.xlu0 %v740, 8
      %v813 = vpop.permute.xlu0 %812
      %814 = vrot.lane.b32.xlu0 %v742, 8
      %v815 = vpop.permute.xlu0 %814
      %816 = vrot.lane.b32.xlu0 %v745, 8
      %v817 = vpop.permute.xlu0 %816
      %818 = vrot.lane.b32.xlu0 %v747, 8
      %v819 = vpop.permute.xlu0 %818
      %820 = vrot.lane.b32.xlu0 %v750, 8
      %v821 = vpop.permute.xlu0 %820
      %822 = vrot.lane.b32.xlu0 %v752, 8
      %v823 = vpop.permute.xlu0 %822
      %824 = vrot.lane.b32.xlu0 %v755, 8
      %v825 = vpop.permute.xlu0 %824
      %826 = vrot.lane.b32.xlu0 %v757, 8
      %v827 = vpop.permute.xlu0 %826
      %828 = vrot.lane.b32.xlu0 %v760, 8
      %v829 = vpop.permute.xlu0 %828
      %830 = vrot.lane.b32.xlu0 %v762, 8
      %v831 = vpop.permute.xlu0 %830
      %832 = vrot.lane.b32.xlu0 %v765, 8
      %v833 = vpop.permute.xlu0 %832
      %834 = vrot.lane.b32.xlu0 %v767, 8
      %v835 = vpop.permute.xlu0 %834
      %836 = vrot.lane.b32.xlu0 %v770, 8
      %v837 = vpop.permute.xlu0 %836
      %838 = vrot.lane.b32.xlu0 %v772, 8
      %v839 = vpop.permute.xlu0 %838
      %840 = vrot.lane.b32.xlu0 %v775, 8
      %v841 = vpop.permute.xlu0 %840
      %842 = vrot.lane.b32.xlu0 %v777, 8
      %v843 = vpop.permute.xlu0 %842
      %844 = vrot.lane.b32.xlu0 %v780, 8
      %v845 = vpop.permute.xlu0 %844
      %846 = vrot.lane.b32.xlu0 %v782, 8
      %v847 = vpop.permute.xlu0 %846
      %848 = vrot.lane.b32.xlu0 %v785, 8
      %v849 = vpop.permute.xlu0 %848
      %850 = vrot.lane.b32.xlu0 %v787, 8
      %v851 = vpop.permute.xlu0 %850
      %vm884 = vcmask 97344
      %885 = vst.msk [vmem:[#allocation3] sm:$0xff] %vm884, %v789
      %886 = vst.msk [vmem:[#allocation3 + $0x8] sm:$0xff] %vm884, %v791
      %887 = vst.msk [vmem:[#allocation3 + $0x10] sm:$0xff] %vm884, %v793
      %888 = vst.msk [vmem:[#allocation3 + $0x18] sm:$0xff] %vm884, %v795
      %889 = vst.msk [vmem:[#allocation3 + $0x20] sm:$0xff] %vm884, %v797
      %890 = vst.msk [vmem:[#allocation3 + $0x28] sm:$0xff] %vm884, %v799
      %891 = vst.msk [vmem:[#allocation3 + $0x30] sm:$0xff] %vm884, %v801
      %892 = vst.msk [vmem:[#allocation3 + $0x38] sm:$0xff] %vm884, %v803
      %893 = vst.msk [vmem:[#allocation3 + $0x40] sm:$0xff] %vm884, %v805
      %894 = vst.msk [vmem:[#allocation3 + $0x48] sm:$0xff] %vm884, %v807
      %895 = vst.msk [vmem:[#allocation3 + $0x50] sm:$0xff] %vm884, %v809
      %896 = vst.msk [vmem:[#allocation3 + $0x58] sm:$0xff] %vm884, %v811
      %897 = vst.msk [vmem:[#allocation3 + $0x60] sm:$0xff] %vm884, %v813
      %898 = vst.msk [vmem:[#allocation3 + $0x68] sm:$0xff] %vm884, %v815
      %899 = vst.msk [vmem:[#allocation3 + $0x70] sm:$0xff] %vm884, %v817
      %900 = vst.msk [vmem:[#allocation3 + $0x78] sm:$0xff] %vm884, %v819
      %901 = vst.msk [vmem:[#allocation3 + $0x80] sm:$0xff] %vm884, %v821
      %902 = vst.msk [vmem:[#allocation3 + $0x88] sm:$0xff] %vm884, %v823
      %903 = vst.msk [vmem:[#allocation3 + $0x90] sm:$0xff] %vm884, %v825
      %904 = vst.msk [vmem:[#allocation3 + $0x98] sm:$0xff] %vm884, %v827
      %905 = vst.msk [vmem:[#allocation3 + $0xa0] sm:$0xff] %vm884, %v829
      %906 = vst.msk [vmem:[#allocation3 + $0xa8] sm:$0xff] %vm884, %v831
      %907 = vst.msk [vmem:[#allocation3 + $0xb0] sm:$0xff] %vm884, %v833
      %908 = vst.msk [vmem:[#allocation3 + $0xb8] sm:$0xff] %vm884, %v835
      %909 = vst.msk [vmem:[#allocation3 + $0xc0] sm:$0xff] %vm884, %v837
      %910 = vst.msk [vmem:[#allocation3 + $0xc8] sm:$0xff] %vm884, %v839
      %911 = vst.msk [vmem:[#allocation3 + $0xd0] sm:$0xff] %vm884, %v841
      %912 = vst.msk [vmem:[#allocation3 + $0xd8] sm:$0xff] %vm884, %v843
      %913 = vst.msk [vmem:[#allocation3 + $0xe0] sm:$0xff] %vm884, %v845
      %914 = vst.msk [vmem:[#allocation3 + $0xe8] sm:$0xff] %vm884, %v847
      %915 = vst.msk [vmem:[#allocation3 + $0xf0] sm:$0xff] %vm884, %v849
      %916 = vst.msk [vmem:[#allocation3 + $0xf8] sm:$0xff] %vm884, %v851
      %919 = vrot.lane.b32.xlu0 %v366, 12
      %v920 = vpop.permute.xlu0 %919
      %921 = vrot.lane.b32.xlu0 %v367, 12
      %v922 = vpop.permute.xlu0 %921
      %923 = vrot.lane.b32.xlu0 %v369, 12
      %v924 = vpop.permute.xlu0 %923
      %925 = vrot.lane.b32.xlu0 %v370, 12
      %v926 = vpop.permute.xlu0 %925
      %927 = vrot.lane.b32.xlu0 %v372, 12
      %v928 = vpop.permute.xlu0 %927
      %929 = vrot.lane.b32.xlu0 %v373, 12
      %v930 = vpop.permute.xlu0 %929
      %931 = vrot.lane.b32.xlu0 %v375, 12
      %v932 = vpop.permute.xlu0 %931
      %933 = vrot.lane.b32.xlu0 %v376, 12
      %v934 = vpop.permute.xlu0 %933
      %935 = vrot.lane.b32.xlu0 %v378, 12
      %v936 = vpop.permute.xlu0 %935
      %937 = vrot.lane.b32.xlu0 %v379, 12
      %v938 = vpop.permute.xlu0 %937
      %939 = vrot.lane.b32.xlu0 %v381, 12
      %v940 = vpop.permute.xlu0 %939
      %941 = vrot.lane.b32.xlu0 %v382, 12
      %v942 = vpop.permute.xlu0 %941
      %943 = vrot.lane.b32.xlu0 %v384, 12
      %v944 = vpop.permute.xlu0 %943
      %945 = vrot.lane.b32.xlu0 %v385, 12
      %v946 = vpop.permute.xlu0 %945
      %947 = vrot.lane.b32.xlu0 %v387, 12
      %v948 = vpop.permute.xlu0 %947
      %949 = vrot.lane.b32.xlu0 %v388, 12
      %v950 = vpop.permute.xlu0 %949
      %951 = vrot.lane.b32.xlu0 %v390, 12
      %v952 = vpop.permute.xlu0 %951
      %953 = vrot.lane.b32.xlu0 %v391, 12
      %v954 = vpop.permute.xlu0 %953
      %955 = vrot.lane.b32.xlu0 %v393, 12
      %v956 = vpop.permute.xlu0 %955
      %957 = vrot.lane.b32.xlu0 %v394, 12
      %v958 = vpop.permute.xlu0 %957
      %959 = vrot.lane.b32.xlu0 %v396, 12
      %v960 = vpop.permute.xlu0 %959
      %961 = vrot.lane.b32.xlu0 %v397, 12
      %v962 = vpop.permute.xlu0 %961
      %963 = vrot.lane.b32.xlu0 %v399, 12
      %v964 = vpop.permute.xlu0 %963
      %965 = vrot.lane.b32.xlu0 %v400, 12
      %v966 = vpop.permute.xlu0 %965
      %967 = vrot.lane.b32.xlu0 %v402, 12
      %v968 = vpop.permute.xlu0 %967
      %969 = vrot.lane.b32.xlu0 %v403, 12
      %v970 = vpop.permute.xlu0 %969
      %971 = vrot.lane.b32.xlu0 %v405, 12
      %v972 = vpop.permute.xlu0 %971
      %973 = vrot.lane.b32.xlu0 %v406, 12
      %v974 = vpop.permute.xlu0 %973
      %975 = vrot.lane.b32.xlu0 %v408, 12
      %v976 = vpop.permute.xlu0 %975
      %977 = vrot.lane.b32.xlu0 %v409, 12
      %v978 = vpop.permute.xlu0 %977
      %979 = vrot.lane.b32.xlu0 %v411, 12
      %v980 = vpop.permute.xlu0 %979
      %981 = vrot.lane.b32.xlu0 %v412, 12
      %v982 = vpop.permute.xlu0 %981
      %vm1015 = vcmask 130144
      %1016 = vst.msk [vmem:[#allocation3] sm:$0xff] %vm1015, %v920
      %1017 = vst.msk [vmem:[#allocation3 + $0x8] sm:$0xff] %vm1015, %v922
      %1018 = vst.msk [vmem:[#allocation3 + $0x10] sm:$0xff] %vm1015, %v924
      %1019 = vst.msk [vmem:[#allocation3 + $0x18] sm:$0xff] %vm1015, %v926
      %1020 = vst.msk [vmem:[#allocation3 + $0x20] sm:$0xff] %vm1015, %v928
      %1021 = vst.msk [vmem:[#allocation3 + $0x28] sm:$0xff] %vm1015, %v930
      %1022 = vst.msk [vmem:[#allocation3 + $0x30] sm:$0xff] %vm1015, %v932
      %1023 = vst.msk [vmem:[#allocation3 + $0x38] sm:$0xff] %vm1015, %v934
      %1024 = vst.msk [vmem:[#allocation3 + $0x40] sm:$0xff] %vm1015, %v936
      %1025 = vst.msk [vmem:[#allocation3 + $0x48] sm:$0xff] %vm1015, %v938
      %1026 = vst.msk [vmem:[#allocation3 + $0x50] sm:$0xff] %vm1015, %v940
      %1027 = vst.msk [vmem:[#allocation3 + $0x58] sm:$0xff] %vm1015, %v942
      %1028 = vst.msk [vmem:[#allocation3 + $0x60] sm:$0xff] %vm1015, %v944
      %1029 = vst.msk [vmem:[#allocation3 + $0x68] sm:$0xff] %vm1015, %v946
      %1030 = vst.msk [vmem:[#allocation3 + $0x70] sm:$0xff] %vm1015, %v948
      %1031 = vst.msk [vmem:[#allocation3 + $0x78] sm:$0xff] %vm1015, %v950
      %1032 = vst.msk [vmem:[#allocation3 + $0x80] sm:$0xff] %vm1015, %v952
      %1033 = vst.msk [vmem:[#allocation3 + $0x88] sm:$0xff] %vm1015, %v954
      %1034 = vst.msk [vmem:[#allocation3 + $0x90] sm:$0xff] %vm1015, %v956
      %1035 = vst.msk [vmem:[#allocation3 + $0x98] sm:$0xff] %vm1015, %v958
      %1036 = vst.msk [vmem:[#allocation3 + $0xa0] sm:$0xff] %vm1015, %v960
      %1037 = vst.msk [vmem:[#allocation3 + $0xa8] sm:$0xff] %vm1015, %v962
      %1038 = vst.msk [vmem:[#allocation3 + $0xb0] sm:$0xff] %vm1015, %v964
      %1039 = vst.msk [vmem:[#allocation3 + $0xb8] sm:$0xff] %vm1015, %v966
      %1040 = vst.msk [vmem:[#allocation3 + $0xc0] sm:$0xff] %vm1015, %v968
      %1041 = vst.msk [vmem:[#allocation3 + $0xc8] sm:$0xff] %vm1015, %v970
      %1042 = vst.msk [vmem:[#allocation3 + $0xd0] sm:$0xff] %vm1015, %v972
      %1043 = vst.msk [vmem:[#allocation3 + $0xd8] sm:$0xff] %vm1015, %v974
      %1044 = vst.msk [vmem:[#allocation3 + $0xe0] sm:$0xff] %vm1015, %v976
      %1045 = vst.msk [vmem:[#allocation3 + $0xe8] sm:$0xff] %vm1015, %v978
      %1046 = vst.msk [vmem:[#allocation3 + $0xf0] sm:$0xff] %vm1015, %v980
      %1047 = vst.msk [vmem:[#allocation3 + $0xf8] sm:$0xff] %vm1015, %v982
      %v1049 = vrot.slane %v411, 1
      %v1050 = vrot.slane %v412, 1
      %v1051 = vsel %vm497, %v1049, %v1050
      %v1052 = vrot.slane %v413, 1
      %v1053 = vsel %vm497, %v1050, %v1052
      %1054 = vrot.lane.b32.xlu0 %v505, 16
      %v1055 = vpop.permute.xlu0 %1054
      %1056 = vrot.lane.b32.xlu0 %v507, 16
      %v1057 = vpop.permute.xlu0 %1056
      %1058 = vrot.lane.b32.xlu0 %v510, 16
      %v1059 = vpop.permute.xlu0 %1058
      %1060 = vrot.lane.b32.xlu0 %v512, 16
      %v1061 = vpop.permute.xlu0 %1060
      %1062 = vrot.lane.b32.xlu0 %v515, 16
      %v1063 = vpop.permute.xlu0 %1062
      %1064 = vrot.lane.b32.xlu0 %v517, 16
      %v1065 = vpop.permute.xlu0 %1064
      %1066 = vrot.lane.b32.xlu0 %v520, 16
      %v1067 = vpop.permute.xlu0 %1066
      %1068 = vrot.lane.b32.xlu0 %v522, 16
      %v1069 = vpop.permute.xlu0 %1068
      %1070 = vrot.lane.b32.xlu0 %v525, 16
      %v1071 = vpop.permute.xlu0 %1070
      %1072 = vrot.lane.b32.xlu0 %v527, 16
      %v1073 = vpop.permute.xlu0 %1072
      %1074 = vrot.lane.b32.xlu0 %v530, 16
      %v1075 = vpop.permute.xlu0 %1074
      %1076 = vrot.lane.b32.xlu0 %v532, 16
      %v1077 = vpop.permute.xlu0 %1076
      %1078 = vrot.lane.b32.xlu0 %v535, 16
      %v1079 = vpop.permute.xlu0 %1078
      %1080 = vrot.lane.b32.xlu0 %v537, 16
      %v1081 = vpop.permute.xlu0 %1080
      %1082 = vrot.lane.b32.xlu0 %v540, 16
      %v1083 = vpop.permute.xlu0 %1082
      %1084 = vrot.lane.b32.xlu0 %v542, 16
      %v1085 = vpop.permute.xlu0 %1084
      %1086 = vrot.lane.b32.xlu0 %v545, 16
      %v1087 = vpop.permute.xlu0 %1086
      %1088 = vrot.lane.b32.xlu0 %v547, 16
      %v1089 = vpop.permute.xlu0 %1088
      %1090 = vrot.lane.b32.xlu0 %v550, 16
      %v1091 = vpop.permute.xlu0 %1090
      %1092 = vrot.lane.b32.xlu0 %v552, 16
      %v1093 = vpop.permute.xlu0 %1092
      %1094 = vrot.lane.b32.xlu0 %v555, 16
      %v1095 = vpop.permute.xlu0 %1094
      %1096 = vrot.lane.b32.xlu0 %v557, 16
      %v1097 = vpop.permute.xlu0 %1096
      %1098 = vrot.lane.b32.xlu0 %v560, 16
      %v1099 = vpop.permute.xlu0 %1098
      %1100 = vrot.lane.b32.xlu0 %v562, 16
      %v1101 = vpop.permute.xlu0 %1100
      %1102 = vrot.lane.b32.xlu0 %v565, 16
      %v1103 = vpop.permute.xlu0 %1102
      %1104 = vrot.lane.b32.xlu0 %v567, 16
      %v1105 = vpop.permute.xlu0 %1104
      %1106 = vrot.lane.b32.xlu0 %v570, 16
      %v1107 = vpop.permute.xlu0 %1106
      %1108 = vrot.lane.b32.xlu0 %v572, 16
      %v1109 = vpop.permute.xlu0 %1108
      %1110 = vrot.lane.b32.xlu0 %v575, 16
      %v1111 = vpop.permute.xlu0 %1110
      %1112 = vrot.lane.b32.xlu0 %v577, 16
      %v1113 = vpop.permute.xlu0 %1112
      %1114 = vrot.lane.b32.xlu0 %v1051, 16
      %v1115 = vpop.permute.xlu0 %1114
      %1116 = vrot.lane.b32.xlu0 %v1053, 16
      %v1117 = vpop.permute.xlu0 %1116
      %vm1150 = vcmask 162944
      %1151 = vst.msk [vmem:[#allocation3] sm:$0xff] %vm1150, %v1055
      %1152 = vst.msk [vmem:[#allocation3 + $0x8] sm:$0xff] %vm1150, %v1057
      %1153 = vst.msk [vmem:[#allocation3 + $0x10] sm:$0xff] %vm1150, %v1059
      %1154 = vst.msk [vmem:[#allocation3 + $0x18] sm:$0xff] %vm1150, %v1061
      %1155 = vst.msk [vmem:[#allocation3 + $0x20] sm:$0xff] %vm1150, %v1063
      %1156 = vst.msk [vmem:[#allocation3 + $0x28] sm:$0xff] %vm1150, %v1065
      %1157 = vst.msk [vmem:[#allocation3 + $0x30] sm:$0xff] %vm1150, %v1067
      %1158 = vst.msk [vmem:[#allocation3 + $0x38] sm:$0xff] %vm1150, %v1069
      %1159 = vst.msk [vmem:[#allocation3 + $0x40] sm:$0xff] %vm1150, %v1071
      %1160 = vst.msk [vmem:[#allocation3 + $0x48] sm:$0xff] %vm1150, %v1073
      %1161 = vst.msk [vmem:[#allocation3 + $0x50] sm:$0xff] %vm1150, %v1075
      %1162 = vst.msk [vmem:[#allocation3 + $0x58] sm:$0xff] %vm1150, %v1077
      %1163 = vst.msk [vmem:[#allocation3 + $0x60] sm:$0xff] %vm1150, %v1079
      %1164 = vst.msk [vmem:[#allocation3 + $0x68] sm:$0xff] %vm1150, %v1081
      %1165 = vst.msk [vmem:[#allocation3 + $0x70] sm:$0xff] %vm1150, %v1083
      %1166 = vst.msk [vmem:[#allocation3 + $0x78] sm:$0xff] %vm1150, %v1085
      %1167 = vst.msk [vmem:[#allocation3 + $0x80] sm:$0xff] %vm1150, %v1087
      %1168 = vst.msk [vmem:[#allocation3 + $0x88] sm:$0xff] %vm1150, %v1089
      %1169 = vst.msk [vmem:[#allocation3 + $0x90] sm:$0xff] %vm1150, %v1091
      %1170 = vst.msk [vmem:[#allocation3 + $0x98] sm:$0xff] %vm1150, %v1093
      %1171 = vst.msk [vmem:[#allocation3 + $0xa0] sm:$0xff] %vm1150, %v1095
      %1172 = vst.msk [vmem:[#allocation3 + $0xa8] sm:$0xff] %vm1150, %v1097
      %1173 = vst.msk [vmem:[#allocation3 + $0xb0] sm:$0xff] %vm1150, %v1099
      %1174 = vst.msk [vmem:[#allocation3 + $0xb8] sm:$0xff] %vm1150, %v1101
      %1175 = vst.msk [vmem:[#allocation3 + $0xc0] sm:$0xff] %vm1150, %v1103
      %1176 = vst.msk [vmem:[#allocation3 + $0xc8] sm:$0xff] %vm1150, %v1105
      %1177 = vst.msk [vmem:[#allocation3 + $0xd0] sm:$0xff] %vm1150, %v1107
      %1178 = vst.msk [vmem:[#allocation3 + $0xd8] sm:$0xff] %vm1150, %v1109
      %1179 = vst.msk [vmem:[#allocation3 + $0xe0] sm:$0xff] %vm1150, %v1111
      %1180 = vst.msk [vmem:[#allocation3 + $0xe8] sm:$0xff] %vm1150, %v1113
      %1181 = vst.msk [vmem:[#allocation3 + $0xf0] sm:$0xff] %vm1150, %v1115
      %1182 = vst.msk [vmem:[#allocation3 + $0xf8] sm:$0xff] %vm1150, %v1117
      %v1183 = vrot.slane %v411, 2
      %v1184 = vrot.slane %v412, 2
      %v1185 = vsel %vm707, %v1183, %v1184
      %v1186 = vrot.slane %v413, 2
      %v1187 = vsel %vm707, %v1184, %v1186
      %1188 = vrot.lane.b32.xlu0 %v715, 20
      %v1189 = vpop.permute.xlu0 %1188
      %1190 = vrot.lane.b32.xlu0 %v717, 20
      %v1191 = vpop.permute.xlu0 %1190
      %1192 = vrot.lane.b32.xlu0 %v720, 20
      %v1193 = vpop.permute.xlu0 %1192
      %1194 = vrot.lane.b32.xlu0 %v722, 20
      %v1195 = vpop.permute.xlu0 %1194
      %1196 = vrot.lane.b32.xlu0 %v725, 20
      %v1197 = vpop.permute.xlu0 %1196
      %1198 = vrot.lane.b32.xlu0 %v727, 20
      %v1199 = vpop.permute.xlu0 %1198
      %1200 = vrot.lane.b32.xlu0 %v730, 20
      %v1201 = vpop.permute.xlu0 %1200
      %1202 = vrot.lane.b32.xlu0 %v732, 20
      %v1203 = vpop.permute.xlu0 %1202
      %1204 = vrot.lane.b32.xlu0 %v735, 20
      %v1205 = vpop.permute.xlu0 %1204
      %1206 = vrot.lane.b32.xlu0 %v737, 20
      %v1207 = vpop.permute.xlu0 %1206
      %1208 = vrot.lane.b32.xlu0 %v740, 20
      %v1209 = vpop.permute.xlu0 %1208
      %1210 = vrot.lane.b32.xlu0 %v742, 20
      %v1211 = vpop.permute.xlu0 %1210
      %1212 = vrot.lane.b32.xlu0 %v745, 20
      %v1213 = vpop.permute.xlu0 %1212
      %1214 = vrot.lane.b32.xlu0 %v747, 20
      %v1215 = vpop.permute.xlu0 %1214
      %1216 = vrot.lane.b32.xlu0 %v750, 20
      %v1217 = vpop.permute.xlu0 %1216
      %1218 = vrot.lane.b32.xlu0 %v752, 20
      %v1219 = vpop.permute.xlu0 %1218
      %1220 = vrot.lane.b32.xlu0 %v755, 20
      %v1221 = vpop.permute.xlu0 %1220
      %1222 = vrot.lane.b32.xlu0 %v757, 20
      %v1223 = vpop.permute.xlu0 %1222
      %1224 = vrot.lane.b32.xlu0 %v760, 20
      %v1225 = vpop.permute.xlu0 %1224
      %1226 = vrot.lane.b32.xlu0 %v762, 20
      %v1227 = vpop.permute.xlu0 %1226
      %1228 = vrot.lane.b32.xlu0 %v765, 20
      %v1229 = vpop.permute.xlu0 %1228
      %1230 = vrot.lane.b32.xlu0 %v767, 20
      %v1231 = vpop.permute.xlu0 %1230
      %1232 = vrot.lane.b32.xlu0 %v770, 20
      %v1233 = vpop.permute.xlu0 %1232
      %1234 = vrot.lane.b32.xlu0 %v772, 20
      %v1235 = vpop.permute.xlu0 %1234
      %1236 = vrot.lane.b32.xlu0 %v775, 20
      %v1237 = vpop.permute.xlu0 %1236
      %1238 = vrot.lane.b32.xlu0 %v777, 20
      %v1239 = vpop.permute.xlu0 %1238
      %1240 = vrot.lane.b32.xlu0 %v780, 20
      %v1241 = vpop.permute.xlu0 %1240
      %1242 = vrot.lane.b32.xlu0 %v782, 20
      %v1243 = vpop.permute.xlu0 %1242
      %1244 = vrot.lane.b32.xlu0 %v785, 20
      %v1245 = vpop.permute.xlu0 %1244
      %1246 = vrot.lane.b32.xlu0 %v787, 20
      %v1247 = vpop.permute.xlu0 %1246
      %1248 = vrot.lane.b32.xlu0 %v1185, 20
      %v1249 = vpop.permute.xlu0 %1248
      %1250 = vrot.lane.b32.xlu0 %v1187, 20
      %v1251 = vpop.permute.xlu0 %1250
      %vm1284 = vcmask 195744
      %1285 = vst.msk [vmem:[#allocation3] sm:$0xff] %vm1284, %v1189
      %1286 = vst.msk [vmem:[#allocation3 + $0x8] sm:$0xff] %vm1284, %v1191
      %1287 = vst.msk [vmem:[#allocation3 + $0x10] sm:$0xff] %vm1284, %v1193
      %1288 = vst.msk [vmem:[#allocation3 + $0x18] sm:$0xff] %vm1284, %v1195
      %1289 = vst.msk [vmem:[#allocation3 + $0x20] sm:$0xff] %vm1284, %v1197
      %1290 = vst.msk [vmem:[#allocation3 + $0x28] sm:$0xff] %vm1284, %v1199
      %1291 = vst.msk [vmem:[#allocation3 + $0x30] sm:$0xff] %vm1284, %v1201
      %1292 = vst.msk [vmem:[#allocation3 + $0x38] sm:$0xff] %vm1284, %v1203
      %1293 = vst.msk [vmem:[#allocation3 + $0x40] sm:$0xff] %vm1284, %v1205
      %1294 = vst.msk [vmem:[#allocation3 + $0x48] sm:$0xff] %vm1284, %v1207
      %1295 = vst.msk [vmem:[#allocation3 + $0x50] sm:$0xff] %vm1284, %v1209
      %1296 = vst.msk [vmem:[#allocation3 + $0x58] sm:$0xff] %vm1284, %v1211
      %1297 = vst.msk [vmem:[#allocation3 + $0x60] sm:$0xff] %vm1284, %v1213
      %1298 = vst.msk [vmem:[#allocation3 + $0x68] sm:$0xff] %vm1284, %v1215
      %1299 = vst.msk [vmem:[#allocation3 + $0x70] sm:$0xff] %vm1284, %v1217
      %1300 = vst.msk [vmem:[#allocation3 + $0x78] sm:$0xff] %vm1284, %v1219
      %1301 = vst.msk [vmem:[#allocation3 + $0x80] sm:$0xff] %vm1284, %v1221
      %1302 = vst.msk [vmem:[#allocation3 + $0x88] sm:$0xff] %vm1284, %v1223
      %1303 = vst.msk [vmem:[#allocation3 + $0x90] sm:$0xff] %vm1284, %v1225
      %1304 = vst.msk [vmem:[#allocation3 + $0x98] sm:$0xff] %vm1284, %v1227
      %1305 = vst.msk [vmem:[#allocation3 + $0xa0] sm:$0xff] %vm1284, %v1229
      %1306 = vst.msk [vmem:[#allocation3 + $0xa8] sm:$0xff] %vm1284, %v1231
      %1307 = vst.msk [vmem:[#allocation3 + $0xb0] sm:$0xff] %vm1284, %v1233
      %1308 = vst.msk [vmem:[#allocation3 + $0xb8] sm:$0xff] %vm1284, %v1235
      %1309 = vst.msk [vmem:[#allocation3 + $0xc0] sm:$0xff] %vm1284, %v1237
      %1310 = vst.msk [vmem:[#allocation3 + $0xc8] sm:$0xff] %vm1284, %v1239
      %1311 = vst.msk [vmem:[#allocation3 + $0xd0] sm:$0xff] %vm1284, %v1241
      %1312 = vst.msk [vmem:[#allocation3 + $0xd8] sm:$0xff] %vm1284, %v1243
      %1313 = vst.msk [vmem:[#allocation3 + $0xe0] sm:$0xff] %vm1284, %v1245
      %1314 = vst.msk [vmem:[#allocation3 + $0xe8] sm:$0xff] %vm1284, %v1247
      %1315 = vst.msk [vmem:[#allocation3 + $0xf0] sm:$0xff] %vm1284, %v1249
      %1316 = vst.msk [vmem:[#allocation3 + $0xf8] sm:$0xff] %vm1284, %v1251
      %1319 = vrot.lane.b32.xlu0 %v369, 24
      %v1320 = vpop.permute.xlu0 %1319
      %1321 = vrot.lane.b32.xlu0 %v370, 24
      %v1322 = vpop.permute.xlu0 %1321
      %1323 = vrot.lane.b32.xlu0 %v372, 24
      %v1324 = vpop.permute.xlu0 %1323
      %1325 = vrot.lane.b32.xlu0 %v373, 24
      %v1326 = vpop.permute.xlu0 %1325
      %1327 = vrot.lane.b32.xlu0 %v375, 24
      %v1328 = vpop.permute.xlu0 %1327
      %1329 = vrot.lane.b32.xlu0 %v376, 24
      %v1330 = vpop.permute.xlu0 %1329
      %1331 = vrot.lane.b32.xlu0 %v378, 24
      %v1332 = vpop.permute.xlu0 %1331
      %1333 = vrot.lane.b32.xlu0 %v379, 24
      %v1334 = vpop.permute.xlu0 %1333
      %1335 = vrot.lane.b32.xlu0 %v381, 24
      %v1336 = vpop.permute.xlu0 %1335
      %1337 = vrot.lane.b32.xlu0 %v382, 24
      %v1338 = vpop.permute.xlu0 %1337
      %1339 = vrot.lane.b32.xlu0 %v384, 24
      %v1340 = vpop.permute.xlu0 %1339
      %1341 = vrot.lane.b32.xlu0 %v385, 24
      %v1342 = vpop.permute.xlu0 %1341
      %1343 = vrot.lane.b32.xlu0 %v387, 24
      %v1344 = vpop.permute.xlu0 %1343
      %1345 = vrot.lane.b32.xlu0 %v388, 24
      %v1346 = vpop.permute.xlu0 %1345
      %1347 = vrot.lane.b32.xlu0 %v390, 24
      %v1348 = vpop.permute.xlu0 %1347
      %1349 = vrot.lane.b32.xlu0 %v391, 24
      %v1350 = vpop.permute.xlu0 %1349
      %1351 = vrot.lane.b32.xlu0 %v393, 24
      %v1352 = vpop.permute.xlu0 %1351
      %1353 = vrot.lane.b32.xlu0 %v394, 24
      %v1354 = vpop.permute.xlu0 %1353
      %1355 = vrot.lane.b32.xlu0 %v396, 24
      %v1356 = vpop.permute.xlu0 %1355
      %1357 = vrot.lane.b32.xlu0 %v397, 24
      %v1358 = vpop.permute.xlu0 %1357
      %1359 = vrot.lane.b32.xlu0 %v399, 24
      %v1360 = vpop.permute.xlu0 %1359
      %1361 = vrot.lane.b32.xlu0 %v400, 24
      %v1362 = vpop.permute.xlu0 %1361
      %1363 = vrot.lane.b32.xlu0 %v402, 24
      %v1364 = vpop.permute.xlu0 %1363
      %1365 = vrot.lane.b32.xlu0 %v403, 24
      %v1366 = vpop.permute.xlu0 %1365
      %1367 = vrot.lane.b32.xlu0 %v405, 24
      %v1368 = vpop.permute.xlu0 %1367
      %1369 = vrot.lane.b32.xlu0 %v406, 24
      %v1370 = vpop.permute.xlu0 %1369
      %1371 = vrot.lane.b32.xlu0 %v408, 24
      %v1372 = vpop.permute.xlu0 %1371
      %1373 = vrot.lane.b32.xlu0 %v409, 24
      %v1374 = vpop.permute.xlu0 %1373
      %1375 = vrot.lane.b32.xlu0 %v411, 24
      %v1376 = vpop.permute.xlu0 %1375
      %1377 = vrot.lane.b32.xlu0 %v412, 24
      %v1378 = vpop.permute.xlu0 %1377
      %1379 = vrot.lane.b32.xlu0 %v414, 24
      %v1380 = vpop.permute.xlu0 %1379
      %1381 = vrot.lane.b32.xlu0 %v415, 24
      %v1382 = vpop.permute.xlu0 %1381
      %vm1415 = vcmask 228544
      %1416 = vst.msk [vmem:[#allocation3] sm:$0xff] %vm1415, %v1320
      %1417 = vst.msk [vmem:[#allocation3 + $0x8] sm:$0xff] %vm1415, %v1322
      %1418 = vst.msk [vmem:[#allocation3 + $0x10] sm:$0xff] %vm1415, %v1324
      %1419 = vst.msk [vmem:[#allocation3 + $0x18] sm:$0xff] %vm1415, %v1326
      %1420 = vst.msk [vmem:[#allocation3 + $0x20] sm:$0xff] %vm1415, %v1328
      %1421 = vst.msk [vmem:[#allocation3 + $0x28] sm:$0xff] %vm1415, %v1330
      %1422 = vst.msk [vmem:[#allocation3 + $0x30] sm:$0xff] %vm1415, %v1332
      %1423 = vst.msk [vmem:[#allocation3 + $0x38] sm:$0xff] %vm1415, %v1334
      %1424 = vst.msk [vmem:[#allocation3 + $0x40] sm:$0xff] %vm1415, %v1336
      %1425 = vst.msk [vmem:[#allocation3 + $0x48] sm:$0xff] %vm1415, %v1338
      %1426 = vst.msk [vmem:[#allocation3 + $0x50] sm:$0xff] %vm1415, %v1340
      %1427 = vst.msk [vmem:[#allocation3 + $0x58] sm:$0xff] %vm1415, %v1342
      %1428 = vst.msk [vmem:[#allocation3 + $0x60] sm:$0xff] %vm1415, %v1344
      %1429 = vst.msk [vmem:[#allocation3 + $0x68] sm:$0xff] %vm1415, %v1346
      %1430 = vst.msk [vmem:[#allocation3 + $0x70] sm:$0xff] %vm1415, %v1348
      %1431 = vst.msk [vmem:[#allocation3 + $0x78] sm:$0xff] %vm1415, %v1350
      %1432 = vst.msk [vmem:[#allocation3 + $0x80] sm:$0xff] %vm1415, %v1352
      %1433 = vst.msk [vmem:[#allocation3 + $0x88] sm:$0xff] %vm1415, %v1354
      %1434 = vst.msk [vmem:[#allocation3 + $0x90] sm:$0xff] %vm1415, %v1356
      %1435 = vst.msk [vmem:[#allocation3 + $0x98] sm:$0xff] %vm1415, %v1358
      %1436 = vst.msk [vmem:[#allocation3 + $0xa0] sm:$0xff] %vm1415, %v1360
      %1437 = vst.msk [vmem:[#allocation3 + $0xa8] sm:$0xff] %vm1415, %v1362
      %1438 = vst.msk [vmem:[#allocation3 + $0xb0] sm:$0xff] %vm1415, %v1364
      %1439 = vst.msk [vmem:[#allocation3 + $0xb8] sm:$0xff] %vm1415, %v1366
      %1440 = vst.msk [vmem:[#allocation3 + $0xc0] sm:$0xff] %vm1415, %v1368
      %1441 = vst.msk [vmem:[#allocation3 + $0xc8] sm:$0xff] %vm1415, %v1370
      %1442 = vst.msk [vmem:[#allocation3 + $0xd0] sm:$0xff] %vm1415, %v1372
      %1443 = vst.msk [vmem:[#allocation3 + $0xd8] sm:$0xff] %vm1415, %v1374
      %1444 = vst.msk [vmem:[#allocation3 + $0xe0] sm:$0xff] %vm1415, %v1376
      %1445 = vst.msk [vmem:[#allocation3 + $0xe8] sm:$0xff] %vm1415, %v1378
      %1446 = vst.msk [vmem:[#allocation3 + $0xf0] sm:$0xff] %vm1415, %v1380
      %1447 = vst.msk [vmem:[#allocation3 + $0xf8] sm:$0xff] %vm1415, %v1382
      %v1449 = vrot.slane %v414, 1
      %v1450 = vrot.slane %v415, 1
      %v1451 = vsel %vm497, %v1449, %v1450
      %v1452 = vrot.slane %v416, 1
      %v1453 = vsel %vm497, %v1450, %v1452
      %1454 = vrot.lane.b32.xlu0 %v510, 28
      %v1455 = vpop.permute.xlu0 %1454
      %1456 = vrot.lane.b32.xlu0 %v512, 28
      %v1457 = vpop.permute.xlu0 %1456
      %1458 = vrot.lane.b32.xlu0 %v515, 28
      %v1459 = vpop.permute.xlu0 %1458
      %1460 = vrot.lane.b32.xlu0 %v517, 28
      %v1461 = vpop.permute.xlu0 %1460
      %1462 = vrot.lane.b32.xlu0 %v520, 28
      %v1463 = vpop.permute.xlu0 %1462
      %1464 = vrot.lane.b32.xlu0 %v522, 28
      %v1465 = vpop.permute.xlu0 %1464
      %1466 = vrot.lane.b32.xlu0 %v525, 28
      %v1467 = vpop.permute.xlu0 %1466
      %1468 = vrot.lane.b32.xlu0 %v527, 28
      %v1469 = vpop.permute.xlu0 %1468
      %1470 = vrot.lane.b32.xlu0 %v530, 28
      %v1471 = vpop.permute.xlu0 %1470
      %1472 = vrot.lane.b32.xlu0 %v532, 28
      %v1473 = vpop.permute.xlu0 %1472
      %1474 = vrot.lane.b32.xlu0 %v535, 28
      %v1475 = vpop.permute.xlu0 %1474
      %1476 = vrot.lane.b32.xlu0 %v537, 28
      %v1477 = vpop.permute.xlu0 %1476
      %1478 = vrot.lane.b32.xlu0 %v540, 28
      %v1479 = vpop.permute.xlu0 %1478
      %1480 = vrot.lane.b32.xlu0 %v542, 28
      %v1481 = vpop.permute.xlu0 %1480
      %1482 = vrot.lane.b32.xlu0 %v545, 28
      %v1483 = vpop.permute.xlu0 %1482
      %1484 = vrot.lane.b32.xlu0 %v547, 28
      %v1485 = vpop.permute.xlu0 %1484
      %1486 = vrot.lane.b32.xlu0 %v550, 28
      %v1487 = vpop.permute.xlu0 %1486
      %1488 = vrot.lane.b32.xlu0 %v552, 28
      %v1489 = vpop.permute.xlu0 %1488
      %1490 = vrot.lane.b32.xlu0 %v555, 28
      %v1491 = vpop.permute.xlu0 %1490
      %1492 = vrot.lane.b32.xlu0 %v557, 28
      %v1493 = vpop.permute.xlu0 %1492
      %1494 = vrot.lane.b32.xlu0 %v560, 28
      %v1495 = vpop.permute.xlu0 %1494
      %1496 = vrot.lane.b32.xlu0 %v562, 28
      %v1497 = vpop.permute.xlu0 %1496
      %1498 = vrot.lane.b32.xlu0 %v565, 28
      %v1499 = vpop.permute.xlu0 %1498
      %1500 = vrot.lane.b32.xlu0 %v567, 28
      %v1501 = vpop.permute.xlu0 %1500
      %1502 = vrot.lane.b32.xlu0 %v570, 28
      %v1503 = vpop.permute.xlu0 %1502
      %1504 = vrot.lane.b32.xlu0 %v572, 28
      %v1505 = vpop.permute.xlu0 %1504
      %1506 = vrot.lane.b32.xlu0 %v575, 28
      %v1507 = vpop.permute.xlu0 %1506
      %1508 = vrot.lane.b32.xlu0 %v577, 28
      %v1509 = vpop.permute.xlu0 %1508
      %1510 = vrot.lane.b32.xlu0 %v1051, 28
      %v1511 = vpop.permute.xlu0 %1510
      %1512 = vrot.lane.b32.xlu0 %v1053, 28
      %v1513 = vpop.permute.xlu0 %1512
      %1514 = vrot.lane.b32.xlu0 %v1451, 28
      %v1515 = vpop.permute.xlu0 %1514
      %1516 = vrot.lane.b32.xlu0 %v1453, 28
      %v1517 = vpop.permute.xlu0 %1516
      %vm1550 = vcmask 261344
      %1551 = vst.msk [vmem:[#allocation3] sm:$0xff] %vm1550, %v1455
      %1552 = vst.msk [vmem:[#allocation3 + $0x8] sm:$0xff] %vm1550, %v1457
      %1553 = vst.msk [vmem:[#allocation3 + $0x10] sm:$0xff] %vm1550, %v1459
      %1554 = vst.msk [vmem:[#allocation3 + $0x18] sm:$0xff] %vm1550, %v1461
      %1555 = vst.msk [vmem:[#allocation3 + $0x20] sm:$0xff] %vm1550, %v1463
      %1556 = vst.msk [vmem:[#allocation3 + $0x28] sm:$0xff] %vm1550, %v1465
      %1557 = vst.msk [vmem:[#allocation3 + $0x30] sm:$0xff] %vm1550, %v1467
      %1558 = vst.msk [vmem:[#allocation3 + $0x38] sm:$0xff] %vm1550, %v1469
      %1559 = vst.msk [vmem:[#allocation3 + $0x40] sm:$0xff] %vm1550, %v1471
      %1560 = vst.msk [vmem:[#allocation3 + $0x48] sm:$0xff] %vm1550, %v1473
      %1561 = vst.msk [vmem:[#allocation3 + $0x50] sm:$0xff] %vm1550, %v1475
      %1562 = vst.msk [vmem:[#allocation3 + $0x58] sm:$0xff] %vm1550, %v1477
      %1563 = vst.msk [vmem:[#allocation3 + $0x60] sm:$0xff] %vm1550, %v1479
      %1564 = vst.msk [vmem:[#allocation3 + $0x68] sm:$0xff] %vm1550, %v1481
      %1565 = vst.msk [vmem:[#allocation3 + $0x70] sm:$0xff] %vm1550, %v1483
      %1566 = vst.msk [vmem:[#allocation3 + $0x78] sm:$0xff] %vm1550, %v1485
      %1567 = vst.msk [vmem:[#allocation3 + $0x80] sm:$0xff] %vm1550, %v1487
      %1568 = vst.msk [vmem:[#allocation3 + $0x88] sm:$0xff] %vm1550, %v1489
      %1569 = vst.msk [vmem:[#allocation3 + $0x90] sm:$0xff] %vm1550, %v1491
      %1570 = vst.msk [vmem:[#allocation3 + $0x98] sm:$0xff] %vm1550, %v1493
      %1571 = vst.msk [vmem:[#allocation3 + $0xa0] sm:$0xff] %vm1550, %v1495
      %1572 = vst.msk [vmem:[#allocation3 + $0xa8] sm:$0xff] %vm1550, %v1497
      %1573 = vst.msk [vmem:[#allocation3 + $0xb0] sm:$0xff] %vm1550, %v1499
      %1574 = vst.msk [vmem:[#allocation3 + $0xb8] sm:$0xff] %vm1550, %v1501
      %1575 = vst.msk [vmem:[#allocation3 + $0xc0] sm:$0xff] %vm1550, %v1503
      %1576 = vst.msk [vmem:[#allocation3 + $0xc8] sm:$0xff] %vm1550, %v1505
      %1577 = vst.msk [vmem:[#allocation3 + $0xd0] sm:$0xff] %vm1550, %v1507
      %1578 = vst.msk [vmem:[#allocation3 + $0xd8] sm:$0xff] %vm1550, %v1509
      %1579 = vst.msk [vmem:[#allocation3 + $0xe0] sm:$0xff] %vm1550, %v1511
      %1580 = vst.msk [vmem:[#allocation3 + $0xe8] sm:$0xff] %vm1550, %v1513
      %1581 = vst.msk [vmem:[#allocation3 + $0xf0] sm:$0xff] %vm1550, %v1515
      %1582 = vst.msk [vmem:[#allocation3 + $0xf8] sm:$0xff] %vm1550, %v1517
      %v1583 = vrot.slane %v414, 2
      %v1584 = vrot.slane %v415, 2
      %v1585 = vsel %vm707, %v1583, %v1584
      %v1586 = vrot.slane %v416, 2
      %v1587 = vsel %vm707, %v1584, %v1586
      %1588 = vrot.lane.b32.xlu0 %v720, 32
      %v1589 = vpop.permute.xlu0 %1588
      %1590 = vrot.lane.b32.xlu0 %v722, 32
      %v1591 = vpop.permute.xlu0 %1590
      %1592 = vrot.lane.b32.xlu0 %v725, 32
      %v1593 = vpop.permute.xlu0 %1592
      %1594 = vrot.lane.b32.xlu0 %v727, 32
      %v1595 = vpop.permute.xlu0 %1594
      %1596 = vrot.lane.b32.xlu0 %v730, 32
      %v1597 = vpop.permute.xlu0 %1596
      %1598 = vrot.lane.b32.xlu0 %v732, 32
      %v1599 = vpop.permute.xlu0 %1598
      %1600 = vrot.lane.b32.xlu0 %v735, 32
      %v1601 = vpop.permute.xlu0 %1600
      %1602 = vrot.lane.b32.xlu0 %v737, 32
      %v1603 = vpop.permute.xlu0 %1602
      %1604 = vrot.lane.b32.xlu0 %v740, 32
      %v1605 = vpop.permute.xlu0 %1604
      %1606 = vrot.lane.b32.xlu0 %v742, 32
      %v1607 = vpop.permute.xlu0 %1606
      %1608 = vrot.lane.b32.xlu0 %v745, 32
      %v1609 = vpop.permute.xlu0 %1608
      %1610 = vrot.lane.b32.xlu0 %v747, 32
      %v1611 = vpop.permute.xlu0 %1610
      %1612 = vrot.lane.b32.xlu0 %v750, 32
      %v1613 = vpop.permute.xlu0 %1612
      %1614 = vrot.lane.b32.xlu0 %v752, 32
      %v1615 = vpop.permute.xlu0 %1614
      %1616 = vrot.lane.b32.xlu0 %v755, 32
      %v1617 = vpop.permute.xlu0 %1616
      %1618 = vrot.lane.b32.xlu0 %v757, 32
      %v1619 = vpop.permute.xlu0 %1618
      %1620 = vrot.lane.b32.xlu0 %v760, 32
      %v1621 = vpop.permute.xlu0 %1620
      %1622 = vrot.lane.b32.xlu0 %v762, 32
      %v1623 = vpop.permute.xlu0 %1622
      %1624 = vrot.lane.b32.xlu0 %v765, 32
      %v1625 = vpop.permute.xlu0 %1624
      %1626 = vrot.lane.b32.xlu0 %v767, 32
      %v1627 = vpop.permute.xlu0 %1626
      %1628 = vrot.lane.b32.xlu0 %v770, 32
      %v1629 = vpop.permute.xlu0 %1628
      %1630 = vrot.lane.b32.xlu0 %v772, 32
      %v1631 = vpop.permute.xlu0 %1630
      %1632 = vrot.lane.b32.xlu0 %v775, 32
      %v1633 = vpop.permute.xlu0 %1632
      %1634 = vrot.lane.b32.xlu0 %v777, 32
      %v1635 = vpop.permute.xlu0 %1634
      %1636 = vrot.lane.b32.xlu0 %v780, 32
      %v1637 = vpop.permute.xlu0 %1636
      %1638 = vrot.lane.b32.xlu0 %v782, 32
      %v1639 = vpop.permute.xlu0 %1638
      %1640 = vrot.lane.b32.xlu0 %v785, 32
      %v1641 = vpop.permute.xlu0 %1640
      %1642 = vrot.lane.b32.xlu0 %v787, 32
      %v1643 = vpop.permute.xlu0 %1642
      %1644 = vrot.lane.b32.xlu0 %v1185, 32
      %v1645 = vpop.permute.xlu0 %1644
      %1646 = vrot.lane.b32.xlu0 %v1187, 32
      %v1647 = vpop.permute.xlu0 %1646
      %1648 = vrot.lane.b32.xlu0 %v1585, 32
      %v1649 = vpop.permute.xlu0 %1648
      %1650 = vrot.lane.b32.xlu0 %v1587, 32
      %v1651 = vpop.permute.xlu0 %1650
      %vm1684 = vcmask 294144
      %1685 = vst.msk [vmem:[#allocation3] sm:$0xff] %vm1684, %v1589
      %1686 = vst.msk [vmem:[#allocation3 + $0x8] sm:$0xff] %vm1684, %v1591
      %1687 = vst.msk [vmem:[#allocation3 + $0x10] sm:$0xff] %vm1684, %v1593
      %1688 = vst.msk [vmem:[#allocation3 + $0x18] sm:$0xff] %vm1684, %v1595
      %1689 = vst.msk [vmem:[#allocation3 + $0x20] sm:$0xff] %vm1684, %v1597
      %1690 = vst.msk [vmem:[#allocation3 + $0x28] sm:$0xff] %vm1684, %v1599
      %1691 = vst.msk [vmem:[#allocation3 + $0x30] sm:$0xff] %vm1684, %v1601
      %1692 = vst.msk [vmem:[#allocation3 + $0x38] sm:$0xff] %vm1684, %v1603
      %1693 = vst.msk [vmem:[#allocation3 + $0x40] sm:$0xff] %vm1684, %v1605
      %1694 = vst.msk [vmem:[#allocation3 + $0x48] sm:$0xff] %vm1684, %v1607
      %1695 = vst.msk [vmem:[#allocation3 + $0x50] sm:$0xff] %vm1684, %v1609
      %1696 = vst.msk [vmem:[#allocation3 + $0x58] sm:$0xff] %vm1684, %v1611
      %1697 = vst.msk [vmem:[#allocation3 + $0x60] sm:$0xff] %vm1684, %v1613
      %1698 = vst.msk [vmem:[#allocation3 + $0x68] sm:$0xff] %vm1684, %v1615
      %1699 = vst.msk [vmem:[#allocation3 + $0x70] sm:$0xff] %vm1684, %v1617
      %1700 = vst.msk [vmem:[#allocation3 + $0x78] sm:$0xff] %vm1684, %v1619
      %1701 = vst.msk [vmem:[#allocation3 + $0x80] sm:$0xff] %vm1684, %v1621
      %1702 = vst.msk [vmem:[#allocation3 + $0x88] sm:$0xff] %vm1684, %v1623
      %1703 = vst.msk [vmem:[#allocation3 + $0x90] sm:$0xff] %vm1684, %v1625
      %1704 = vst.msk [vmem:[#allocation3 + $0x98] sm:$0xff] %vm1684, %v1627
      %1705 = vst.msk [vmem:[#allocation3 + $0xa0] sm:$0xff] %vm1684, %v1629
      %1706 = vst.msk [vmem:[#allocation3 + $0xa8] sm:$0xff] %vm1684, %v1631
      %1707 = vst.msk [vmem:[#allocation3 + $0xb0] sm:$0xff] %vm1684, %v1633
      %1708 = vst.msk [vmem:[#allocation3 + $0xb8] sm:$0xff] %vm1684, %v1635
      %1709 = vst.msk [vmem:[#allocation3 + $0xc0] sm:$0xff] %vm1684, %v1637
      %1710 = vst.msk [vmem:[#allocation3 + $0xc8] sm:$0xff] %vm1684, %v1639
      %1711 = vst.msk [vmem:[#allocation3 + $0xd0] sm:$0xff] %vm1684, %v1641
      %1712 = vst.msk [vmem:[#allocation3 + $0xd8] sm:$0xff] %vm1684, %v1643
      %1713 = vst.msk [vmem:[#allocation3 + $0xe0] sm:$0xff] %vm1684, %v1645
      %1714 = vst.msk [vmem:[#allocation3 + $0xe8] sm:$0xff] %vm1684, %v1647
      %1715 = vst.msk [vmem:[#allocation3 + $0xf0] sm:$0xff] %vm1684, %v1649
      %1716 = vst.msk [vmem:[#allocation3 + $0xf8] sm:$0xff] %vm1684, %v1651
      %v1717 = vld [vmem:[#allocation3] sm:$0xff]
      %v1718 = vld [vmem:[#allocation3 + $0x8] sm:$0xff]
      %v1719 = vld [vmem:[#allocation3 + $0x10] sm:$0xff]
      %v1720 = vld [vmem:[#allocation3 + $0x18] sm:$0xff]
      %v1721 = vld [vmem:[#allocation3 + $0x20] sm:$0xff]
      %v1722 = vld [vmem:[#allocation3 + $0x28] sm:$0xff]
      %v1723 = vld [vmem:[#allocation3 + $0x30] sm:$0xff]
      %v1724 = vld [vmem:[#allocation3 + $0x38] sm:$0xff]
      %v1725 = vld [vmem:[#allocation3 + $0x40] sm:$0xff]
      %v1726 = vld [vmem:[#allocation3 + $0x48] sm:$0xff]
      %v1727 = vld [vmem:[#allocation3 + $0x50] sm:$0xff]
      %v1728 = vld [vmem:[#allocation3 + $0x58] sm:$0xff]
      %v1729 = vld [vmem:[#allocation3 + $0x60] sm:$0xff]
      %v1730 = vld [vmem:[#allocation3 + $0x68] sm:$0xff]
      %v1731 = vld [vmem:[#allocation3 + $0x70] sm:$0xff]
      %v1732 = vld [vmem:[#allocation3 + $0x78] sm:$0xff]
      %v1733 = vld [vmem:[#allocation3 + $0x80] sm:$0xff]
      %v1734 = vld [vmem:[#allocation3 + $0x88] sm:$0xff]
      %v1735 = vld [vmem:[#allocation3 + $0x90] sm:$0xff]
      %v1736 = vld [vmem:[#allocation3 + $0x98] sm:$0xff]
      %v1737 = vld [vmem:[#allocation3 + $0xa0] sm:$0xff]
      %v1738 = vld [vmem:[#allocation3 + $0xa8] sm:$0xff]
      %v1739 = vld [vmem:[#allocation3 + $0xb0] sm:$0xff]
      %v1740 = vld [vmem:[#allocation3 + $0xb8] sm:$0xff]
      %v1741 = vld [vmem:[#allocation3 + $0xc0] sm:$0xff]
      %v1742 = vld [vmem:[#allocation3 + $0xc8] sm:$0xff]
      %v1743 = vld [vmem:[#allocation3 + $0xd0] sm:$0xff]
      %v1744 = vld [vmem:[#allocation3 + $0xd8] sm:$0xff]
      %v1745 = vld [vmem:[#allocation3 + $0xe0] sm:$0xff]
      %v1746 = vld [vmem:[#allocation3 + $0xe8] sm:$0xff]
      %v1747 = vld [vmem:[#allocation3 + $0xf0] sm:$0xff]
      %v1748 = vld [vmem:[#allocation3 + $0xf8] sm:$0xff]
      %v1749 = vld [vmem:[%s1] sm:$0xff]
      %v1750 = vld [vmem:[%s1 + $0x8] sm:$0xff]
      %v1751 = vld [vmem:[%s1 + $0x10] sm:$0xff]
      %v1752 = vld [vmem:[%s1 + $0x18] sm:$0xff]
      %v1753 = vld [vmem:[%s1 + $0x20] sm:$0xf]
      %v1754 = vld [vmem:[%s2] sm:$0x1]
      %v1756 = vperm.slane %v1754, 0
      %vm1758 = vcmask 293888
      %v1760 = vsel %vm1758, %v1717, 0
      %v1763 = vsel %vm1758, %v1718, 0
      %v1766 = vsel %vm1758, %v1719, 0
      %v1769 = vsel %vm1758, %v1720, 0
      %v1772 = vsel %vm1758, %v1721, 0
      %v1775 = vsel %vm1758, %v1722, 0
      %v1778 = vsel %vm1758, %v1723, 0
      %v1781 = vsel %vm1758, %v1724, 0
      %v1784 = vsel %vm1758, %v1725, 0
      %v1787 = vsel %vm1758, %v1726, 0
      %v1790 = vsel %vm1758, %v1727, 0
      %v1793 = vsel %vm1758, %v1728, 0
      %v1796 = vsel %vm1758, %v1729, 0
      %v1799 = vsel %vm1758, %v1730, 0
      %v1802 = vsel %vm1758, %v1731, 0
      %v1805 = vsel %vm1758, %v1732, 0
      %v1808 = vsel %vm1758, %v1733, 0
      %v1811 = vsel %vm1758, %v1734, 0
      %v1814 = vsel %vm1758, %v1735, 0
      %v1817 = vsel %vm1758, %v1736, 0
      %v1820 = vsel %vm1758, %v1737, 0
      %v1823 = vsel %vm1758, %v1738, 0
      %v1826 = vsel %vm1758, %v1739, 0
      %v1829 = vsel %vm1758, %v1740, 0
      %v1832 = vsel %vm1758, %v1741, 0
      %v1835 = vsel %vm1758, %v1742, 0
      %v1838 = vsel %vm1758, %v1743, 0
      %v1841 = vsel %vm1758, %v1744, 0
      %v1844 = vsel %vm1758, %v1745, 0
      %v1847 = vsel %vm1758, %v1746, 0
      %v1850 = vsel %vm1758, %v1747, 0
      %v1853 = vsel %vm1758, %v1748, 0
      %vm1855 = vcmask 1043456
      %v1857 = vsel %vm1855, %v1753, 0
      %1859 = vmatpush.msra.mxu0 0.0
      %1860 = vmatpush.msra.mxu0 0.0
      %1861 = vmatpush.msra.mxu0 0.0
      %1862 = vmatpush.msra.mxu0 0.0
      %1863 = vmatpush.msra.mxu0 0.0
      %1864 = vmatpush.msra.mxu0 0.0
      %1865 = vmatpush.msra.mxu0 0.0
      %1866 = vmatpush.msra.mxu0 0.0
      %1867 = vmatpush.msra.mxu0 0.0
      %1868 = vmatpush.msra.mxu0 0.0
      %1869 = vmatpush.msra.mxu0 0.0
      %1870 = vmatpush.msra.mxu0 %v1857
      %1871 = vmatpush.msra.mxu0 %v1752
      %1872 = vmatpush.msra.mxu0 %v1751
      %1873 = vmatpush.msra.mxu0 %v1750
      %1874 = vmatpush.msra.mxu0 %v1749
      %1875 = vmatmul.f32.gmra.mxu0 %v1760
      %v1876 = vpop.f32.mrf.mxu0
      %v1877 = vadd.f32 %v1756, %v1876
      %1878 = vmatmul.f32.gmra.mxu0 %v1763
      %v1879 = vpop.f32.mrf.mxu0
      %v1880 = vadd.f32 %v1756, %v1879
      %1881 = vmatmul.f32.gmra.mxu0 %v1766
      %v1882 = vpop.f32.mrf.mxu0
      %v1883 = vadd.f32 %v1756, %v1882
      %1884 = vmatmul.f32.gmra.mxu0 %v1769
      %v1885 = vpop.f32.mrf.mxu0
      %v1886 = vadd.f32 %v1756, %v1885
      %1887 = vmatmul.f32.gmra.mxu0 %v1772
      %v1888 = vpop.f32.mrf.mxu0
      %v1889 = vadd.f32 %v1756, %v1888
      %1890 = vmatmul.f32.gmra.mxu0 %v1775
      %v1891 = vpop.f32.mrf.mxu0
      %v1892 = vadd.f32 %v1756, %v1891
      %1893 = vmatmul.f32.gmra.mxu0 %v1778
      %v1894 = vpop.f32.mrf.mxu0
      %v1895 = vadd.f32 %v1756, %v1894
      %1896 = vmatmul.f32.gmra.mxu0 %v1781
      %v1897 = vpop.f32.mrf.mxu0
      %v1898 = vadd.f32 %v1756, %v1897
      %1899 = vmatmul.f32.gmra.mxu0 %v1784
      %v1900 = vpop.f32.mrf.mxu0
      %v1901 = vadd.f32 %v1756, %v1900
      %1902 = vmatmul.f32.gmra.mxu0 %v1787
      %v1903 = vpop.f32.mrf.mxu0
      %v1904 = vadd.f32 %v1756, %v1903
      %1905 = vmatmul.f32.gmra.mxu0 %v1790
      %v1906 = vpop.f32.mrf.mxu0
      %v1907 = vadd.f32 %v1756, %v1906
      %1908 = vmatmul.f32.gmra.mxu0 %v1793
      %v1909 = vpop.f32.mrf.mxu0
      %v1910 = vadd.f32 %v1756, %v1909
      %1911 = vmatmul.f32.gmra.mxu0 %v1796
      %v1912 = vpop.f32.mrf.mxu0
      %v1913 = vadd.f32 %v1756, %v1912
      %1914 = vmatmul.f32.gmra.mxu0 %v1799
      %v1915 = vpop.f32.mrf.mxu0
      %v1916 = vadd.f32 %v1756, %v1915
      %1917 = vmatmul.f32.gmra.mxu0 %v1802
      %v1918 = vpop.f32.mrf.mxu0
      %v1919 = vadd.f32 %v1756, %v1918
      %1920 = vmatmul.f32.gmra.mxu0 %v1805
      %v1921 = vpop.f32.mrf.mxu0
      %v1922 = vadd.f32 %v1756, %v1921
      %1923 = vmatmul.f32.gmra.mxu0 %v1808
      %v1924 = vpop.f32.mrf.mxu0
      %v1925 = vadd.f32 %v1756, %v1924
      %1926 = vmatmul.f32.gmra.mxu0 %v1811
      %v1927 = vpop.f32.mrf.mxu0
      %v1928 = vadd.f32 %v1756, %v1927
      %1929 = vmatmul.f32.gmra.mxu0 %v1814
      %v1930 = vpop.f32.mrf.mxu0
      %v1931 = vadd.f32 %v1756, %v1930
      %1932 = vmatmul.f32.gmra.mxu0 %v1817
      %v1933 = vpop.f32.mrf.mxu0
      %v1934 = vadd.f32 %v1756, %v1933
      %1935 = vmatmul.f32.gmra.mxu0 %v1820
      %v1936 = vpop.f32.mrf.mxu0
      %v1937 = vadd.f32 %v1756, %v1936
      %1938 = vmatmul.f32.gmra.mxu0 %v1823
      %v1939 = vpop.f32.mrf.mxu0
      %v1940 = vadd.f32 %v1756, %v1939
      %1941 = vmatmul.f32.gmra.mxu0 %v1826
      %v1942 = vpop.f32.mrf.mxu0
      %v1943 = vadd.f32 %v1756, %v1942
      %1944 = vmatmul.f32.gmra.mxu0 %v1829
      %v1945 = vpop.f32.mrf.mxu0
      %v1946 = vadd.f32 %v1756, %v1945
      %1947 = vmatmul.f32.gmra.mxu0 %v1832
      %v1948 = vpop.f32.mrf.mxu0
      %v1949 = vadd.f32 %v1756, %v1948
      %1950 = vmatmul.f32.gmra.mxu0 %v1835
      %v1951 = vpop.f32.mrf.mxu0
      %v1952 = vadd.f32 %v1756, %v1951
      %1953 = vmatmul.f32.gmra.mxu0 %v1838
      %v1954 = vpop.f32.mrf.mxu0
      %v1955 = vadd.f32 %v1756, %v1954
      %1956 = vmatmul.f32.gmra.mxu0 %v1841
      %v1957 = vpop.f32.mrf.mxu0
      %v1958 = vadd.f32 %v1756, %v1957
      %1959 = vmatmul.f32.gmra.mxu0 %v1844
      %v1960 = vpop.f32.mrf.mxu0
      %v1961 = vadd.f32 %v1756, %v1960
      %1962 = vmatmul.f32.gmra.mxu0 %v1847
      %v1963 = vpop.f32.mrf.mxu0
      %v1964 = vadd.f32 %v1756, %v1963
      %1965 = vmatmul.f32.gmra.mxu0 %v1850
      %v1966 = vpop.f32.mrf.mxu0
      %v1967 = vadd.f32 %v1756, %v1966
      %1968 = vmatmul.f32.gmra.mxu0 %v1853
      %v1969 = vpop.f32.mrf.mxu0
      %v1970 = vadd.f32 %v1756, %v1969
      %1971 = vdwg.mxu0
      %vm1972 = vcmask 64512
      %1973 = vst.msk [vmem:[%s235] sm:$0xff] %vm1972, %v1877
      %1974 = vst.msk [vmem:[%s235 + $0x8] sm:$0xff] %vm1972, %v1880
      %1975 = vst.msk [vmem:[%s235 + $0x10] sm:$0xff] %vm1972, %v1883
      %1976 = vst.msk [vmem:[%s235 + $0x18] sm:$0xff] %vm1972, %v1886
      %1977 = vst.msk [vmem:[%s235 + $0x20] sm:$0xff] %vm1972, %v1889
      %1978 = vst.msk [vmem:[%s235 + $0x28] sm:$0xff] %vm1972, %v1892
      %1979 = vst.msk [vmem:[%s235 + $0x30] sm:$0xff] %vm1972, %v1895
      %1980 = vst.msk [vmem:[%s235 + $0x38] sm:$0xff] %vm1972, %v1898
      %1981 = vst.msk [vmem:[%s235 + $0x40] sm:$0xff] %vm1972, %v1901
      %1982 = vst.msk [vmem:[%s235 + $0x48] sm:$0xff] %vm1972, %v1904
      %1983 = vst.msk [vmem:[%s235 + $0x50] sm:$0xff] %vm1972, %v1907
      %1984 = vst.msk [vmem:[%s235 + $0x58] sm:$0xff] %vm1972, %v1910
      %1985 = vst.msk [vmem:[%s235 + $0x60] sm:$0xff] %vm1972, %v1913
      %1986 = vst.msk [vmem:[%s235 + $0x68] sm:$0xff] %vm1972, %v1916
      %1987 = vst.msk [vmem:[%s235 + $0x70] sm:$0xff] %vm1972, %v1919
      %1988 = vst.msk [vmem:[%s235 + $0x78] sm:$0xff] %vm1972, %v1922
      %1989 = vst.msk [vmem:[%s235 + $0x80] sm:$0xff] %vm1972, %v1925
      %1990 = vst.msk [vmem:[%s235 + $0x88] sm:$0xff] %vm1972, %v1928
      %1991 = vst.msk [vmem:[%s235 + $0x90] sm:$0xff] %vm1972, %v1931
      %1992 = vst.msk [vmem:[%s235 + $0x98] sm:$0xff] %vm1972, %v1934
      %1993 = vst.msk [vmem:[%s235 + $0xa0] sm:$0xff] %vm1972, %v1937
      %1994 = vst.msk [vmem:[%s235 + $0xa8] sm:$0xff] %vm1972, %v1940
      %1995 = vst.msk [vmem:[%s235 + $0xb0] sm:$0xff] %vm1972, %v1943
      %1996 = vst.msk [vmem:[%s235 + $0xb8] sm:$0xff] %vm1972, %v1946
      %1997 = vst.msk [vmem:[%s235 + $0xc0] sm:$0xff] %vm1972, %v1949
      %1998 = vst.msk [vmem:[%s235 + $0xc8] sm:$0xff] %vm1972, %v1952
      %1999 = vst.msk [vmem:[%s235 + $0xd0] sm:$0xff] %vm1972, %v1955
      %2000 = vst.msk [vmem:[%s235 + $0xd8] sm:$0xff] %vm1972, %v1958
      %2001 = vst.msk [vmem:[%s235 + $0xe0] sm:$0xff] %vm1972, %v1961
      %2002 = vst.msk [vmem:[%s235 + $0xe8] sm:$0xff] %vm1972, %v1964
      %2003 = vst.msk [vmem:[%s235 + $0xf0] sm:$0xff] %vm1972, %v1967
      %2004 = vst.msk [vmem:[%s235 + $0xf8] sm:$0xff] %vm1972, %v1970
      %v2005 = vsel %vm1972, %v1877, 0.0
      %v2006 = vsel %vm1972, %v1880, 0.0
      %v2007 = vadd.f32 %v2005, %v2006
      %v2008 = vsel %vm1972, %v1883, 0.0
      %v2009 = vadd.f32 %v2007, %v2008
      %v2010 = vsel %vm1972, %v1886, 0.0
      %v2011 = vadd.f32 %v2009, %v2010
      %v2012 = vsel %vm1972, %v1889, 0.0
      %v2013 = vadd.f32 %v2011, %v2012
      %v2014 = vsel %vm1972, %v1892, 0.0
      %v2015 = vadd.f32 %v2013, %v2014
      %v2016 = vsel %vm1972, %v1895, 0.0
      %v2017 = vadd.f32 %v2015, %v2016
      %v2018 = vsel %vm1972, %v1898, 0.0
      %v2019 = vadd.f32 %v2017, %v2018
      %v2020 = vsel %vm1972, %v1901, 0.0
      %v2021 = vadd.f32 %v2019, %v2020
      %v2022 = vsel %vm1972, %v1904, 0.0
      %v2023 = vadd.f32 %v2021, %v2022
      %v2024 = vsel %vm1972, %v1907, 0.0
      %v2025 = vadd.f32 %v2023, %v2024
      %v2026 = vsel %vm1972, %v1910, 0.0
      %v2027 = vadd.f32 %v2025, %v2026
      %v2028 = vsel %vm1972, %v1913, 0.0
      %v2029 = vadd.f32 %v2027, %v2028
      %v2030 = vsel %vm1972, %v1916, 0.0
      %v2031 = vadd.f32 %v2029, %v2030
      %v2032 = vsel %vm1972, %v1919, 0.0
      %v2033 = vadd.f32 %v2031, %v2032
      %v2034 = vsel %vm1972, %v1922, 0.0
      %v2035 = vadd.f32 %v2033, %v2034
      %v2036 = vsel %vm1972, %v1925, 0.0
      %v2037 = vadd.f32 %v2035, %v2036
      %v2038 = vsel %vm1972, %v1928, 0.0
      %v2039 = vadd.f32 %v2037, %v2038
      %v2040 = vsel %vm1972, %v1931, 0.0
      %v2041 = vadd.f32 %v2039, %v2040
      %v2042 = vsel %vm1972, %v1934, 0.0
      %v2043 = vadd.f32 %v2041, %v2042
      %v2044 = vsel %vm1972, %v1937, 0.0
      %v2045 = vadd.f32 %v2043, %v2044
      %v2046 = vsel %vm1972, %v1940, 0.0
      %v2047 = vadd.f32 %v2045, %v2046
      %v2048 = vsel %vm1972, %v1943, 0.0
      %v2049 = vadd.f32 %v2047, %v2048
      %v2050 = vsel %vm1972, %v1946, 0.0
      %v2051 = vadd.f32 %v2049, %v2050
      %v2052 = vsel %vm1972, %v1949, 0.0
      %v2053 = vadd.f32 %v2051, %v2052
      %v2054 = vsel %vm1972, %v1952, 0.0
      %v2055 = vadd.f32 %v2053, %v2054
      %v2056 = vsel %vm1972, %v1955, 0.0
      %v2057 = vadd.f32 %v2055, %v2056
      %v2058 = vsel %vm1972, %v1958, 0.0
      %v2059 = vadd.f32 %v2057, %v2058
      %v2060 = vsel %vm1972, %v1961, 0.0
      %v2061 = vadd.f32 %v2059, %v2060
      %v2062 = vsel %vm1972, %v1964, 0.0
      %v2063 = vadd.f32 %v2061, %v2062
      %v2064 = vsel %vm1972, %v1967, 0.0
      %v2065 = vadd.f32 %v2063, %v2064
      %v2066 = vsel %vm1972, %v1970, 0.0
      %v2067 = vadd.f32 %v2065, %v2066
      %v2068 = vrot.slane %v2067, 4
      %v2069 = vadd.f32 %v2067, %v2068
      %v2070 = vrot.slane %v2069, 2
      %v2071 = vadd.f32 %v2069, %v2070
      %v2072 = vrot.slane %v2071, 1
      %v2073 = vadd.f32 %v2071, %v2072
      %vm2074 = vcmask 57344
      %2075 = vst.msk [vmem:[%s238] sm:$0x1] %vm2074, %v2073
      %v2076 = vmul.f32 %v1877, %v1877
      %v2077 = vmul.f32 %v1880, %v1880
      %v2078 = vmul.f32 %v1883, %v1883
      %v2079 = vmul.f32 %v1886, %v1886
      %v2080 = vmul.f32 %v1889, %v1889
      %v2081 = vmul.f32 %v1892, %v1892
      %v2082 = vmul.f32 %v1895, %v1895
      %v2083 = vmul.f32 %v1898, %v1898
      %v2084 = vmul.f32 %v1901, %v1901
      %v2085 = vmul.f32 %v1904, %v1904
      %v2086 = vmul.f32 %v1907, %v1907
      %v2087 = vmul.f32 %v1910, %v1910
      %v2088 = vmul.f32 %v1913, %v1913
      %v2089 = vmul.f32 %v1916, %v1916
      %v2090 = vmul.f32 %v1919, %v1919
      %v2091 = vmul.f32 %v1922, %v1922
      %v2092 = vmul.f32 %v1925, %v1925
      %v2093 = vmul.f32 %v1928, %v1928
      %v2094 = vmul.f32 %v1931, %v1931
      %v2095 = vmul.f32 %v1934, %v1934
      %v2096 = vmul.f32 %v1937, %v1937
      %v2097 = vmul.f32 %v1940, %v1940
      %v2098 = vmul.f32 %v1943, %v1943
      %v2099 = vmul.f32 %v1946, %v1946
      %v2100 = vmul.f32 %v1949, %v1949
      %v2101 = vmul.f32 %v1952, %v1952
      %v2102 = vmul.f32 %v1955, %v1955
      %v2103 = vmul.f32 %v1958, %v1958
      %v2104 = vmul.f32 %v1961, %v1961
      %v2105 = vmul.f32 %v1964, %v1964
      %v2106 = vmul.f32 %v1967, %v1967
      %v2107 = vmul.f32 %v1970, %v1970
      %v2108 = vsel %vm1972, %v2076, 0.0
      %v2109 = vsel %vm1972, %v2077, 0.0
      %v2110 = vadd.f32 %v2108, %v2109
      %v2111 = vsel %vm1972, %v2078, 0.0
      %v2112 = vadd.f32 %v2110, %v2111
      %v2113 = vsel %vm1972, %v2079, 0.0
      %v2114 = vadd.f32 %v2112, %v2113
      %v2115 = vsel %vm1972, %v2080, 0.0
      %v2116 = vadd.f32 %v2114, %v2115
      %v2117 = vsel %vm1972, %v2081, 0.0
      %v2118 = vadd.f32 %v2116, %v2117
      %v2119 = vsel %vm1972, %v2082, 0.0
      %v2120 = vadd.f32 %v2118, %v2119
      %v2121 = vsel %vm1972, %v2083, 0.0
      %v2122 = vadd.f32 %v2120, %v2121
      %v2123 = vsel %vm1972, %v2084, 0.0
      %v2124 = vadd.f32 %v2122, %v2123
      %v2125 = vsel %vm1972, %v2085, 0.0
      %v2126 = vadd.f32 %v2124, %v2125
      %v2127 = vsel %vm1972, %v2086, 0.0
      %v2128 = vadd.f32 %v2126, %v2127
      %v2129 = vsel %vm1972, %v2087, 0.0
      %v2130 = vadd.f32 %v2128, %v2129
      %v2131 = vsel %vm1972, %v2088, 0.0
      %v2132 = vadd.f32 %v2130, %v2131
      %v2133 = vsel %vm1972, %v2089, 0.0
      %v2134 = vadd.f32 %v2132, %v2133
      %v2135 = vsel %vm1972, %v2090, 0.0
      %v2136 = vadd.f32 %v2134, %v2135
      %v2137 = vsel %vm1972, %v2091, 0.0
      %v2138 = vadd.f32 %v2136, %v2137
      %v2139 = vsel %vm1972, %v2092, 0.0
      %v2140 = vadd.f32 %v2138, %v2139
      %v2141 = vsel %vm1972, %v2093, 0.0
      %v2142 = vadd.f32 %v2140, %v2141
      %v2143 = vsel %vm1972, %v2094, 0.0
      %v2144 = vadd.f32 %v2142, %v2143
      %v2145 = vsel %vm1972, %v2095, 0.0
      %v2146 = vadd.f32 %v2144, %v2145
      %v2147 = vsel %vm1972, %v2096, 0.0
      %v2148 = vadd.f32 %v2146, %v2147
      %v2149 = vsel %vm1972, %v2097, 0.0
      %v2150 = vadd.f32 %v2148, %v2149
      %v2151 = vsel %vm1972, %v2098, 0.0
      %v2152 = vadd.f32 %v2150, %v2151
      %v2153 = vsel %vm1972, %v2099, 0.0
      %v2154 = vadd.f32 %v2152, %v2153
      %v2155 = vsel %vm1972, %v2100, 0.0
      %v2156 = vadd.f32 %v2154, %v2155
      %v2157 = vsel %vm1972, %v2101, 0.0
      %v2158 = vadd.f32 %v2156, %v2157
      %v2159 = vsel %vm1972, %v2102, 0.0
      %v2160 = vadd.f32 %v2158, %v2159
      %v2161 = vsel %vm1972, %v2103, 0.0
      %v2162 = vadd.f32 %v2160, %v2161
      %v2163 = vsel %vm1972, %v2104, 0.0
      %v2164 = vadd.f32 %v2162, %v2163
      %v2165 = vsel %vm1972, %v2105, 0.0
      %v2166 = vadd.f32 %v2164, %v2165
      %v2167 = vsel %vm1972, %v2106, 0.0
      %v2168 = vadd.f32 %v2166, %v2167
      %v2169 = vsel %vm1972, %v2107, 0.0
      %v2170 = vadd.f32 %v2168, %v2169
      %v2171 = vrot.slane %v2170, 4
      %v2172 = vadd.f32 %v2170, %v2171
      %v2173 = vrot.slane %v2172, 2
      %v2174 = vadd.f32 %v2172, %v2173
      %v2175 = vrot.slane %v2174, 1
      %v2176 = vadd.f32 %v2174, %v2175
      %2177 = vst.msk [vmem:[%s241] sm:$0x1] %vm2074, %v2176
      %p2178 = scmp.lt.s32.totalorder %s17, 1
      %s2179 = scalar_select %p2178, %s17, 1
      %s2180 = smul.addr %s2179, 32
      %s2181 = smul.addr %s2180, 8
      %s2182 = scalar_lea.vmem %s3, %s2181
      %p2183 = scmp.lt.s32.totalorder %s17, 1
      %s2184 = scalar_select %p2183, %s17, 1
      %s2185 = scalar_lea.vmem %s4, %s2184
      %p2186 = scmp.lt.s32.totalorder %s17, 1
      %s2187 = scalar_select %p2186, %s17, 1
      %s2188 = scalar_lea.vmem %s5, %s2187
      // Predicated region
      $region33: #{double_conv_pallas.3} parent=31 // pred_check
        %p2189 = pneg %p103
      $region34: #{double_conv_pallas.3} parent=31 // pred_check_branch
        %2191 = sbr.rel (%p2189) target = $region36
      $region35: #{double_conv_pallas.3} parent=31 // pred_region
        _
      $region36: #{double_conv_pallas.3} parent=31 // pred_fallthru
        _
      // Predicated region
      $region37: #{double_conv_pallas.3} parent=31 // pred_check
        %p2192 = pneg %p129
      $region38: #{double_conv_pallas.3} parent=31 // pred_check_branch
        %2194 = sbr.rel (%p2192) target = $region40
      $region39: #{double_conv_pallas.3} parent=31 // pred_region
        _
      $region40: #{double_conv_pallas.3} parent=31 // pred_fallthru
        _
      // Predicated region
      $region41: #{double_conv_pallas.3} parent=31 // pred_check
        %p2195 = pneg %p155
      $region42: #{double_conv_pallas.3} parent=31 // pred_check_branch
        %2197 = sbr.rel (%p2195) target = $region44
      $region43: #{double_conv_pallas.3} parent=31 // pred_region
        _
      $region44: #{double_conv_pallas.3} parent=31 // pred_fallthru
        _
    $region32: #{double_conv_pallas.3} parent=5 // pred_fallthru
      _
    %p2198 = scmp.le.s32.totalorder 2, %s12
    // Predicated region
    $region45: #{double_conv_pallas.3} parent=5 // pred_check
      %p2199 = pneg %p2198
    $region46: #{double_conv_pallas.3} parent=5 // pred_check_branch
      %2201 = sbr.rel (%p2199) target = $region48
    $region47: #{double_conv_pallas.3} parent=5 // pred_region
      %s2202 = ssub.s32 %s12, 2
      // Predicated region
      $region49: #{double_conv_pallas.3} parent=47 // pred_check
        %p2203 = pneg %p109
      $region50: #{double_conv_pallas.3} parent=47 // pred_check_branch
        %2205 = sbr.rel (%p2203) target = $region52
      $region51: #{double_conv_pallas.3} parent=47 // pred_region
        %p2206 = scmp.lt.s32.totalorder %s18, 1
        %s2207 = scalar_select %p2206, %s18, 1
        %s2208 = smul.addr %s2207, 32
        %s2209 = smul.addr %s2208, 8
        %s2210 = scalar_lea.vmem %s3, %s2209
      $region52: #{double_conv_pallas.3} parent=47 // pred_fallthru
        _
      // Predicated region
      $region53: #{double_conv_pallas.3} parent=47 // pred_check
        %p2211 = pneg %p135
      $region54: #{double_conv_pallas.3} parent=47 // pred_check_branch
        %2213 = sbr.rel (%p2211) target = $region56
      $region55: #{double_conv_pallas.3} parent=47 // pred_region
        %p2214 = scmp.lt.s32.totalorder %s18, 1
        %s2215 = scalar_select %p2214, %s18, 1
        %s2216 = scalar_lea.vmem %s4, %s2215
      $region56: #{double_conv_pallas.3} parent=47 // pred_fallthru
        _
      // Predicated region
      $region57: #{double_conv_pallas.3} parent=47 // pred_check
        %p2217 = pneg %p161
      $region58: #{double_conv_pallas.3} parent=47 // pred_check_branch
        %2219 = sbr.rel (%p2217) target = $region60
      $region59: #{double_conv_pallas.3} parent=47 // pred_region
        %p2220 = scmp.lt.s32.totalorder %s18, 1
        %s2221 = scalar_select %p2220, %s18, 1
        %s2222 = scalar_lea.vmem %s5, %s2221
      $region60: #{double_conv_pallas.3} parent=47 // pred_fallthru
        _
    $region48: #{double_conv_pallas.3} parent=5 // pred_fallthru
      _
  $region6: #{double_conv_pallas.3} parent=0 // loop_footer
    %s16 = sadd.s32 1, %s12
  $region7: #{double_conv_pallas.3} parent=0 // loop_footer_branch
    %11 = sbr.rel target = $region3
  $region8: #{double_conv_pallas.3} parent=0 // loop_exit
    _

// kernel: double_conv_pallas.4
$region0: #{double_conv_pallas.4}
  #allocation0 [shape = 'u32[]', space=smem, size = 0x4, offset = 0x4, fixed_abs, tag = 'smem constant byte address 0x4 - core index']
  #allocation1 [shape = 'u32[72,128]{1,0:T(1,128)}', space=vmem, size = 0x9000, scoped, tag = 'internal scratch']
  #allocation2 [shape = 'f32[18,18,8]{2,1,0:T(8,128)}', space=vmem, size = 0x36000, scoped, tag = 'scratch operand']
  #allocation3 [shape = 'f32[256,72]{1,0:T(8,128)}', space=vmem, size = 0x20000, scoped, tag = 'scratch operand']
  %s0 = inlined_call_operand.vmem [shape: f32[2,16,16,8], index: 0, kind: input, shape index: {}]
  %s1 = inlined_call_operand.vmem [shape: f32[1,1,1,8], index: 1, kind: input, shape index: {}]
  %s2 = inlined_call_operand.vmem [shape: f32[1,1,1,8], index: 2, kind: input, shape index: {}]
  %s3 = inlined_call_operand.vmem [shape: f32[72,8], index: 3, kind: input, shape index: {}]
  %s4 = inlined_call_operand.vmem [shape: f32[1,8], index: 4, kind: input, shape index: {}]
  %s5 = inlined_call_operand.vmem [shape: f32[2,256,8], index: 5, kind: output, shape index: {0}]
  %s6 = inlined_call_operand.vmem [shape: f32[2,1,8], index: 6, kind: output, shape index: {1}]
  %s7 = inlined_call_operand.vmem [shape: f32[2,1,8], index: 7, kind: output, shape index: {2}]
  %8 = xla_tuple %s5, %s6, %s7
  %s9 = sld [smem:[#allocation0]]
  $region69: #{double_conv_pallas.4} parent=0
    _
  %s11 = ssub.s32 1, %s9
  %s12 = scalar_select 0, %s11, %s9
  loop: start=0, step=1, limit=4
  $region2: #{double_conv_pallas.4} parent=0 // loop_pre_header
    _
  $region3: #{double_conv_pallas.4} parent=0 // loop_header
    %s14 = sphi 0, %s18
    %p15 = scmp.ge.s32.totalorder %s14, 4
    %s24 = sphi 0, %s26
    %s27 = sphi 0, %s24
    %s28 = sphi 0, %s27
    %s44 = sphi 0, %s28
    %s48 = sphi 0, %s48
    %s50 = sphi 0, %s48
    %s51 = sphi 0, %s50
    %s65 = sphi 0, %s51
    %s69 = sphi 0, %s69
    %s71 = sphi 0, %s69
    %s72 = sphi 0, %s71
    %s86 = sphi 0, %s72
    %s90 = sphi 0, %s90
    %s92 = sphi 0, %s90
    %s93 = sphi 0, %s92
    %s107 = sphi 0, %s93
    %s111 = sphi 0, %s111
    %s113 = sphi 0, %s111
    %s114 = sphi 0, %s113
    %s128 = sphi 0, %s114
    %s134 = sphi 0, %s136
    %s137 = sphi 0, %s134
    %s138 = sphi 0, %s137
    %s154 = sphi 0, %s138
    %s160 = sphi 0, %s162
    %s163 = sphi 0, %s160
    %s164 = sphi 0, %s163
    %s180 = sphi 0, %s164
    %s186 = sphi 0, %s188
    %s189 = sphi 0, %s186
    %s190 = sphi 0, %s189
    %s206 = sphi 0, %s190
  $region4: #{double_conv_pallas.4} parent=0 // loop_header_branch
    %17 = sbr.rel (%p15) target = $region8
  $region5: #{double_conv_pallas.4} parent=0 // loop_body
    %s19 = ssub.s32 %s14, 1
    %s20 = ssub.s32 %s14, 2
    %s21 = sadd.s32 %s14, 1
    %s22 = ssub.s32 %s14, %s21
    %p23 = scmp.eq.s32.totalorder %s22, 0
    %s25 = sadd.s32 %s24, 1
    %s26 = scalar_select %p23, %s24, %s25
    %p29 = pneg %p23
    %p30 = scmp.eq.s32.totalorder %s14, 1
    %p31 = por %p29, %p30
    %p32 = scmp.ne.s32.totalorder %s24, %s27
    %p33 = scmp.eq.s32.totalorder %s14, 0
    %p34 = por %p32, %p33
    %p35 = scmp.ne.s32.totalorder %s24, %s27
    %p36 = scmp.eq.s32.totalorder %s19, 1
    %p37 = por %p35, %p36
    %p38 = scmp.ne.s32.totalorder %s27, %s28
    %p39 = scmp.eq.s32.totalorder %s19, 0
    %p40 = por %p38, %p39
    %p41 = scmp.ne.s32.totalorder %s27, %s28
    %p42 = scmp.eq.s32.totalorder %s20, 1
    %p43 = por %p41, %p42
    %p45 = scmp.ne.s32.totalorder %s28, %s44
    %p46 = scmp.eq.s32.totalorder %s20, 0
    %p47 = por %p45, %p46
    %s49 = sadd.s32 %s48, 1
    %p52 = scmp.eq.s32.totalorder %s14, 1
    %p53 = scmp.ne.s32.totalorder %s48, %s50
    %p54 = scmp.eq.s32.totalorder %s14, 0
    %p55 = por %p53, %p54
    %p56 = scmp.ne.s32.totalorder %s48, %s50
    %p57 = scmp.eq.s32.totalorder %s19, 1
    %p58 = por %p56, %p57
    %p59 = scmp.ne.s32.totalorder %s50, %s51
    %p60 = scmp.eq.s32.totalorder %s19, 0
    %p61 = por %p59, %p60
    %p62 = scmp.ne.s32.totalorder %s50, %s51
    %p63 = scmp.eq.s32.totalorder %s20, 1
    %p64 = por %p62, %p63
    %p66 = scmp.ne.s32.totalorder %s51, %s65
    %p67 = scmp.eq.s32.totalorder %s20, 0
    %p68 = por %p66, %p67
    %s70 = sadd.s32 %s69, 1
    %p73 = scmp.eq.s32.totalorder %s14, 1
    %p74 = scmp.ne.s32.totalorder %s69, %s71
    %p75 = scmp.eq.s32.totalorder %s14, 0
    %p76 = por %p74, %p75
    %p77 = scmp.ne.s32.totalorder %s69, %s71
    %p78 = scmp.eq.s32.totalorder %s19, 1
    %p79 = por %p77, %p78
    %p80 = scmp.ne.s32.totalorder %s71, %s72
    %p81 = scmp.eq.s32.totalorder %s19, 0
    %p82 = por %p80, %p81
    %p83 = scmp.ne.s32.totalorder %s71, %s72
    %p84 = scmp.eq.s32.totalorder %s20, 1
    %p85 = por %p83, %p84
    %p87 = scmp.ne.s32.totalorder %s72, %s86
    %p88 = scmp.eq.s32.totalorder %s20, 0
    %p89 = por %p87, %p88
    %s91 = sadd.s32 %s90, 1
    %p94 = scmp.eq.s32.totalorder %s14, 1
    %p95 = scmp.ne.s32.totalorder %s90, %s92
    %p96 = scmp.eq.s32.totalorder %s14, 0
    %p97 = por %p95, %p96
    %p98 = scmp.ne.s32.totalorder %s90, %s92
    %p99 = scmp.eq.s32.totalorder %s19, 1
    %p100 = por %p98, %p99
    %p101 = scmp.ne.s32.totalorder %s92, %s93
    %p102 = scmp.eq.s32.totalorder %s19, 0
    %p103 = por %p101, %p102
    %p104 = scmp.ne.s32.totalorder %s92, %s93
    %p105 = scmp.eq.s32.totalorder %s20, 1
    %p106 = por %p104, %p105
    %p108 = scmp.ne.s32.totalorder %s93, %s107
    %p109 = scmp.eq.s32.totalorder %s20, 0
    %p110 = por %p108, %p109
    %s112 = sadd.s32 %s111, 1
    %p115 = scmp.eq.s32.totalorder %s14, 1
    %p116 = scmp.ne.s32.totalorder %s111, %s113
    %p117 = scmp.eq.s32.totalorder %s14, 0
    %p118 = por %p116, %p117
    %p119 = scmp.ne.s32.totalorder %s111, %s113
    %p120 = scmp.eq.s32.totalorder %s19, 1
    %p121 = por %p119, %p120
    %p122 = scmp.ne.s32.totalorder %s113, %s114
    %p123 = scmp.eq.s32.totalorder %s19, 0
    %p124 = por %p122, %p123
    %p125 = scmp.ne.s32.totalorder %s113, %s114
    %p126 = scmp.eq.s32.totalorder %s20, 1
    %p127 = por %p125, %p126
    %p129 = scmp.ne.s32.totalorder %s114, %s128
    %p130 = scmp.eq.s32.totalorder %s20, 0
    %p131 = por %p129, %p130
    %s132 = ssub.s32 %s14, %s21
    %p133 = scmp.eq.s32.totalorder %s132, 0
    %s135 = sadd.s32 %s134, 1
    %s136 = scalar_select %p133, %s134, %s135
    %p139 = pneg %p133
    %p140 = scmp.eq.s32.totalorder %s14, 1
    %p141 = por %p139, %p140
    %p142 = scmp.ne.s32.totalorder %s134, %s137
    %p143 = scmp.eq.s32.totalorder %s14, 0
    %p144 = por %p142, %p143
    %p145 = scmp.ne.s32.totalorder %s134, %s137
    %p146 = scmp.eq.s32.totalorder %s19, 1
    %p147 = por %p145, %p146
    %p148 = scmp.ne.s32.totalorder %s137, %s138
    %p149 = scmp.eq.s32.totalorder %s19, 0
    %p150 = por %p148, %p149
    %p151 = scmp.ne.s32.totalorder %s137, %s138
    %p152 = scmp.eq.s32.totalorder %s20, 1
    %p153 = por %p151, %p152
    %p155 = scmp.ne.s32.totalorder %s138, %s154
    %p156 = scmp.eq.s32.totalorder %s20, 0
    %p157 = por %p155, %p156
    %s158 = ssub.s32 %s14, %s21
    %p159 = scmp.eq.s32.totalorder %s158, 0
    %s161 = sadd.s32 %s160, 1
    %s162 = scalar_select %p159, %s160, %s161
    %p165 = pneg %p159
    %p166 = scmp.eq.s32.totalorder %s14, 1
    %p167 = por %p165, %p166
    %p168 = scmp.ne.s32.totalorder %s160, %s163
    %p169 = scmp.eq.s32.totalorder %s14, 0
    %p170 = por %p168, %p169
    %p171 = scmp.ne.s32.totalorder %s160, %s163
    %p172 = scmp.eq.s32.totalorder %s19, 1
    %p173 = por %p171, %p172
    %p174 = scmp.ne.s32.totalorder %s163, %s164
    %p175 = scmp.eq.s32.totalorder %s19, 0
    %p176 = por %p174, %p175
    %p177 = scmp.ne.s32.totalorder %s163, %s164
    %p178 = scmp.eq.s32.totalorder %s20, 1
    %p179 = por %p177, %p178
    %p181 = scmp.ne.s32.totalorder %s164, %s180
    %p182 = scmp.eq.s32.totalorder %s20, 0
    %p183 = por %p181, %p182
    %s184 = ssub.s32 %s14, %s21
    %p185 = scmp.eq.s32.totalorder %s184, 0
    %s187 = sadd.s32 %s186, 1
    %s188 = scalar_select %p185, %s186, %s187
    %p191 = pneg %p185
    %p192 = scmp.eq.s32.totalorder %s14, 1
    %p193 = por %p191, %p192
    %p194 = scmp.ne.s32.totalorder %s186, %s189
    %p195 = scmp.eq.s32.totalorder %s14, 0
    %p196 = por %p194, %p195
    %p197 = scmp.ne.s32.totalorder %s186, %s189
    %p198 = scmp.eq.s32.totalorder %s19, 1
    %p199 = por %p197, %p198
    %p200 = scmp.ne.s32.totalorder %s189, %s190
    %p201 = scmp.eq.s32.totalorder %s19, 0
    %p202 = por %p200, %p201
    %p203 = scmp.ne.s32.totalorder %s189, %s190
    %p204 = scmp.eq.s32.totalorder %s20, 1
    %p205 = por %p203, %p204
    %p207 = scmp.ne.s32.totalorder %s190, %s206
    %p208 = scmp.eq.s32.totalorder %s20, 0
    %p209 = por %p207, %p208
    %p210 = scmp.le.s32.totalorder 1, %s14
    %p211 = scmp.lt.s32.totalorder %s14, 3
    %p212 = pnand %p210, %p211
    %p213 = pneg %p212
    // Predicated region
    $region9: #{double_conv_pallas.4} parent=5 // pred_check
      _
    $region10: #{double_conv_pallas.4} parent=5 // pred_check_branch
      %215 = sbr.rel (%p212) target = $region12
    $region11: #{double_conv_pallas.4} parent=5 // pred_region
      %s216 = ssub.s32 %s14, 1
      // Predicated region
      $region13: #{double_conv_pallas.4} parent=11 // pred_check
        %p217 = pneg %p61
      $region14: #{double_conv_pallas.4} parent=11 // pred_check_branch
        %219 = sbr.rel (%p217) target = $region16
      $region15: #{double_conv_pallas.4} parent=11 // pred_region
        _
      $region16: #{double_conv_pallas.4} parent=11 // pred_fallthru
        _
      // Predicated region
      $region17: #{double_conv_pallas.4} parent=11 // pred_check
        %p220 = pneg %p82
      $region18: #{double_conv_pallas.4} parent=11 // pred_check_branch
        %222 = sbr.rel (%p220) target = $region20
      $region19: #{double_conv_pallas.4} parent=11 // pred_region
        _
      $region20: #{double_conv_pallas.4} parent=11 // pred_fallthru
        _
      // Predicated region
      $region21: #{double_conv_pallas.4} parent=11 // pred_check
        %p223 = pneg %p103
      $region22: #{double_conv_pallas.4} parent=11 // pred_check_branch
        %225 = sbr.rel (%p223) target = $region24
      $region23: #{double_conv_pallas.4} parent=11 // pred_region
        _
      $region24: #{double_conv_pallas.4} parent=11 // pred_fallthru
        _
      // Predicated region
      $region25: #{double_conv_pallas.4} parent=11 // pred_check
        %p226 = pneg %p124
      $region26: #{double_conv_pallas.4} parent=11 // pred_check_branch
        %228 = sbr.rel (%p226) target = $region28
      $region27: #{double_conv_pallas.4} parent=11 // pred_region
        _
      $region28: #{double_conv_pallas.4} parent=11 // pred_fallthru
        _
    $region12: #{double_conv_pallas.4} parent=5 // pred_fallthru
      _
    %p229 = scmp.lt.s32.totalorder %s14, 2
    // Predicated region
    $region29: #{double_conv_pallas.4} parent=5 // pred_check
      %p230 = pneg %p229
    $region30: #{double_conv_pallas.4} parent=5 // pred_check_branch
      %232 = sbr.rel (%p230) target = $region32
    $region31: #{double_conv_pallas.4} parent=5 // pred_region
      // Predicated region
      $region33: #{double_conv_pallas.4} parent=31 // pred_check
        %p233 = pneg %p34
      $region34: #{double_conv_pallas.4} parent=31 // pred_check_branch
        %235 = sbr.rel (%p233) target = $region36
      $region35: #{double_conv_pallas.4} parent=31 // pred_region
        %p236 = scmp.lt.s32.totalorder %s14, 1
        %s237 = scalar_select %p236, %s14, 1
        %s238 = smul.addr %s237, 32
        %s239 = smul.addr %s238, 8
        %s240 = scalar_lea.vmem %s0, %s239
      $region36: #{double_conv_pallas.4} parent=31 // pred_fallthru
        _
    $region32: #{double_conv_pallas.4} parent=5 // pred_fallthru
      _
    %p241 = scmp.le.s32.totalorder 1, %s14
    %p242 = scmp.lt.s32.totalorder %s14, 3
    %p243 = pnand %p241, %p242
    %p244 = pneg %p243
    // Predicated region
    $region37: #{double_conv_pallas.4} parent=5 // pred_check
      _
    $region38: #{double_conv_pallas.4} parent=5 // pred_check_branch
      %246 = sbr.rel (%p243) target = $region40
    $region39: #{double_conv_pallas.4} parent=5 // pred_region
      %s247 = ssub.s32 %s14, 1
      %p248 = scmp.lt.s32.totalorder %s19, 1
      %s249 = scalar_select %p248, %s19, 1
      %s250 = smul.addr %s249, 32
      %s251 = smul.addr %s250, 8
      %s252 = scalar_lea.vmem %s0, %s251
      %p253 = pneg %p40
      %p254 = pneg %p37
      %p255 = pneg %p61
      %p256 = pneg %p58
      %p257 = pneg %p82
      %p258 = pneg %p79
      %p259 = pneg %p103
      %p260 = pneg %p100
      %p261 = pneg %p124
      %p262 = pneg %p121
      %p263 = pneg %p150
      %p264 = pneg %p147
      %p265 = scmp.lt.s32.totalorder %s19, 1
      %s266 = scalar_select %p265, %s19, 1
      %s267 = smul.addr %s266, 32
      %s268 = smul.addr %s267, 8
      %s269 = scalar_lea.vmem %s5, %s268
      %p270 = pneg %p176
      %p271 = pneg %p173
      %p272 = scmp.lt.s32.totalorder %s19, 1
      %s273 = scalar_select %p272, %s19, 1
      %s274 = scalar_lea.vmem %s6, %s273
      %p275 = pneg %p202
      %p276 = pneg %p199
      %p277 = scmp.lt.s32.totalorder %s19, 1
      %s278 = scalar_select %p277, %s19, 1
      %s279 = scalar_lea.vmem %s7, %s278
      %p280 = scmp.lt.s32.totalorder %s19, 1
      %s281 = scalar_select %p280, %s19, 1
      %s282 = smul.addr %s281, 32
      %s283 = smul.addr %s282, 8
      %s284 = scalar_lea.vmem %s0, %s283
      %p285 = scmp.lt.s32.totalorder %s19, 1
      %s286 = scalar_select %p285, %s19, 1
      %s287 = smul.addr %s286, 32
      %s288 = smul.addr %s287, 8
      %s289 = scalar_lea.vmem %s5, %s288
      %p290 = scmp.lt.s32.totalorder %s19, 1
      %s291 = scalar_select %p290, %s19, 1
      %s292 = scalar_lea.vmem %s6, %s291
      %p293 = scmp.lt.s32.totalorder %s19, 1
      %s294 = scalar_select %p293, %s19, 1
      %s295 = scalar_lea.vmem %s7, %s294
      %v296 = vld [vmem:[%s284] sm:$0xff]
      %v297 = vld [vmem:[%s284 + $0x8] sm:$0xff]
      %v298 = vld [vmem:[%s284 + $0x10] sm:$0xff]
      %v299 = vld [vmem:[%s284 + $0x18] sm:$0xff]
      %v300 = vld [vmem:[%s284 + $0x20] sm:$0xff]
      %v301 = vld [vmem:[%s284 + $0x28] sm:$0xff]
      %v302 = vld [vmem:[%s284 + $0x30] sm:$0xff]
      %v303 = vld [vmem:[%s284 + $0x38] sm:$0xff]
      %v304 = vld [vmem:[%s284 + $0x40] sm:$0xff]
      %v305 = vld [vmem:[%s284 + $0x48] sm:$0xff]
      %v306 = vld [vmem:[%s284 + $0x50] sm:$0xff]
      %v307 = vld [vmem:[%s284 + $0x58] sm:$0xff]
      %v308 = vld [vmem:[%s284 + $0x60] sm:$0xff]
      %v309 = vld [vmem:[%s284 + $0x68] sm:$0xff]
      %v310 = vld [vmem:[%s284 + $0x70] sm:$0xff]
      %v311 = vld [vmem:[%s284 + $0x78] sm:$0xff]
      %v312 = vld [vmem:[%s284 + $0x80] sm:$0xff]
      %v313 = vld [vmem:[%s284 + $0x88] sm:$0xff]
      %v314 = vld [vmem:[%s284 + $0x90] sm:$0xff]
      %v315 = vld [vmem:[%s284 + $0x98] sm:$0xff]
      %v316 = vld [vmem:[%s284 + $0xa0] sm:$0xff]
      %v317 = vld [vmem:[%s284 + $0xa8] sm:$0xff]
      %v318 = vld [vmem:[%s284 + $0xb0] sm:$0xff]
      %v319 = vld [vmem:[%s284 + $0xb8] sm:$0xff]
      %v320 = vld [vmem:[%s284 + $0xc0] sm:$0xff]
      %v321 = vld [vmem:[%s284 + $0xc8] sm:$0xff]
      %v322 = vld [vmem:[%s284 + $0xd0] sm:$0xff]
      %v323 = vld [vmem:[%s284 + $0xd8] sm:$0xff]
      %v324 = vld [vmem:[%s284 + $0xe0] sm:$0xff]
      %v325 = vld [vmem:[%s284 + $0xe8] sm:$0xff]
      %v326 = vld [vmem:[%s284 + $0xf0] sm:$0xff]
      %v327 = vld [vmem:[%s284 + $0xf8] sm:$0xff]
      %v328 = vld [vmem:[%s1] sm:$0x1]
      %v330 = vperm.slane %v328, 0
      %v332 = vmul.f32 %v296, %v330
      %v333 = vmul.f32 %v297, %v330
      %v334 = vmul.f32 %v298, %v330
      %v335 = vmul.f32 %v299, %v330
      %v336 = vmul.f32 %v300, %v330
      %v337 = vmul.f32 %v301, %v330
      %v338 = vmul.f32 %v302, %v330
      %v339 = vmul.f32 %v303, %v330
      %v340 = vmul.f32 %v304, %v330
      %v341 = vmul.f32 %v305, %v330
      %v342 = vmul.f32 %v306, %v330
      %v343 = vmul.f32 %v307, %v330
      %v344 = vmul.f32 %v308, %v330
      %v345 = vmul.f32 %v309, %v330
      %v346 = vmul.f32 %v310, %v330
      %v347 = vmul.f32 %v311, %v330
      %v348 = vmul.f32 %v312, %v330
      %v349 = vmul.f32 %v313, %v330
      %v350 = vmul.f32 %v314, %v330
      %v351 = vmul.f32 %v315, %v330
      %v352 = vmul.f32 %v316, %v330
      %v353 = vmul.f32 %v317, %v330
      %v354 = vmul.f32 %v318, %v330
      %v355 = vmul.f32 %v319, %v330
      %v356 = vmul.f32 %v320, %v330
      %v357 = vmul.f32 %v321, %v330
      %v358 = vmul.f32 %v322, %v330
      %v359 = vmul.f32 %v323, %v330
      %v360 = vmul.f32 %v324, %v330
      %v361 = vmul.f32 %v325, %v330
      %v362 = vmul.f32 %v326, %v330
      %v363 = vmul.f32 %v327, %v330
      %v364 = vld [vmem:[%s2] sm:$0x1]
      %v366 = vperm.slane %v364, 0
      %v368 = vadd.f32 %v332, %v366
      %v369 = vadd.f32 %v333, %v366
      %v370 = vadd.f32 %v334, %v366
      %v371 = vadd.f32 %v335, %v366
      %v372 = vadd.f32 %v336, %v366
      %v373 = vadd.f32 %v337, %v366
      %v374 = vadd.f32 %v338, %v366
      %v375 = vadd.f32 %v339, %v366
      %v376 = vadd.f32 %v340, %v366
      %v377 = vadd.f32 %v341, %v366
      %v378 = vadd.f32 %v342, %v366
      %v379 = vadd.f32 %v343, %v366
      %v380 = vadd.f32 %v344, %v366
      %v381 = vadd.f32 %v345, %v366
      %v382 = vadd.f32 %v346, %v366
      %v383 = vadd.f32 %v347, %v366
      %v384 = vadd.f32 %v348, %v366
      %v385 = vadd.f32 %v349, %v366
      %v386 = vadd.f32 %v350, %v366
      %v387 = vadd.f32 %v351, %v366
      %v388 = vadd.f32 %v352, %v366
      %v389 = vadd.f32 %v353, %v366
      %v390 = vadd.f32 %v354, %v366
      %v391 = vadd.f32 %v355, %v366
      %v392 = vadd.f32 %v356, %v366
      %v393 = vadd.f32 %v357, %v366
      %v394 = vadd.f32 %v358, %v366
      %v395 = vadd.f32 %v359, %v366
      %v396 = vadd.f32 %v360, %v366
      %v397 = vadd.f32 %v361, %v366
      %v398 = vadd.f32 %v362, %v366
      %v399 = vadd.f32 %v363, %v366
      %v400 = vmax.f32 %v368, 0.0
      %v401 = vmax.f32 %v369, 0.0
      %v402 = vmax.f32 %v370, 0.0
      %v403 = vmax.f32 %v371, 0.0
      %v404 = vmax.f32 %v372, 0.0
      %v405 = vmax.f32 %v373, 0.0
      %v406 = vmax.f32 %v374, 0.0
      %v407 = vmax.f32 %v375, 0.0
      %v408 = vmax.f32 %v376, 0.0
      %v409 = vmax.f32 %v377, 0.0
      %v410 = vmax.f32 %v378, 0.0
      %v411 = vmax.f32 %v379, 0.0
      %v412 = vmax.f32 %v380, 0.0
      %v413 = vmax.f32 %v381, 0.0
      %v414 = vmax.f32 %v382, 0.0
      %v415 = vmax.f32 %v383, 0.0
      %v416 = vmax.f32 %v384, 0.0
      %v417 = vmax.f32 %v385, 0.0
      %v418 = vmax.f32 %v386, 0.0
      %v419 = vmax.f32 %v387, 0.0
      %v420 = vmax.f32 %v388, 0.0
      %v421 = vmax.f32 %v389, 0.0
      %v422 = vmax.f32 %v390, 0.0
      %v423 = vmax.f32 %v391, 0.0
      %v424 = vmax.f32 %v392, 0.0
      %v425 = vmax.f32 %v393, 0.0
      %v426 = vmax.f32 %v394, 0.0
      %v427 = vmax.f32 %v395, 0.0
      %v428 = vmax.f32 %v396, 0.0
      %v429 = vmax.f32 %v397, 0.0
      %v430 = vmax.f32 %v398, 0.0
      %v431 = vmax.f32 %v399, 0.0
      %vm432 = vcmask 64512
      %433 = vst.msk [vmem:[#allocation2] sm:$0xff] %vm432, 0.0
      %434 = vst.msk [vmem:[#allocation2 + $0x8] sm:$0xff] %vm432, 0.0
      %vm435 = vcmask 58368
      %436 = vst.msk [vmem:[#allocation2 + $0x10] sm:$0x3] %vm435, 0.0
      %437 = vst.msk [vmem:[#allocation2 + $0x18] sm:$0xff] %vm432, 0.0
      %438 = vst.msk [vmem:[#allocation2 + $0x20] sm:$0xff] %vm432, 0.0
      %439 = vst.msk [vmem:[#allocation2 + $0x28] sm:$0x3] %vm435, 0.0
      %440 = vst.msk [vmem:[#allocation2 + $0x30] sm:$0xff] %vm432, 0.0
      %441 = vst.msk [vmem:[#allocation2 + $0x38] sm:$0xff] %vm432, 0.0
      %442 = vst.msk [vmem:[#allocation2 + $0x40] sm:$0x3] %vm435, 0.0
      %443 = vst.msk [vmem:[#allocation2 + $0x48] sm:$0xff] %vm432, 0.0
      %444 = vst.msk [vmem:[#allocation2 + $0x50] sm:$0xff] %vm432, 0.0
      %445 = vst.msk [vmem:[#allocation2 + $0x58] sm:$0x3] %vm435, 0.0
      %446 = vst.msk [vmem:[#allocation2 + $0x60] sm:$0xff] %vm432, 0.0
      %447 = vst.msk [vmem:[#allocation2 + $0x68] sm:$0xff] %vm432, 0.0
      %448 = vst.msk [vmem:[#allocation2 + $0x70] sm:$0x3] %vm435, 0.0
      %449 = vst.msk [vmem:[#allocation2 + $0x78] sm:$0xff] %vm432, 0.0
      %450 = vst.msk [vmem:[#allocation2 + $0x80] sm:$0xff] %vm432, 0.0
      %451 = vst.msk [vmem:[#allocation2 + $0x88] sm:$0x3] %vm435, 0.0
      %452 = vst.msk [vmem:[#allocation2 + $0x90] sm:$0xff] %vm432, 0.0
      %453 = vst.msk [vmem:[#allocation2 + $0x98] sm:$0xff] %vm432, 0.0
      %454 = vst.msk [vmem:[#allocation2 + $0xa0] sm:$0x3] %vm435, 0.0
      %455 = vst.msk [vmem:[#allocation2 + $0xa8] sm:$0xff] %vm432, 0.0
      %456 = vst.msk [vmem:[#allocation2 + $0xb0] sm:$0xff] %vm432, 0.0
      %457 = vst.msk [vmem:[#allocation2 + $0xb8] sm:$0x3] %vm435, 0.0
      %458 = vst.msk [vmem:[#allocation2 + $0xc0] sm:$0xff] %vm432, 0.0
      %459 = vst.msk [vmem:[#allocation2 + $0xc8] sm:$0xff] %vm432, 0.0
      %460 = vst.msk [vmem:[#allocation2 + $0xd0] sm:$0x3] %vm435, 0.0
      %461 = vst.msk [vmem:[#allocation2 + $0xd8] sm:$0xff] %vm432, 0.0
      %462 = vst.msk [vmem:[#allocation2 + $0xe0] sm:$0xff] %vm432, 0.0
      %463 = vst.msk [vmem:[#allocation2 + $0xe8] sm:$0x3] %vm435, 0.0
      %464 = vst.msk [vmem:[#allocation2 + $0xf0] sm:$0xff] %vm432, 0.0
      %465 = vst.msk [vmem:[#allocation2 + $0xf8] sm:$0xff] %vm432, 0.0
      %466 = vst.msk [vmem:[#allocation2 + $0x100] sm:$0x3] %vm435, 0.0
      %467 = vst.msk [vmem:[#allocation2 + $0x108] sm:$0xff] %vm432, 0.0
      %468 = vst.msk [vmem:[#allocation2 + $0x110] sm:$0xff] %vm432, 0.0
      %469 = vst.msk [vmem:[#allocation2 + $0x118] sm:$0x3] %vm435, 0.0
      %470 = vst.msk [vmem:[#allocation2 + $0x120] sm:$0xff] %vm432, 0.0
      %471 = vst.msk [vmem:[#allocation2 + $0x128] sm:$0xff] %vm432, 0.0
      %472 = vst.msk [vmem:[#allocation2 + $0x130] sm:$0x3] %vm435, 0.0
      %473 = vst.msk [vmem:[#allocation2 + $0x138] sm:$0xff] %vm432, 0.0
      %474 = vst.msk [vmem:[#allocation2 + $0x140] sm:$0xff] %vm432, 0.0
      %475 = vst.msk [vmem:[#allocation2 + $0x148] sm:$0x3] %vm435, 0.0
      %476 = vst.msk [vmem:[#allocation2 + $0x150] sm:$0xff] %vm432, 0.0
      %477 = vst.msk [vmem:[#allocation2 + $0x158] sm:$0xff] %vm432, 0.0
      %478 = vst.msk [vmem:[#allocation2 + $0x160] sm:$0x3] %vm435, 0.0
      %479 = vst.msk [vmem:[#allocation2 + $0x168] sm:$0xff] %vm432, 0.0
      %480 = vst.msk [vmem:[#allocation2 + $0x170] sm:$0xff] %vm432, 0.0
      %481 = vst.msk [vmem:[#allocation2 + $0x178] sm:$0x3] %vm435, 0.0
      %482 = vst.msk [vmem:[#allocation2 + $0x180] sm:$0xff] %vm432, 0.0
      %483 = vst.msk [vmem:[#allocation2 + $0x188] sm:$0xff] %vm432, 0.0
      %484 = vst.msk [vmem:[#allocation2 + $0x190] sm:$0x3] %vm435, 0.0
      %485 = vst.msk [vmem:[#allocation2 + $0x198] sm:$0xff] %vm432, 0.0
      %486 = vst.msk [vmem:[#allocation2 + $0x1a0] sm:$0xff] %vm432, 0.0
      %487 = vst.msk [vmem:[#allocation2 + $0x1a8] sm:$0x3] %vm435, 0.0
      %s488 = scalar_lea.vmem [#allocation2], 24
      %489 = vst.msk [vmem:[%s488 + $0x1] sm:$0xff] %vm432, %v400
      %490 = vst.msk [vmem:[%s488 + $0x9] sm:$0xff] %vm432, %v401
      %491 = vst.msk [vmem:[%s488 + $0x19] sm:$0xff] %vm432, %v402
      %492 = vst.msk [vmem:[%s488 + $0x21] sm:$0xff] %vm432, %v403
      %493 = vst.msk [vmem:[%s488 + $0x31] sm:$0xff] %vm432, %v404
      %494 = vst.msk [vmem:[%s488 + $0x39] sm:$0xff] %vm432, %v405
      %495 = vst.msk [vmem:[%s488 + $0x49] sm:$0xff] %vm432, %v406
      %496 = vst.msk [vmem:[%s488 + $0x51] sm:$0xff] %vm432, %v407
      %497 = vst.msk [vmem:[%s488 + $0x61] sm:$0xff] %vm432, %v408
      %498 = vst.msk [vmem:[%s488 + $0x69] sm:$0xff] %vm432, %v409
      %499 = vst.msk [vmem:[%s488 + $0x79] sm:$0xff] %vm432, %v410
      %500 = vst.msk [vmem:[%s488 + $0x81] sm:$0xff] %vm432, %v411
      %501 = vst.msk [vmem:[%s488 + $0x91] sm:$0xff] %vm432, %v412
      %502 = vst.msk [vmem:[%s488 + $0x99] sm:$0xff] %vm432, %v413
      %503 = vst.msk [vmem:[%s488 + $0xa9] sm:$0xff] %vm432, %v414
      %504 = vst.msk [vmem:[%s488 + $0xb1] sm:$0xff] %vm432, %v415
      %505 = vst.msk [vmem:[%s488 + $0xc1] sm:$0xff] %vm432, %v416
      %506 = vst.msk [vmem:[%s488 + $0xc9] sm:$0xff] %vm432, %v417
      %507 = vst.msk [vmem:[%s488 + $0xd9] sm:$0xff] %vm432, %v418
      %508 = vst.msk [vmem:[%s488 + $0xe1] sm:$0xff] %vm432, %v419
      %509 = vst.msk [vmem:[%s488 + $0xf1] sm:$0xff] %vm432, %v420
      %510 = vst.msk [vmem:[%s488 + $0xf9] sm:$0xff] %vm432, %v421
      %511 = vst.msk [vmem:[%s488 + $0x109] sm:$0xff] %vm432, %v422
      %512 = vst.msk [vmem:[%s488 + $0x111] sm:$0xff] %vm432, %v423
      %513 = vst.msk [vmem:[%s488 + $0x121] sm:$0xff] %vm432, %v424
      %514 = vst.msk [vmem:[%s488 + $0x129] sm:$0xff] %vm432, %v425
      %515 = vst.msk [vmem:[%s488 + $0x139] sm:$0xff] %vm432, %v426
      %516 = vst.msk [vmem:[%s488 + $0x141] sm:$0xff] %vm432, %v427
      %517 = vst.msk [vmem:[%s488 + $0x151] sm:$0xff] %vm432, %v428
      %518 = vst.msk [vmem:[%s488 + $0x159] sm:$0xff] %vm432, %v429
      %519 = vst.msk [vmem:[%s488 + $0x169] sm:$0xff] %vm432, %v430
      %520 = vst.msk [vmem:[%s488 + $0x171] sm:$0xff] %vm432, %v431
      %v521 = vld [vmem:[#allocation2] sm:$0xff]
      %v522 = vld [vmem:[#allocation2 + $0x8] sm:$0xff]
      %v523 = vld [vmem:[#allocation2 + $0x10] sm:$0x3]
      %v524 = vld [vmem:[#allocation2 + $0x18] sm:$0xff]
      %v525 = vld [vmem:[#allocation2 + $0x20] sm:$0xff]
      %v526 = vld [vmem:[#allocation2 + $0x28] sm:$0x3]
      %v527 = vld [vmem:[#allocation2 + $0x30] sm:$0xff]
      %v528 = vld [vmem:[#allocation2 + $0x38] sm:$0xff]
      %v529 = vld [vmem:[#allocation2 + $0x40] sm:$0x3]
      %v530 = vld [vmem:[#allocation2 + $0x48] sm:$0xff]
      %v531 = vld [vmem:[#allocation2 + $0x50] sm:$0xff]
      %v532 = vld [vmem:[#allocation2 + $0x58] sm:$0x3]
      %v533 = vld [vmem:[#allocation2 + $0x60] sm:$0xff]
      %v534 = vld [vmem:[#allocation2 + $0x68] sm:$0xff]
      %v535 = vld [vmem:[#allocation2 + $0x70] sm:$0x3]
      %v536 = vld [vmem:[#allocation2 + $0x78] sm:$0xff]
      %v537 = vld [vmem:[#allocation2 + $0x80] sm:$0xff]
      %v538 = vld [vmem:[#allocation2 + $0x88] sm:$0x3]
      %v539 = vld [vmem:[#allocation2 + $0x90] sm:$0xff]
      %v540 = vld [vmem:[#allocation2 + $0x98] sm:$0xff]
      %v541 = vld [vmem:[#allocation2 + $0xa0] sm:$0x3]
      %v542 = vld [vmem:[#allocation2 + $0xa8] sm:$0xff]
      %v543 = vld [vmem:[#allocation2 + $0xb0] sm:$0xff]
      %v544 = vld [vmem:[#allocation2 + $0xb8] sm:$0x3]
      %v545 = vld [vmem:[#allocation2 + $0xc0] sm:$0xff]
      %v546 = vld [vmem:[#allocation2 + $0xc8] sm:$0xff]
      %v547 = vld [vmem:[#allocation2 + $0xd0] sm:$0x3]
      %v548 = vld [vmem:[#allocation2 + $0xd8] sm:$0xff]
      %v549 = vld [vmem:[#allocation2 + $0xe0] sm:$0xff]
      %v550 = vld [vmem:[#allocation2 + $0xe8] sm:$0x3]
      %v551 = vld [vmem:[#allocation2 + $0xf0] sm:$0xff]
      %v552 = vld [vmem:[#allocation2 + $0xf8] sm:$0xff]
      %v553 = vld [vmem:[#allocation2 + $0x100] sm:$0x3]
      %v554 = vld [vmem:[#allocation2 + $0x108] sm:$0xff]
      %v555 = vld [vmem:[#allocation2 + $0x110] sm:$0xff]
      %v556 = vld [vmem:[#allocation2 + $0x118] sm:$0x3]
      %v557 = vld [vmem:[#allocation2 + $0x120] sm:$0xff]
      %v558 = vld [vmem:[#allocation2 + $0x128] sm:$0xff]
      %v559 = vld [vmem:[#allocation2 + $0x130] sm:$0x3]
      %v560 = vld [vmem:[#allocation2 + $0x138] sm:$0xff]
      %v561 = vld [vmem:[#allocation2 + $0x140] sm:$0xff]
      %v562 = vld [vmem:[#allocation2 + $0x148] sm:$0x3]
      %v563 = vld [vmem:[#allocation2 + $0x150] sm:$0xff]
      %v564 = vld [vmem:[#allocation2 + $0x158] sm:$0xff]
      %v565 = vld [vmem:[#allocation2 + $0x160] sm:$0x3]
      %v566 = vld [vmem:[#allocation2 + $0x168] sm:$0xff]
      %v567 = vld [vmem:[#allocation2 + $0x170] sm:$0xff]
      %v568 = vld [vmem:[#allocation2 + $0x178] sm:$0x3]
      %v569 = vld [vmem:[#allocation2 + $0x180] sm:$0xff]
      %v570 = vld [vmem:[#allocation2 + $0x188] sm:$0xff]
      %v571 = vld [vmem:[#allocation2 + $0x190] sm:$0x3]
      %v572 = vld [vmem:[#allocation2 + $0x198] sm:$0xff]
      %v573 = vld [vmem:[#allocation2 + $0x1a0] sm:$0xff]
      %v574 = vld [vmem:[#allocation2 + $0x1a8] sm:$0x3]
      %575 = vst.msk [vmem:[#allocation3] sm:$0xff] %vm432, %v521
      %576 = vst.msk [vmem:[#allocation3 + $0x8] sm:$0xff] %vm432, %v522
      %577 = vst.msk [vmem:[#allocation3 + $0x10] sm:$0xff] %vm432, %v524
      %578 = vst.msk [vmem:[#allocation3 + $0x18] sm:$0xff] %vm432, %v525
      %579 = vst.msk [vmem:[#allocation3 + $0x20] sm:$0xff] %vm432, %v527
      %580 = vst.msk [vmem:[#allocation3 + $0x28] sm:$0xff] %vm432, %v528
      %581 = vst.msk [vmem:[#allocation3 + $0x30] sm:$0xff] %vm432, %v530
      %582 = vst.msk [vmem:[#allocation3 + $0x38] sm:$0xff] %vm432, %v531
      %583 = vst.msk [vmem:[#allocation3 + $0x40] sm:$0xff] %vm432, %v533
      %584 = vst.msk [vmem:[#allocation3 + $0x48] sm:$0xff] %vm432, %v534
      %585 = vst.msk [vmem:[#allocation3 + $0x50] sm:$0xff] %vm432, %v536
      %586 = vst.msk [vmem:[#allocation3 + $0x58] sm:$0xff] %vm432, %v537
      %587 = vst.msk [vmem:[#allocation3 + $0x60] sm:$0xff] %vm432, %v539
      %588 = vst.msk [vmem:[#allocation3 + $0x68] sm:$0xff] %vm432, %v540
      %589 = vst.msk [vmem:[#allocation3 + $0x70] sm:$0xff] %vm432, %v542
      %590 = vst.msk [vmem:[#allocation3 + $0x78] sm:$0xff] %vm432, %v543
      %591 = vst.msk [vmem:[#allocation3 + $0x80] sm:$0xff] %vm432, %v545
      %592 = vst.msk [vmem:[#allocation3 + $0x88] sm:$0xff] %vm432, %v546
      %593 = vst.msk [vmem:[#allocation3 + $0x90] sm:$0xff] %vm432, %v548
      %594 = vst.msk [vmem:[#allocation3 + $0x98] sm:$0xff] %vm432, %v549
      %595 = vst.msk [vmem:[#allocation3 + $0xa0] sm:$0xff] %vm432, %v551
      %596 = vst.msk [vmem:[#allocation3 + $0xa8] sm:$0xff] %vm432, %v552
      %597 = vst.msk [vmem:[#allocation3 + $0xb0] sm:$0xff] %vm432, %v554
      %598 = vst.msk [vmem:[#allocation3 + $0xb8] sm:$0xff] %vm432, %v555
      %599 = vst.msk [vmem:[#allocation3 + $0xc0] sm:$0xff] %vm432, %v557
      %600 = vst.msk [vmem:[#allocation3 + $0xc8] sm:$0xff] %vm432, %v558
      %601 = vst.msk [vmem:[#allocation3 + $0xd0] sm:$0xff] %vm432, %v560
      %602 = vst.msk [vmem:[#allocation3 + $0xd8] sm:$0xff] %vm432, %v561
      %603 = vst.msk [vmem:[#allocation3 + $0xe0] sm:$0xff] %vm432, %v563
      %604 = vst.msk [vmem:[#allocation3 + $0xe8] sm:$0xff] %vm432, %v564
      %605 = vst.msk [vmem:[#allocation3 + $0xf0] sm:$0xff] %vm432, %v566
      %606 = vst.msk [vmem:[#allocation3 + $0xf8] sm:$0xff] %vm432, %v567
      %vm655 = vcmask 1046528
      %v656 = vrot.slane %v521, 1
      %v657 = vrot.slane %v522, 1
      %v658 = vsel %vm655, %v656, %v657
      %v659 = vrot.slane %v523, 1
      %v660 = vsel %vm655, %v657, %v659
      %v661 = vrot.slane %v524, 1
      %v662 = vrot.slane %v525, 1
      %v663 = vsel %vm655, %v661, %v662
      %v664 = vrot.slane %v526, 1
      %v665 = vsel %vm655, %v662, %v664
      %v666 = vrot.slane %v527, 1
      %v667 = vrot.slane %v528, 1
      %v668 = vsel %vm655, %v666, %v667
      %v669 = vrot.slane %v529, 1
      %v670 = vsel %vm655, %v667, %v669
      %v671 = vrot.slane %v530, 1
      %v672 = vrot.slane %v531, 1
      %v673 = vsel %vm655, %v671, %v672
      %v674 = vrot.slane %v532, 1
      %v675 = vsel %vm655, %v672, %v674
      %v676 = vrot.slane %v533, 1
      %v677 = vrot.slane %v534, 1
      %v678 = vsel %vm655, %v676, %v677
      %v679 = vrot.slane %v535, 1
      %v680 = vsel %vm655, %v677, %v679
      %v681 = vrot.slane %v536, 1
      %v682 = vrot.slane %v537, 1
      %v683 = vsel %vm655, %v681, %v682
      %v684 = vrot.slane %v538, 1
      %v685 = vsel %vm655, %v682, %v684
      %v686 = vrot.slane %v539, 1
      %v687 = vrot.slane %v540, 1
      %v688 = vsel %vm655, %v686, %v687
      %v689 = vrot.slane %v541, 1
      %v690 = vsel %vm655, %v687, %v689
      %v691 = vrot.slane %v542, 1
      %v692 = vrot.slane %v543, 1
      %v693 = vsel %vm655, %v691, %v692
      %v694 = vrot.slane %v544, 1
      %v695 = vsel %vm655, %v692, %v694
      %v696 = vrot.slane %v545, 1
      %v697 = vrot.slane %v546, 1
      %v698 = vsel %vm655, %v696, %v697
      %v699 = vrot.slane %v547, 1
      %v700 = vsel %vm655, %v697, %v699
      %v701 = vrot.slane %v548, 1
      %v702 = vrot.slane %v549, 1
      %v703 = vsel %vm655, %v701, %v702
      %v704 = vrot.slane %v550, 1
      %v705 = vsel %vm655, %v702, %v704
      %v706 = vrot.slane %v551, 1
      %v707 = vrot.slane %v552, 1
      %v708 = vsel %vm655, %v706, %v707
      %v709 = vrot.slane %v553, 1
      %v710 = vsel %vm655, %v707, %v709
      %v711 = vrot.slane %v554, 1
      %v712 = vrot.slane %v555, 1
      %v713 = vsel %vm655, %v711, %v712
      %v714 = vrot.slane %v556, 1
      %v715 = vsel %vm655, %v712, %v714
      %v716 = vrot.slane %v557, 1
      %v717 = vrot.slane %v558, 1
      %v718 = vsel %vm655, %v716, %v717
      %v719 = vrot.slane %v559, 1
      %v720 = vsel %vm655, %v717, %v719
      %v721 = vrot.slane %v560, 1
      %v722 = vrot.slane %v561, 1
      %v723 = vsel %vm655, %v721, %v722
      %v724 = vrot.slane %v562, 1
      %v725 = vsel %vm655, %v722, %v724
      %v726 = vrot.slane %v563, 1
      %v727 = vrot.slane %v564, 1
      %v728 = vsel %vm655, %v726, %v727
      %v729 = vrot.slane %v565, 1
      %v730 = vsel %vm655, %v727, %v729
      %v731 = vrot.slane %v566, 1
      %v732 = vrot.slane %v567, 1
      %v733 = vsel %vm655, %v731, %v732
      %v734 = vrot.slane %v568, 1
      %v735 = vsel %vm655, %v732, %v734
      %736 = vrot.lane.b32.xlu0 %v658, 8
      %v737 = vpop.permute.xlu0 %736
      %738 = vrot.lane.b32.xlu0 %v660, 8
      %v739 = vpop.permute.xlu0 %738
      %740 = vrot.lane.b32.xlu0 %v663, 8
      %v741 = vpop.permute.xlu0 %740
      %742 = vrot.lane.b32.xlu0 %v665, 8
      %v743 = vpop.permute.xlu0 %742
      %744 = vrot.lane.b32.xlu0 %v668, 8
      %v745 = vpop.permute.xlu0 %744
      %746 = vrot.lane.b32.xlu0 %v670, 8
      %v747 = vpop.permute.xlu0 %746
      %748 = vrot.lane.b32.xlu0 %v673, 8
      %v749 = vpop.permute.xlu0 %748
      %750 = vrot.lane.b32.xlu0 %v675, 8
      %v751 = vpop.permute.xlu0 %750
      %752 = vrot.lane.b32.xlu0 %v678, 8
      %v753 = vpop.permute.xlu0 %752
      %754 = vrot.lane.b32.xlu0 %v680, 8
      %v755 = vpop.permute.xlu0 %754
      %756 = vrot.lane.b32.xlu0 %v683, 8
      %v757 = vpop.permute.xlu0 %756
      %758 = vrot.lane.b32.xlu0 %v685, 8
      %v759 = vpop.permute.xlu0 %758
      %760 = vrot.lane.b32.xlu0 %v688, 8
      %v761 = vpop.permute.xlu0 %760
      %762 = vrot.lane.b32.xlu0 %v690, 8
      %v763 = vpop.permute.xlu0 %762
      %764 = vrot.lane.b32.xlu0 %v693, 8
      %v765 = vpop.permute.xlu0 %764
      %766 = vrot.lane.b32.xlu0 %v695, 8
      %v767 = vpop.permute.xlu0 %766
      %768 = vrot.lane.b32.xlu0 %v698, 8
      %v769 = vpop.permute.xlu0 %768
      %770 = vrot.lane.b32.xlu0 %v700, 8
      %v771 = vpop.permute.xlu0 %770
      %772 = vrot.lane.b32.xlu0 %v703, 8
      %v773 = vpop.permute.xlu0 %772
      %774 = vrot.lane.b32.xlu0 %v705, 8
      %v775 = vpop.permute.xlu0 %774
      %776 = vrot.lane.b32.xlu0 %v708, 8
      %v777 = vpop.permute.xlu0 %776
      %778 = vrot.lane.b32.xlu0 %v710, 8
      %v779 = vpop.permute.xlu0 %778
      %780 = vrot.lane.b32.xlu0 %v713, 8
      %v781 = vpop.permute.xlu0 %780
      %782 = vrot.lane.b32.xlu0 %v715, 8
      %v783 = vpop.permute.xlu0 %782
      %784 = vrot.lane.b32.xlu0 %v718, 8
      %v785 = vpop.permute.xlu0 %784
      %786 = vrot.lane.b32.xlu0 %v720, 8
      %v787 = vpop.permute.xlu0 %786
      %788 = vrot.lane.b32.xlu0 %v723, 8
      %v789 = vpop.permute.xlu0 %788
      %790 = vrot.lane.b32.xlu0 %v725, 8
      %v791 = vpop.permute.xlu0 %790
      %792 = vrot.lane.b32.xlu0 %v728, 8
      %v793 = vpop.permute.xlu0 %792
      %794 = vrot.lane.b32.xlu0 %v730, 8
      %v795 = vpop.permute.xlu0 %794
      %796 = vrot.lane.b32.xlu0 %v733, 8
      %v797 = vpop.permute.xlu0 %796
      %798 = vrot.lane.b32.xlu0 %v735, 8
      %v799 = vpop.permute.xlu0 %798
      %vm832 = vcmask 130112
      %833 = vst.msk [vmem:[#allocation3] sm:$0xff] %vm832, %v737
      %834 = vst.msk [vmem:[#allocation3 + $0x8] sm:$0xff] %vm832, %v739
      %835 = vst.msk [vmem:[#allocation3 + $0x10] sm:$0xff] %vm832, %v741
      %836 = vst.msk [vmem:[#allocation3 + $0x18] sm:$0xff] %vm832, %v743
      %837 = vst.msk [vmem:[#allocation3 + $0x20] sm:$0xff] %vm832, %v745
      %838 = vst.msk [vmem:[#allocation3 + $0x28] sm:$0xff] %vm832, %v747
      %839 = vst.msk [vmem:[#allocation3 + $0x30] sm:$0xff] %vm832, %v749
      %840 = vst.msk [vmem:[#allocation3 + $0x38] sm:$0xff] %vm832, %v751
      %841 = vst.msk [vmem:[#allocation3 + $0x40] sm:$0xff] %vm832, %v753
      %842 = vst.msk [vmem:[#allocation3 + $0x48] sm:$0xff] %vm832, %v755
      %843 = vst.msk [vmem:[#allocation3 + $0x50] sm:$0xff] %vm832, %v757
      %844 = vst.msk [vmem:[#allocation3 + $0x58] sm:$0xff] %vm832, %v759
      %845 = vst.msk [vmem:[#allocation3 + $0x60] sm:$0xff] %vm832, %v761
      %846 = vst.msk [vmem:[#allocation3 + $0x68] sm:$0xff] %vm832, %v763
      %847 = vst.msk [vmem:[#allocation3 + $0x70] sm:$0xff] %vm832, %v765
      %848 = vst.msk [vmem:[#allocation3 + $0x78] sm:$0xff] %vm832, %v767
      %849 = vst.msk [vmem:[#allocation3 + $0x80] sm:$0xff] %vm832, %v769
      %850 = vst.msk [vmem:[#allocation3 + $0x88] sm:$0xff] %vm832, %v771
      %851 = vst.msk [vmem:[#allocation3 + $0x90] sm:$0xff] %vm832, %v773
      %852 = vst.msk [vmem:[#allocation3 + $0x98] sm:$0xff] %vm832, %v775
      %853 = vst.msk [vmem:[#allocation3 + $0xa0] sm:$0xff] %vm832, %v777
      %854 = vst.msk [vmem:[#allocation3 + $0xa8] sm:$0xff] %vm832, %v779
      %855 = vst.msk [vmem:[#allocation3 + $0xb0] sm:$0xff] %vm832, %v781
      %856 = vst.msk [vmem:[#allocation3 + $0xb8] sm:$0xff] %vm832, %v783
      %857 = vst.msk [vmem:[#allocation3 + $0xc0] sm:$0xff] %vm832, %v785
      %858 = vst.msk [vmem:[#allocation3 + $0xc8] sm:$0xff] %vm832, %v787
      %859 = vst.msk [vmem:[#allocation3 + $0xd0] sm:$0xff] %vm832, %v789
      %860 = vst.msk [vmem:[#allocation3 + $0xd8] sm:$0xff] %vm832, %v791
      %861 = vst.msk [vmem:[#allocation3 + $0xe0] sm:$0xff] %vm832, %v793
      %862 = vst.msk [vmem:[#allocation3 + $0xe8] sm:$0xff] %vm832, %v795
      %863 = vst.msk [vmem:[#allocation3 + $0xf0] sm:$0xff] %vm832, %v797
      %864 = vst.msk [vmem:[#allocation3 + $0xf8] sm:$0xff] %vm832, %v799
      %vm865 = vcmask 1045504
      %v866 = vrot.slane %v521, 2
      %v867 = vrot.slane %v522, 2
      %v868 = vsel %vm865, %v866, %v867
      %v869 = vrot.slane %v523, 2
      %v870 = vsel %vm865, %v867, %v869
      %v871 = vrot.slane %v524, 2
      %v872 = vrot.slane %v525, 2
      %v873 = vsel %vm865, %v871, %v872
      %v874 = vrot.slane %v526, 2
      %v875 = vsel %vm865, %v872, %v874
      %v876 = vrot.slane %v527, 2
      %v877 = vrot.slane %v528, 2
      %v878 = vsel %vm865, %v876, %v877
      %v879 = vrot.slane %v529, 2
      %v880 = vsel %vm865, %v877, %v879
      %v881 = vrot.slane %v530, 2
      %v882 = vrot.slane %v531, 2
      %v883 = vsel %vm865, %v881, %v882
      %v884 = vrot.slane %v532, 2
      %v885 = vsel %vm865, %v882, %v884
      %v886 = vrot.slane %v533, 2
      %v887 = vrot.slane %v534, 2
      %v888 = vsel %vm865, %v886, %v887
      %v889 = vrot.slane %v535, 2
      %v890 = vsel %vm865, %v887, %v889
      %v891 = vrot.slane %v536, 2
      %v892 = vrot.slane %v537, 2
      %v893 = vsel %vm865, %v891, %v892
      %v894 = vrot.slane %v538, 2
      %v895 = vsel %vm865, %v892, %v894
      %v896 = vrot.slane %v539, 2
      %v897 = vrot.slane %v540, 2
      %v898 = vsel %vm865, %v896, %v897
      %v899 = vrot.slane %v541, 2
      %v900 = vsel %vm865, %v897, %v899
      %v901 = vrot.slane %v542, 2
      %v902 = vrot.slane %v543, 2
      %v903 = vsel %vm865, %v901, %v902
      %v904 = vrot.slane %v544, 2
      %v905 = vsel %vm865, %v902, %v904
      %v906 = vrot.slane %v545, 2
      %v907 = vrot.slane %v546, 2
      %v908 = vsel %vm865, %v906, %v907
      %v909 = vrot.slane %v547, 2
      %v910 = vsel %vm865, %v907, %v909
      %v911 = vrot.slane %v548, 2
      %v912 = vrot.slane %v549, 2
      %v913 = vsel %vm865, %v911, %v912
      %v914 = vrot.slane %v550, 2
      %v915 = vsel %vm865, %v912, %v914
      %v916 = vrot.slane %v551, 2
      %v917 = vrot.slane %v552, 2
      %v918 = vsel %vm865, %v916, %v917
      %v919 = vrot.slane %v553, 2
      %v920 = vsel %vm865, %v917, %v919
      %v921 = vrot.slane %v554, 2
      %v922 = vrot.slane %v555, 2
      %v923 = vsel %vm865, %v921, %v922
      %v924 = vrot.slane %v556, 2
      %v925 = vsel %vm865, %v922, %v924
      %v926 = vrot.slane %v557, 2
      %v927 = vrot.slane %v558, 2
      %v928 = vsel %vm865, %v926, %v927
      %v929 = vrot.slane %v559, 2
      %v930 = vsel %vm865, %v927, %v929
      %v931 = vrot.slane %v560, 2
      %v932 = vrot.slane %v561, 2
      %v933 = vsel %vm865, %v931, %v932
      %v934 = vrot.slane %v562, 2
      %v935 = vsel %vm865, %v932, %v934
      %v936 = vrot.slane %v563, 2
      %v937 = vrot.slane %v564, 2
      %v938 = vsel %vm865, %v936, %v937
      %v939 = vrot.slane %v565, 2
      %v940 = vsel %vm865, %v937, %v939
      %v941 = vrot.slane %v566, 2
      %v942 = vrot.slane %v567, 2
      %v943 = vsel %vm865, %v941, %v942
      %v944 = vrot.slane %v568, 2
      %v945 = vsel %vm865, %v942, %v944
      %946 = vrot.lane.b32.xlu0 %v868, 16
      %v947 = vpop.permute.xlu0 %946
      %948 = vrot.lane.b32.xlu0 %v870, 16
      %v949 = vpop.permute.xlu0 %948
      %950 = vrot.lane.b32.xlu0 %v873, 16
      %v951 = vpop.permute.xlu0 %950
      %952 = vrot.lane.b32.xlu0 %v875, 16
      %v953 = vpop.permute.xlu0 %952
      %954 = vrot.lane.b32.xlu0 %v878, 16
      %v955 = vpop.permute.xlu0 %954
      %956 = vrot.lane.b32.xlu0 %v880, 16
      %v957 = vpop.permute.xlu0 %956
      %958 = vrot.lane.b32.xlu0 %v883, 16
      %v959 = vpop.permute.xlu0 %958
      %960 = vrot.lane.b32.xlu0 %v885, 16
      %v961 = vpop.permute.xlu0 %960
      %962 = vrot.lane.b32.xlu0 %v888, 16
      %v963 = vpop.permute.xlu0 %962
      %964 = vrot.lane.b32.xlu0 %v890, 16
      %v965 = vpop.permute.xlu0 %964
      %966 = vrot.lane.b32.xlu0 %v893, 16
      %v967 = vpop.permute.xlu0 %966
      %968 = vrot.lane.b32.xlu0 %v895, 16
      %v969 = vpop.permute.xlu0 %968
      %970 = vrot.lane.b32.xlu0 %v898, 16
      %v971 = vpop.permute.xlu0 %970
      %972 = vrot.lane.b32.xlu0 %v900, 16
      %v973 = vpop.permute.xlu0 %972
      %974 = vrot.lane.b32.xlu0 %v903, 16
      %v975 = vpop.permute.xlu0 %974
      %976 = vrot.lane.b32.xlu0 %v905, 16
      %v977 = vpop.permute.xlu0 %976
      %978 = vrot.lane.b32.xlu0 %v908, 16
      %v979 = vpop.permute.xlu0 %978
      %980 = vrot.lane.b32.xlu0 %v910, 16
      %v981 = vpop.permute.xlu0 %980
      %982 = vrot.lane.b32.xlu0 %v913, 16
      %v983 = vpop.permute.xlu0 %982
      %984 = vrot.lane.b32.xlu0 %v915, 16
      %v985 = vpop.permute.xlu0 %984
      %986 = vrot.lane.b32.xlu0 %v918, 16
      %v987 = vpop.permute.xlu0 %986
      %988 = vrot.lane.b32.xlu0 %v920, 16
      %v989 = vpop.permute.xlu0 %988
      %990 = vrot.lane.b32.xlu0 %v923, 16
      %v991 = vpop.permute.xlu0 %990
      %992 = vrot.lane.b32.xlu0 %v925, 16
      %v993 = vpop.permute.xlu0 %992
      %994 = vrot.lane.b32.xlu0 %v928, 16
      %v995 = vpop.permute.xlu0 %994
      %996 = vrot.lane.b32.xlu0 %v930, 16
      %v997 = vpop.permute.xlu0 %996
      %998 = vrot.lane.b32.xlu0 %v933, 16
      %v999 = vpop.permute.xlu0 %998
      %1000 = vrot.lane.b32.xlu0 %v935, 16
      %v1001 = vpop.permute.xlu0 %1000
      %1002 = vrot.lane.b32.xlu0 %v938, 16
      %v1003 = vpop.permute.xlu0 %1002
      %1004 = vrot.lane.b32.xlu0 %v940, 16
      %v1005 = vpop.permute.xlu0 %1004
      %1006 = vrot.lane.b32.xlu0 %v943, 16
      %v1007 = vpop.permute.xlu0 %1006
      %1008 = vrot.lane.b32.xlu0 %v945, 16
      %v1009 = vpop.permute.xlu0 %1008
      %vm1042 = vcmask 195712
      %1043 = vst.msk [vmem:[#allocation3] sm:$0xff] %vm1042, %v947
      %1044 = vst.msk [vmem:[#allocation3 + $0x8] sm:$0xff] %vm1042, %v949
      %1045 = vst.msk [vmem:[#allocation3 + $0x10] sm:$0xff] %vm1042, %v951
      %1046 = vst.msk [vmem:[#allocation3 + $0x18] sm:$0xff] %vm1042, %v953
      %1047 = vst.msk [vmem:[#allocation3 + $0x20] sm:$0xff] %vm1042, %v955
      %1048 = vst.msk [vmem:[#allocation3 + $0x28] sm:$0xff] %vm1042, %v957
      %1049 = vst.msk [vmem:[#allocation3 + $0x30] sm:$0xff] %vm1042, %v959
      %1050 = vst.msk [vmem:[#allocation3 + $0x38] sm:$0xff] %vm1042, %v961
      %1051 = vst.msk [vmem:[#allocation3 + $0x40] sm:$0xff] %vm1042, %v963
      %1052 = vst.msk [vmem:[#allocation3 + $0x48] sm:$0xff] %vm1042, %v965
      %1053 = vst.msk [vmem:[#allocation3 + $0x50] sm:$0xff] %vm1042, %v967
      %1054 = vst.msk [vmem:[#allocation3 + $0x58] sm:$0xff] %vm1042, %v969
      %1055 = vst.msk [vmem:[#allocation3 + $0x60] sm:$0xff] %vm1042, %v971
      %1056 = vst.msk [vmem:[#allocation3 + $0x68] sm:$0xff] %vm1042, %v973
      %1057 = vst.msk [vmem:[#allocation3 + $0x70] sm:$0xff] %vm1042, %v975
      %1058 = vst.msk [vmem:[#allocation3 + $0x78] sm:$0xff] %vm1042, %v977
      %1059 = vst.msk [vmem:[#allocation3 + $0x80] sm:$0xff] %vm1042, %v979
      %1060 = vst.msk [vmem:[#allocation3 + $0x88] sm:$0xff] %vm1042, %v981
      %1061 = vst.msk [vmem:[#allocation3 + $0x90] sm:$0xff] %vm1042, %v983
      %1062 = vst.msk [vmem:[#allocation3 + $0x98] sm:$0xff] %vm1042, %v985
      %1063 = vst.msk [vmem:[#allocation3 + $0xa0] sm:$0xff] %vm1042, %v987
      %1064 = vst.msk [vmem:[#allocation3 + $0xa8] sm:$0xff] %vm1042, %v989
      %1065 = vst.msk [vmem:[#allocation3 + $0xb0] sm:$0xff] %vm1042, %v991
      %1066 = vst.msk [vmem:[#allocation3 + $0xb8] sm:$0xff] %vm1042, %v993
      %1067 = vst.msk [vmem:[#allocation3 + $0xc0] sm:$0xff] %vm1042, %v995
      %1068 = vst.msk [vmem:[#allocation3 + $0xc8] sm:$0xff] %vm1042, %v997
      %1069 = vst.msk [vmem:[#allocation3 + $0xd0] sm:$0xff] %vm1042, %v999
      %1070 = vst.msk [vmem:[#allocation3 + $0xd8] sm:$0xff] %vm1042, %v1001
      %1071 = vst.msk [vmem:[#allocation3 + $0xe0] sm:$0xff] %vm1042, %v1003
      %1072 = vst.msk [vmem:[#allocation3 + $0xe8] sm:$0xff] %vm1042, %v1005
      %1073 = vst.msk [vmem:[#allocation3 + $0xf0] sm:$0xff] %vm1042, %v1007
      %1074 = vst.msk [vmem:[#allocation3 + $0xf8] sm:$0xff] %vm1042, %v1009
      %1077 = vrot.lane.b32.xlu0 %v524, 24
      %v1078 = vpop.permute.xlu0 %1077
      %1079 = vrot.lane.b32.xlu0 %v525, 24
      %v1080 = vpop.permute.xlu0 %1079
      %1081 = vrot.lane.b32.xlu0 %v527, 24
      %v1082 = vpop.permute.xlu0 %1081
      %1083 = vrot.lane.b32.xlu0 %v528, 24
      %v1084 = vpop.permute.xlu0 %1083
      %1085 = vrot.lane.b32.xlu0 %v530, 24
      %v1086 = vpop.permute.xlu0 %1085
      %1087 = vrot.lane.b32.xlu0 %v531, 24
      %v1088 = vpop.permute.xlu0 %1087
      %1089 = vrot.lane.b32.xlu0 %v533, 24
      %v1090 = vpop.permute.xlu0 %1089
      %1091 = vrot.lane.b32.xlu0 %v534, 24
      %v1092 = vpop.permute.xlu0 %1091
      %1093 = vrot.lane.b32.xlu0 %v536, 24
      %v1094 = vpop.permute.xlu0 %1093
      %1095 = vrot.lane.b32.xlu0 %v537, 24
      %v1096 = vpop.permute.xlu0 %1095
      %1097 = vrot.lane.b32.xlu0 %v539, 24
      %v1098 = vpop.permute.xlu0 %1097
      %1099 = vrot.lane.b32.xlu0 %v540, 24
      %v1100 = vpop.permute.xlu0 %1099
      %1101 = vrot.lane.b32.xlu0 %v542, 24
      %v1102 = vpop.permute.xlu0 %1101
      %1103 = vrot.lane.b32.xlu0 %v543, 24
      %v1104 = vpop.permute.xlu0 %1103
      %1105 = vrot.lane.b32.xlu0 %v545, 24
      %v1106 = vpop.permute.xlu0 %1105
      %1107 = vrot.lane.b32.xlu0 %v546, 24
      %v1108 = vpop.permute.xlu0 %1107
      %1109 = vrot.lane.b32.xlu0 %v548, 24
      %v1110 = vpop.permute.xlu0 %1109
      %1111 = vrot.lane.b32.xlu0 %v549, 24
      %v1112 = vpop.permute.xlu0 %1111
      %1113 = vrot.lane.b32.xlu0 %v551, 24
      %v1114 = vpop.permute.xlu0 %1113
      %1115 = vrot.lane.b32.xlu0 %v552, 24
      %v1116 = vpop.permute.xlu0 %1115
      %1117 = vrot.lane.b32.xlu0 %v554, 24
      %v1118 = vpop.permute.xlu0 %1117
      %1119 = vrot.lane.b32.xlu0 %v555, 24
      %v1120 = vpop.permute.xlu0 %1119
      %1121 = vrot.lane.b32.xlu0 %v557, 24
      %v1122 = vpop.permute.xlu0 %1121
      %1123 = vrot.lane.b32.xlu0 %v558, 24
      %v1124 = vpop.permute.xlu0 %1123
      %1125 = vrot.lane.b32.xlu0 %v560, 24
      %v1126 = vpop.permute.xlu0 %1125
      %1127 = vrot.lane.b32.xlu0 %v561, 24
      %v1128 = vpop.permute.xlu0 %1127
      %1129 = vrot.lane.b32.xlu0 %v563, 24
      %v1130 = vpop.permute.xlu0 %1129
      %1131 = vrot.lane.b32.xlu0 %v564, 24
      %v1132 = vpop.permute.xlu0 %1131
      %1133 = vrot.lane.b32.xlu0 %v566, 24
      %v1134 = vpop.permute.xlu0 %1133
      %1135 = vrot.lane.b32.xlu0 %v567, 24
      %v1136 = vpop.permute.xlu0 %1135
      %1137 = vrot.lane.b32.xlu0 %v569, 24
      %v1138 = vpop.permute.xlu0 %1137
      %1139 = vrot.lane.b32.xlu0 %v570, 24
      %v1140 = vpop.permute.xlu0 %1139
      %vm1173 = vcmask 261312
      %1174 = vst.msk [vmem:[#allocation3] sm:$0xff] %vm1173, %v1078
      %1175 = vst.msk [vmem:[#allocation3 + $0x8] sm:$0xff] %vm1173, %v1080
      %1176 = vst.msk [vmem:[#allocation3 + $0x10] sm:$0xff] %vm1173, %v1082
      %1177 = vst.msk [vmem:[#allocation3 + $0x18] sm:$0xff] %vm1173, %v1084
      %1178 = vst.msk [vmem:[#allocation3 + $0x20] sm:$0xff] %vm1173, %v1086
      %1179 = vst.msk [vmem:[#allocation3 + $0x28] sm:$0xff] %vm1173, %v1088
      %1180 = vst.msk [vmem:[#allocation3 + $0x30] sm:$0xff] %vm1173, %v1090
      %1181 = vst.msk [vmem:[#allocation3 + $0x38] sm:$0xff] %vm1173, %v1092
      %1182 = vst.msk [vmem:[#allocation3 + $0x40] sm:$0xff] %vm1173, %v1094
      %1183 = vst.msk [vmem:[#allocation3 + $0x48] sm:$0xff] %vm1173, %v1096
      %1184 = vst.msk [vmem:[#allocation3 + $0x50] sm:$0xff] %vm1173, %v1098
      %1185 = vst.msk [vmem:[#allocation3 + $0x58] sm:$0xff] %vm1173, %v1100
      %1186 = vst.msk [vmem:[#allocation3 + $0x60] sm:$0xff] %vm1173, %v1102
      %1187 = vst.msk [vmem:[#allocation3 + $0x68] sm:$0xff] %vm1173, %v1104
      %1188 = vst.msk [vmem:[#allocation3 + $0x70] sm:$0xff] %vm1173, %v1106
      %1189 = vst.msk [vmem:[#allocation3 + $0x78] sm:$0xff] %vm1173, %v1108
      %1190 = vst.msk [vmem:[#allocation3 + $0x80] sm:$0xff] %vm1173, %v1110
      %1191 = vst.msk [vmem:[#allocation3 + $0x88] sm:$0xff] %vm1173, %v1112
      %1192 = vst.msk [vmem:[#allocation3 + $0x90] sm:$0xff] %vm1173, %v1114
      %1193 = vst.msk [vmem:[#allocation3 + $0x98] sm:$0xff] %vm1173, %v1116
      %1194 = vst.msk [vmem:[#allocation3 + $0xa0] sm:$0xff] %vm1173, %v1118
      %1195 = vst.msk [vmem:[#allocation3 + $0xa8] sm:$0xff] %vm1173, %v1120
      %1196 = vst.msk [vmem:[#allocation3 + $0xb0] sm:$0xff] %vm1173, %v1122
      %1197 = vst.msk [vmem:[#allocation3 + $0xb8] sm:$0xff] %vm1173, %v1124
      %1198 = vst.msk [vmem:[#allocation3 + $0xc0] sm:$0xff] %vm1173, %v1126
      %1199 = vst.msk [vmem:[#allocation3 + $0xc8] sm:$0xff] %vm1173, %v1128
      %1200 = vst.msk [vmem:[#allocation3 + $0xd0] sm:$0xff] %vm1173, %v1130
      %1201 = vst.msk [vmem:[#allocation3 + $0xd8] sm:$0xff] %vm1173, %v1132
      %1202 = vst.msk [vmem:[#allocation3 + $0xe0] sm:$0xff] %vm1173, %v1134
      %1203 = vst.msk [vmem:[#allocation3 + $0xe8] sm:$0xff] %vm1173, %v1136
      %1204 = vst.msk [vmem:[#allocation3 + $0xf0] sm:$0xff] %vm1173, %v1138
      %1205 = vst.msk [vmem:[#allocation3 + $0xf8] sm:$0xff] %vm1173, %v1140
      %v1207 = vrot.slane %v569, 1
      %v1208 = vrot.slane %v570, 1
      %v1209 = vsel %vm655, %v1207, %v1208
      %v1210 = vrot.slane %v571, 1
      %v1211 = vsel %vm655, %v1208, %v1210
      %1212 = vrot.lane.b32.xlu0 %v663, 32
      %v1213 = vpop.permute.xlu0 %1212
      %1214 = vrot.lane.b32.xlu0 %v665, 32
      %v1215 = vpop.permute.xlu0 %1214
      %1216 = vrot.lane.b32.xlu0 %v668, 32
      %v1217 = vpop.permute.xlu0 %1216
      %1218 = vrot.lane.b32.xlu0 %v670, 32
      %v1219 = vpop.permute.xlu0 %1218
      %1220 = vrot.lane.b32.xlu0 %v673, 32
      %v1221 = vpop.permute.xlu0 %1220
      %1222 = vrot.lane.b32.xlu0 %v675, 32
      %v1223 = vpop.permute.xlu0 %1222
      %1224 = vrot.lane.b32.xlu0 %v678, 32
      %v1225 = vpop.permute.xlu0 %1224
      %1226 = vrot.lane.b32.xlu0 %v680, 32
      %v1227 = vpop.permute.xlu0 %1226
      %1228 = vrot.lane.b32.xlu0 %v683, 32
      %v1229 = vpop.permute.xlu0 %1228
      %1230 = vrot.lane.b32.xlu0 %v685, 32
      %v1231 = vpop.permute.xlu0 %1230
      %1232 = vrot.lane.b32.xlu0 %v688, 32
      %v1233 = vpop.permute.xlu0 %1232
      %1234 = vrot.lane.b32.xlu0 %v690, 32
      %v1235 = vpop.permute.xlu0 %1234
      %1236 = vrot.lane.b32.xlu0 %v693, 32
      %v1237 = vpop.permute.xlu0 %1236
      %1238 = vrot.lane.b32.xlu0 %v695, 32
      %v1239 = vpop.permute.xlu0 %1238
      %1240 = vrot.lane.b32.xlu0 %v698, 32
      %v1241 = vpop.permute.xlu0 %1240
      %1242 = vrot.lane.b32.xlu0 %v700, 32
      %v1243 = vpop.permute.xlu0 %1242
      %1244 = vrot.lane.b32.xlu0 %v703, 32
      %v1245 = vpop.permute.xlu0 %1244
      %1246 = vrot.lane.b32.xlu0 %v705, 32
      %v1247 = vpop.permute.xlu0 %1246
      %1248 = vrot.lane.b32.xlu0 %v708, 32
      %v1249 = vpop.permute.xlu0 %1248
      %1250 = vrot.lane.b32.xlu0 %v710, 32
      %v1251 = vpop.permute.xlu0 %1250
      %1252 = vrot.lane.b32.xlu0 %v713, 32
      %v1253 = vpop.permute.xlu0 %1252
      %1254 = vrot.lane.b32.xlu0 %v715, 32
      %v1255 = vpop.permute.xlu0 %1254
      %1256 = vrot.lane.b32.xlu0 %v718, 32
      %v1257 = vpop.permute.xlu0 %1256
      %1258 = vrot.lane.b32.xlu0 %v720, 32
      %v1259 = vpop.permute.xlu0 %1258
      %1260 = vrot.lane.b32.xlu0 %v723, 32
      %v1261 = vpop.permute.xlu0 %1260
      %1262 = vrot.lane.b32.xlu0 %v725, 32
      %v1263 = vpop.permute.xlu0 %1262
      %1264 = vrot.lane.b32.xlu0 %v728, 32
      %v1265 = vpop.permute.xlu0 %1264
      %1266 = vrot.lane.b32.xlu0 %v730, 32
      %v1267 = vpop.permute.xlu0 %1266
      %1268 = vrot.lane.b32.xlu0 %v733, 32
      %v1269 = vpop.permute.xlu0 %1268
      %1270 = vrot.lane.b32.xlu0 %v735, 32
      %v1271 = vpop.permute.xlu0 %1270
      %1272 = vrot.lane.b32.xlu0 %v1209, 32
      %v1273 = vpop.permute.xlu0 %1272
      %1274 = vrot.lane.b32.xlu0 %v1211, 32
      %v1275 = vpop.permute.xlu0 %1274
      %vm1308 = vcmask 326912
      %1309 = vst.msk [vmem:[#allocation3] sm:$0xff] %vm1308, %v1213
      %1310 = vst.msk [vmem:[#allocation3 + $0x8] sm:$0xff] %vm1308, %v1215
      %1311 = vst.msk [vmem:[#allocation3 + $0x10] sm:$0xff] %vm1308, %v1217
      %1312 = vst.msk [vmem:[#allocation3 + $0x18] sm:$0xff] %vm1308, %v1219
      %1313 = vst.msk [vmem:[#allocation3 + $0x20] sm:$0xff] %vm1308, %v1221
      %1314 = vst.msk [vmem:[#allocation3 + $0x28] sm:$0xff] %vm1308, %v1223
      %1315 = vst.msk [vmem:[#allocation3 + $0x30] sm:$0xff] %vm1308, %v1225
      %1316 = vst.msk [vmem:[#allocation3 + $0x38] sm:$0xff] %vm1308, %v1227
      %1317 = vst.msk [vmem:[#allocation3 + $0x40] sm:$0xff] %vm1308, %v1229
      %1318 = vst.msk [vmem:[#allocation3 + $0x48] sm:$0xff] %vm1308, %v1231
      %1319 = vst.msk [vmem:[#allocation3 + $0x50] sm:$0xff] %vm1308, %v1233
      %1320 = vst.msk [vmem:[#allocation3 + $0x58] sm:$0xff] %vm1308, %v1235
      %1321 = vst.msk [vmem:[#allocation3 + $0x60] sm:$0xff] %vm1308, %v1237
      %1322 = vst.msk [vmem:[#allocation3 + $0x68] sm:$0xff] %vm1308, %v1239
      %1323 = vst.msk [vmem:[#allocation3 + $0x70] sm:$0xff] %vm1308, %v1241
      %1324 = vst.msk [vmem:[#allocation3 + $0x78] sm:$0xff] %vm1308, %v1243
      %1325 = vst.msk [vmem:[#allocation3 + $0x80] sm:$0xff] %vm1308, %v1245
      %1326 = vst.msk [vmem:[#allocation3 + $0x88] sm:$0xff] %vm1308, %v1247
      %1327 = vst.msk [vmem:[#allocation3 + $0x90] sm:$0xff] %vm1308, %v1249
      %1328 = vst.msk [vmem:[#allocation3 + $0x98] sm:$0xff] %vm1308, %v1251
      %1329 = vst.msk [vmem:[#allocation3 + $0xa0] sm:$0xff] %vm1308, %v1253
      %1330 = vst.msk [vmem:[#allocation3 + $0xa8] sm:$0xff] %vm1308, %v1255
      %1331 = vst.msk [vmem:[#allocation3 + $0xb0] sm:$0xff] %vm1308, %v1257
      %1332 = vst.msk [vmem:[#allocation3 + $0xb8] sm:$0xff] %vm1308, %v1259
      %1333 = vst.msk [vmem:[#allocation3 + $0xc0] sm:$0xff] %vm1308, %v1261
      %1334 = vst.msk [vmem:[#allocation3 + $0xc8] sm:$0xff] %vm1308, %v1263
      %1335 = vst.msk [vmem:[#allocation3 + $0xd0] sm:$0xff] %vm1308, %v1265
      %1336 = vst.msk [vmem:[#allocation3 + $0xd8] sm:$0xff] %vm1308, %v1267
      %1337 = vst.msk [vmem:[#allocation3 + $0xe0] sm:$0xff] %vm1308, %v1269
      %1338 = vst.msk [vmem:[#allocation3 + $0xe8] sm:$0xff] %vm1308, %v1271
      %1339 = vst.msk [vmem:[#allocation3 + $0xf0] sm:$0xff] %vm1308, %v1273
      %1340 = vst.msk [vmem:[#allocation3 + $0xf8] sm:$0xff] %vm1308, %v1275
      %v1341 = vrot.slane %v569, 2
      %v1342 = vrot.slane %v570, 2
      %v1343 = vsel %vm865, %v1341, %v1342
      %v1344 = vrot.slane %v571, 2
      %v1345 = vsel %vm865, %v1342, %v1344
      %1346 = vrot.lane.b32.xlu0 %v873, 40
      %v1347 = vpop.permute.xlu0 %1346
      %1348 = vrot.lane.b32.xlu0 %v875, 40
      %v1349 = vpop.permute.xlu0 %1348
      %1350 = vrot.lane.b32.xlu0 %v878, 40
      %v1351 = vpop.permute.xlu0 %1350
      %1352 = vrot.lane.b32.xlu0 %v880, 40
      %v1353 = vpop.permute.xlu0 %1352
      %1354 = vrot.lane.b32.xlu0 %v883, 40
      %v1355 = vpop.permute.xlu0 %1354
      %1356 = vrot.lane.b32.xlu0 %v885, 40
      %v1357 = vpop.permute.xlu0 %1356
      %1358 = vrot.lane.b32.xlu0 %v888, 40
      %v1359 = vpop.permute.xlu0 %1358
      %1360 = vrot.lane.b32.xlu0 %v890, 40
      %v1361 = vpop.permute.xlu0 %1360
      %1362 = vrot.lane.b32.xlu0 %v893, 40
      %v1363 = vpop.permute.xlu0 %1362
      %1364 = vrot.lane.b32.xlu0 %v895, 40
      %v1365 = vpop.permute.xlu0 %1364
      %1366 = vrot.lane.b32.xlu0 %v898, 40
      %v1367 = vpop.permute.xlu0 %1366
      %1368 = vrot.lane.b32.xlu0 %v900, 40
      %v1369 = vpop.permute.xlu0 %1368
      %1370 = vrot.lane.b32.xlu0 %v903, 40
      %v1371 = vpop.permute.xlu0 %1370
      %1372 = vrot.lane.b32.xlu0 %v905, 40
      %v1373 = vpop.permute.xlu0 %1372
      %1374 = vrot.lane.b32.xlu0 %v908, 40
      %v1375 = vpop.permute.xlu0 %1374
      %1376 = vrot.lane.b32.xlu0 %v910, 40
      %v1377 = vpop.permute.xlu0 %1376
      %1378 = vrot.lane.b32.xlu0 %v913, 40
      %v1379 = vpop.permute.xlu0 %1378
      %1380 = vrot.lane.b32.xlu0 %v915, 40
      %v1381 = vpop.permute.xlu0 %1380
      %1382 = vrot.lane.b32.xlu0 %v918, 40
      %v1383 = vpop.permute.xlu0 %1382
      %1384 = vrot.lane.b32.xlu0 %v920, 40
      %v1385 = vpop.permute.xlu0 %1384
      %1386 = vrot.lane.b32.xlu0 %v923, 40
      %v1387 = vpop.permute.xlu0 %1386
      %1388 = vrot.lane.b32.xlu0 %v925, 40
      %v1389 = vpop.permute.xlu0 %1388
      %1390 = vrot.lane.b32.xlu0 %v928, 40
      %v1391 = vpop.permute.xlu0 %1390
      %1392 = vrot.lane.b32.xlu0 %v930, 40
      %v1393 = vpop.permute.xlu0 %1392
      %1394 = vrot.lane.b32.xlu0 %v933, 40
      %v1395 = vpop.permute.xlu0 %1394
      %1396 = vrot.lane.b32.xlu0 %v935, 40
      %v1397 = vpop.permute.xlu0 %1396
      %1398 = vrot.lane.b32.xlu0 %v938, 40
      %v1399 = vpop.permute.xlu0 %1398
      %1400 = vrot.lane.b32.xlu0 %v940, 40
      %v1401 = vpop.permute.xlu0 %1400
      %1402 = vrot.lane.b32.xlu0 %v943, 40
      %v1403 = vpop.permute.xlu0 %1402
      %1404 = vrot.lane.b32.xlu0 %v945, 40
      %v1405 = vpop.permute.xlu0 %1404
      %1406 = vrot.lane.b32.xlu0 %v1343, 40
      %v1407 = vpop.permute.xlu0 %1406
      %1408 = vrot.lane.b32.xlu0 %v1345, 40
      %v1409 = vpop.permute.xlu0 %1408
      %vm1442 = vcmask 392512
      %1443 = vst.msk [vmem:[#allocation3] sm:$0xff] %vm1442, %v1347
      %1444 = vst.msk [vmem:[#allocation3 + $0x8] sm:$0xff] %vm1442, %v1349
      %1445 = vst.msk [vmem:[#allocation3 + $0x10] sm:$0xff] %vm1442, %v1351
      %1446 = vst.msk [vmem:[#allocation3 + $0x18] sm:$0xff] %vm1442, %v1353
      %1447 = vst.msk [vmem:[#allocation3 + $0x20] sm:$0xff] %vm1442, %v1355
      %1448 = vst.msk [vmem:[#allocation3 + $0x28] sm:$0xff] %vm1442, %v1357
      %1449 = vst.msk [vmem:[#allocation3 + $0x30] sm:$0xff] %vm1442, %v1359
      %1450 = vst.msk [vmem:[#allocation3 + $0x38] sm:$0xff] %vm1442, %v1361
      %1451 = vst.msk [vmem:[#allocation3 + $0x40] sm:$0xff] %vm1442, %v1363
      %1452 = vst.msk [vmem:[#allocation3 + $0x48] sm:$0xff] %vm1442, %v1365
      %1453 = vst.msk [vmem:[#allocation3 + $0x50] sm:$0xff] %vm1442, %v1367
      %1454 = vst.msk [vmem:[#allocation3 + $0x58] sm:$0xff] %vm1442, %v1369
      %1455 = vst.msk [vmem:[#allocation3 + $0x60] sm:$0xff] %vm1442, %v1371
      %1456 = vst.msk [vmem:[#allocation3 + $0x68] sm:$0xff] %vm1442, %v1373
      %1457 = vst.msk [vmem:[#allocation3 + $0x70] sm:$0xff] %vm1442, %v1375
      %1458 = vst.msk [vmem:[#allocation3 + $0x78] sm:$0xff] %vm1442, %v1377
      %1459 = vst.msk [vmem:[#allocation3 + $0x80] sm:$0xff] %vm1442, %v1379
      %1460 = vst.msk [vmem:[#allocation3 + $0x88] sm:$0xff] %vm1442, %v1381
      %1461 = vst.msk [vmem:[#allocation3 + $0x90] sm:$0xff] %vm1442, %v1383
      %1462 = vst.msk [vmem:[#allocation3 + $0x98] sm:$0xff] %vm1442, %v1385
      %1463 = vst.msk [vmem:[#allocation3 + $0xa0] sm:$0xff] %vm1442, %v1387
      %1464 = vst.msk [vmem:[#allocation3 + $0xa8] sm:$0xff] %vm1442, %v1389
      %1465 = vst.msk [vmem:[#allocation3 + $0xb0] sm:$0xff] %vm1442, %v1391
      %1466 = vst.msk [vmem:[#allocation3 + $0xb8] sm:$0xff] %vm1442, %v1393
      %1467 = vst.msk [vmem:[#allocation3 + $0xc0] sm:$0xff] %vm1442, %v1395
      %1468 = vst.msk [vmem:[#allocation3 + $0xc8] sm:$0xff] %vm1442, %v1397
      %1469 = vst.msk [vmem:[#allocation3 + $0xd0] sm:$0xff] %vm1442, %v1399
      %1470 = vst.msk [vmem:[#allocation3 + $0xd8] sm:$0xff] %vm1442, %v1401
      %1471 = vst.msk [vmem:[#allocation3 + $0xe0] sm:$0xff] %vm1442, %v1403
      %1472 = vst.msk [vmem:[#allocation3 + $0xe8] sm:$0xff] %vm1442, %v1405
      %1473 = vst.msk [vmem:[#allocation3 + $0xf0] sm:$0xff] %vm1442, %v1407
      %1474 = vst.msk [vmem:[#allocation3 + $0xf8] sm:$0xff] %vm1442, %v1409
      %1477 = vrot.lane.b32.xlu0 %v527, 48
      %v1478 = vpop.permute.xlu0 %1477
      %1479 = vrot.lane.b32.xlu0 %v528, 48
      %v1480 = vpop.permute.xlu0 %1479
      %1481 = vrot.lane.b32.xlu0 %v530, 48
      %v1482 = vpop.permute.xlu0 %1481
      %1483 = vrot.lane.b32.xlu0 %v531, 48
      %v1484 = vpop.permute.xlu0 %1483
      %1485 = vrot.lane.b32.xlu0 %v533, 48
      %v1486 = vpop.permute.xlu0 %1485
      %1487 = vrot.lane.b32.xlu0 %v534, 48
      %v1488 = vpop.permute.xlu0 %1487
      %1489 = vrot.lane.b32.xlu0 %v536, 48
      %v1490 = vpop.permute.xlu0 %1489
      %1491 = vrot.lane.b32.xlu0 %v537, 48
      %v1492 = vpop.permute.xlu0 %1491
      %1493 = vrot.lane.b32.xlu0 %v539, 48
      %v1494 = vpop.permute.xlu0 %1493
      %1495 = vrot.lane.b32.xlu0 %v540, 48
      %v1496 = vpop.permute.xlu0 %1495
      %1497 = vrot.lane.b32.xlu0 %v542, 48
      %v1498 = vpop.permute.xlu0 %1497
      %1499 = vrot.lane.b32.xlu0 %v543, 48
      %v1500 = vpop.permute.xlu0 %1499
      %1501 = vrot.lane.b32.xlu0 %v545, 48
      %v1502 = vpop.permute.xlu0 %1501
      %1503 = vrot.lane.b32.xlu0 %v546, 48
      %v1504 = vpop.permute.xlu0 %1503
      %1505 = vrot.lane.b32.xlu0 %v548, 48
      %v1506 = vpop.permute.xlu0 %1505
      %1507 = vrot.lane.b32.xlu0 %v549, 48
      %v1508 = vpop.permute.xlu0 %1507
      %1509 = vrot.lane.b32.xlu0 %v551, 48
      %v1510 = vpop.permute.xlu0 %1509
      %1511 = vrot.lane.b32.xlu0 %v552, 48
      %v1512 = vpop.permute.xlu0 %1511
      %1513 = vrot.lane.b32.xlu0 %v554, 48
      %v1514 = vpop.permute.xlu0 %1513
      %1515 = vrot.lane.b32.xlu0 %v555, 48
      %v1516 = vpop.permute.xlu0 %1515
      %1517 = vrot.lane.b32.xlu0 %v557, 48
      %v1518 = vpop.permute.xlu0 %1517
      %1519 = vrot.lane.b32.xlu0 %v558, 48
      %v1520 = vpop.permute.xlu0 %1519
      %1521 = vrot.lane.b32.xlu0 %v560, 48
      %v1522 = vpop.permute.xlu0 %1521
      %1523 = vrot.lane.b32.xlu0 %v561, 48
      %v1524 = vpop.permute.xlu0 %1523
      %1525 = vrot.lane.b32.xlu0 %v563, 48
      %v1526 = vpop.permute.xlu0 %1525
      %1527 = vrot.lane.b32.xlu0 %v564, 48
      %v1528 = vpop.permute.xlu0 %1527
      %1529 = vrot.lane.b32.xlu0 %v566, 48
      %v1530 = vpop.permute.xlu0 %1529
      %1531 = vrot.lane.b32.xlu0 %v567, 48
      %v1532 = vpop.permute.xlu0 %1531
      %1533 = vrot.lane.b32.xlu0 %v569, 48
      %v1534 = vpop.permute.xlu0 %1533
      %1535 = vrot.lane.b32.xlu0 %v570, 48
      %v1536 = vpop.permute.xlu0 %1535
      %1537 = vrot.lane.b32.xlu0 %v572, 48
      %v1538 = vpop.permute.xlu0 %1537
      %1539 = vrot.lane.b32.xlu0 %v573, 48
      %v1540 = vpop.permute.xlu0 %1539
      %vm1573 = vcmask 458112
      %1574 = vst.msk [vmem:[#allocation3] sm:$0xff] %vm1573, %v1478
      %1575 = vst.msk [vmem:[#allocation3 + $0x8] sm:$0xff] %vm1573, %v1480
      %1576 = vst.msk [vmem:[#allocation3 + $0x10] sm:$0xff] %vm1573, %v1482
      %1577 = vst.msk [vmem:[#allocation3 + $0x18] sm:$0xff] %vm1573, %v1484
      %1578 = vst.msk [vmem:[#allocation3 + $0x20] sm:$0xff] %vm1573, %v1486
      %1579 = vst.msk [vmem:[#allocation3 + $0x28] sm:$0xff] %vm1573, %v1488
      %1580 = vst.msk [vmem:[#allocation3 + $0x30] sm:$0xff] %vm1573, %v1490
      %1581 = vst.msk [vmem:[#allocation3 + $0x38] sm:$0xff] %vm1573, %v1492
      %1582 = vst.msk [vmem:[#allocation3 + $0x40] sm:$0xff] %vm1573, %v1494
      %1583 = vst.msk [vmem:[#allocation3 + $0x48] sm:$0xff] %vm1573, %v1496
      %1584 = vst.msk [vmem:[#allocation3 + $0x50] sm:$0xff] %vm1573, %v1498
      %1585 = vst.msk [vmem:[#allocation3 + $0x58] sm:$0xff] %vm1573, %v1500
      %1586 = vst.msk [vmem:[#allocation3 + $0x60] sm:$0xff] %vm1573, %v1502
      %1587 = vst.msk [vmem:[#allocation3 + $0x68] sm:$0xff] %vm1573, %v1504
      %1588 = vst.msk [vmem:[#allocation3 + $0x70] sm:$0xff] %vm1573, %v1506
      %1589 = vst.msk [vmem:[#allocation3 + $0x78] sm:$0xff] %vm1573, %v1508
      %1590 = vst.msk [vmem:[#allocation3 + $0x80] sm:$0xff] %vm1573, %v1510
      %1591 = vst.msk [vmem:[#allocation3 + $0x88] sm:$0xff] %vm1573, %v1512
      %1592 = vst.msk [vmem:[#allocation3 + $0x90] sm:$0xff] %vm1573, %v1514
      %1593 = vst.msk [vmem:[#allocation3 + $0x98] sm:$0xff] %vm1573, %v1516
      %1594 = vst.msk [vmem:[#allocation3 + $0xa0] sm:$0xff] %vm1573, %v1518
      %1595 = vst.msk [vmem:[#allocation3 + $0xa8] sm:$0xff] %vm1573, %v1520
      %1596 = vst.msk [vmem:[#allocation3 + $0xb0] sm:$0xff] %vm1573, %v1522
      %1597 = vst.msk [vmem:[#allocation3 + $0xb8] sm:$0xff] %vm1573, %v1524
      %1598 = vst.msk [vmem:[#allocation3 + $0xc0] sm:$0xff] %vm1573, %v1526
      %1599 = vst.msk [vmem:[#allocation3 + $0xc8] sm:$0xff] %vm1573, %v1528
      %1600 = vst.msk [vmem:[#allocation3 + $0xd0] sm:$0xff] %vm1573, %v1530
      %1601 = vst.msk [vmem:[#allocation3 + $0xd8] sm:$0xff] %vm1573, %v1532
      %1602 = vst.msk [vmem:[#allocation3 + $0xe0] sm:$0xff] %vm1573, %v1534
      %1603 = vst.msk [vmem:[#allocation3 + $0xe8] sm:$0xff] %vm1573, %v1536
      %1604 = vst.msk [vmem:[#allocation3 + $0xf0] sm:$0xff] %vm1573, %v1538
      %1605 = vst.msk [vmem:[#allocation3 + $0xf8] sm:$0xff] %vm1573, %v1540
      %v1607 = vrot.slane %v572, 1
      %v1608 = vrot.slane %v573, 1
      %v1609 = vsel %vm655, %v1607, %v1608
      %v1610 = vrot.slane %v574, 1
      %v1611 = vsel %vm655, %v1608, %v1610
      %1612 = vrot.lane.b32.xlu0 %v668, 56
      %v1613 = vpop.permute.xlu0 %1612
      %1614 = vrot.lane.b32.xlu0 %v670, 56
      %v1615 = vpop.permute.xlu0 %1614
      %1616 = vrot.lane.b32.xlu0 %v673, 56
      %v1617 = vpop.permute.xlu0 %1616
      %1618 = vrot.lane.b32.xlu0 %v675, 56
      %v1619 = vpop.permute.xlu0 %1618
      %1620 = vrot.lane.b32.xlu0 %v678, 56
      %v1621 = vpop.permute.xlu0 %1620
      %1622 = vrot.lane.b32.xlu0 %v680, 56
      %v1623 = vpop.permute.xlu0 %1622
      %1624 = vrot.lane.b32.xlu0 %v683, 56
      %v1625 = vpop.permute.xlu0 %1624
      %1626 = vrot.lane.b32.xlu0 %v685, 56
      %v1627 = vpop.permute.xlu0 %1626
      %1628 = vrot.lane.b32.xlu0 %v688, 56
      %v1629 = vpop.permute.xlu0 %1628
      %1630 = vrot.lane.b32.xlu0 %v690, 56
      %v1631 = vpop.permute.xlu0 %1630
      %1632 = vrot.lane.b32.xlu0 %v693, 56
      %v1633 = vpop.permute.xlu0 %1632
      %1634 = vrot.lane.b32.xlu0 %v695, 56
      %v1635 = vpop.permute.xlu0 %1634
      %1636 = vrot.lane.b32.xlu0 %v698, 56
      %v1637 = vpop.permute.xlu0 %1636
      %1638 = vrot.lane.b32.xlu0 %v700, 56
      %v1639 = vpop.permute.xlu0 %1638
      %1640 = vrot.lane.b32.xlu0 %v703, 56
      %v1641 = vpop.permute.xlu0 %1640
      %1642 = vrot.lane.b32.xlu0 %v705, 56
      %v1643 = vpop.permute.xlu0 %1642
      %1644 = vrot.lane.b32.xlu0 %v708, 56
      %v1645 = vpop.permute.xlu0 %1644
      %1646 = vrot.lane.b32.xlu0 %v710, 56
      %v1647 = vpop.permute.xlu0 %1646
      %1648 = vrot.lane.b32.xlu0 %v713, 56
      %v1649 = vpop.permute.xlu0 %1648
      %1650 = vrot.lane.b32.xlu0 %v715, 56
      %v1651 = vpop.permute.xlu0 %1650
      %1652 = vrot.lane.b32.xlu0 %v718, 56
      %v1653 = vpop.permute.xlu0 %1652
      %1654 = vrot.lane.b32.xlu0 %v720, 56
      %v1655 = vpop.permute.xlu0 %1654
      %1656 = vrot.lane.b32.xlu0 %v723, 56
      %v1657 = vpop.permute.xlu0 %1656
      %1658 = vrot.lane.b32.xlu0 %v725, 56
      %v1659 = vpop.permute.xlu0 %1658
      %1660 = vrot.lane.b32.xlu0 %v728, 56
      %v1661 = vpop.permute.xlu0 %1660
      %1662 = vrot.lane.b32.xlu0 %v730, 56
      %v1663 = vpop.permute.xlu0 %1662
      %1664 = vrot.lane.b32.xlu0 %v733, 56
      %v1665 = vpop.permute.xlu0 %1664
      %1666 = vrot.lane.b32.xlu0 %v735, 56
      %v1667 = vpop.permute.xlu0 %1666
      %1668 = vrot.lane.b32.xlu0 %v1209, 56
      %v1669 = vpop.permute.xlu0 %1668
      %1670 = vrot.lane.b32.xlu0 %v1211, 56
      %v1671 = vpop.permute.xlu0 %1670
      %1672 = vrot.lane.b32.xlu0 %v1609, 56
      %v1673 = vpop.permute.xlu0 %1672
      %1674 = vrot.lane.b32.xlu0 %v1611, 56
      %v1675 = vpop.permute.xlu0 %1674
      %vm1708 = vcmask 523712
      %1709 = vst.msk [vmem:[#allocation3] sm:$0xff] %vm1708, %v1613
      %1710 = vst.msk [vmem:[#allocation3 + $0x8] sm:$0xff] %vm1708, %v1615
      %1711 = vst.msk [vmem:[#allocation3 + $0x10] sm:$0xff] %vm1708, %v1617
      %1712 = vst.msk [vmem:[#allocation3 + $0x18] sm:$0xff] %vm1708, %v1619
      %1713 = vst.msk [vmem:[#allocation3 + $0x20] sm:$0xff] %vm1708, %v1621
      %1714 = vst.msk [vmem:[#allocation3 + $0x28] sm:$0xff] %vm1708, %v1623
      %1715 = vst.msk [vmem:[#allocation3 + $0x30] sm:$0xff] %vm1708, %v1625
      %1716 = vst.msk [vmem:[#allocation3 + $0x38] sm:$0xff] %vm1708, %v1627
      %1717 = vst.msk [vmem:[#allocation3 + $0x40] sm:$0xff] %vm1708, %v1629
      %1718 = vst.msk [vmem:[#allocation3 + $0x48] sm:$0xff] %vm1708, %v1631
      %1719 = vst.msk [vmem:[#allocation3 + $0x50] sm:$0xff] %vm1708, %v1633
      %1720 = vst.msk [vmem:[#allocation3 + $0x58] sm:$0xff] %vm1708, %v1635
      %1721 = vst.msk [vmem:[#allocation3 + $0x60] sm:$0xff] %vm1708, %v1637
      %1722 = vst.msk [vmem:[#allocation3 + $0x68] sm:$0xff] %vm1708, %v1639
      %1723 = vst.msk [vmem:[#allocation3 + $0x70] sm:$0xff] %vm1708, %v1641
      %1724 = vst.msk [vmem:[#allocation3 + $0x78] sm:$0xff] %vm1708, %v1643
      %1725 = vst.msk [vmem:[#allocation3 + $0x80] sm:$0xff] %vm1708, %v1645
      %1726 = vst.msk [vmem:[#allocation3 + $0x88] sm:$0xff] %vm1708, %v1647
      %1727 = vst.msk [vmem:[#allocation3 + $0x90] sm:$0xff] %vm1708, %v1649
      %1728 = vst.msk [vmem:[#allocation3 + $0x98] sm:$0xff] %vm1708, %v1651
      %1729 = vst.msk [vmem:[#allocation3 + $0xa0] sm:$0xff] %vm1708, %v1653
      %1730 = vst.msk [vmem:[#allocation3 + $0xa8] sm:$0xff] %vm1708, %v1655
      %1731 = vst.msk [vmem:[#allocation3 + $0xb0] sm:$0xff] %vm1708, %v1657
      %1732 = vst.msk [vmem:[#allocation3 + $0xb8] sm:$0xff] %vm1708, %v1659
      %1733 = vst.msk [vmem:[#allocation3 + $0xc0] sm:$0xff] %vm1708, %v1661
      %1734 = vst.msk [vmem:[#allocation3 + $0xc8] sm:$0xff] %vm1708, %v1663
      %1735 = vst.msk [vmem:[#allocation3 + $0xd0] sm:$0xff] %vm1708, %v1665
      %1736 = vst.msk [vmem:[#allocation3 + $0xd8] sm:$0xff] %vm1708, %v1667
      %1737 = vst.msk [vmem:[#allocation3 + $0xe0] sm:$0xff] %vm1708, %v1669
      %1738 = vst.msk [vmem:[#allocation3 + $0xe8] sm:$0xff] %vm1708, %v1671
      %1739 = vst.msk [vmem:[#allocation3 + $0xf0] sm:$0xff] %vm1708, %v1673
      %1740 = vst.msk [vmem:[#allocation3 + $0xf8] sm:$0xff] %vm1708, %v1675
      %v1741 = vrot.slane %v572, 2
      %v1742 = vrot.slane %v573, 2
      %v1743 = vsel %vm865, %v1741, %v1742
      %v1744 = vrot.slane %v574, 2
      %v1745 = vsel %vm865, %v1742, %v1744
      %1746 = vrot.lane.b32.xlu0 %v878, 64
      %v1747 = vpop.permute.xlu0 %1746
      %1748 = vrot.lane.b32.xlu0 %v880, 64
      %v1749 = vpop.permute.xlu0 %1748
      %1750 = vrot.lane.b32.xlu0 %v883, 64
      %v1751 = vpop.permute.xlu0 %1750
      %1752 = vrot.lane.b32.xlu0 %v885, 64
      %v1753 = vpop.permute.xlu0 %1752
      %1754 = vrot.lane.b32.xlu0 %v888, 64
      %v1755 = vpop.permute.xlu0 %1754
      %1756 = vrot.lane.b32.xlu0 %v890, 64
      %v1757 = vpop.permute.xlu0 %1756
      %1758 = vrot.lane.b32.xlu0 %v893, 64
      %v1759 = vpop.permute.xlu0 %1758
      %1760 = vrot.lane.b32.xlu0 %v895, 64
      %v1761 = vpop.permute.xlu0 %1760
      %1762 = vrot.lane.b32.xlu0 %v898, 64
      %v1763 = vpop.permute.xlu0 %1762
      %1764 = vrot.lane.b32.xlu0 %v900, 64
      %v1765 = vpop.permute.xlu0 %1764
      %1766 = vrot.lane.b32.xlu0 %v903, 64
      %v1767 = vpop.permute.xlu0 %1766
      %1768 = vrot.lane.b32.xlu0 %v905, 64
      %v1769 = vpop.permute.xlu0 %1768
      %1770 = vrot.lane.b32.xlu0 %v908, 64
      %v1771 = vpop.permute.xlu0 %1770
      %1772 = vrot.lane.b32.xlu0 %v910, 64
      %v1773 = vpop.permute.xlu0 %1772
      %1774 = vrot.lane.b32.xlu0 %v913, 64
      %v1775 = vpop.permute.xlu0 %1774
      %1776 = vrot.lane.b32.xlu0 %v915, 64
      %v1777 = vpop.permute.xlu0 %1776
      %1778 = vrot.lane.b32.xlu0 %v918, 64
      %v1779 = vpop.permute.xlu0 %1778
      %1780 = vrot.lane.b32.xlu0 %v920, 64
      %v1781 = vpop.permute.xlu0 %1780
      %1782 = vrot.lane.b32.xlu0 %v923, 64
      %v1783 = vpop.permute.xlu0 %1782
      %1784 = vrot.lane.b32.xlu0 %v925, 64
      %v1785 = vpop.permute.xlu0 %1784
      %1786 = vrot.lane.b32.xlu0 %v928, 64
      %v1787 = vpop.permute.xlu0 %1786
      %1788 = vrot.lane.b32.xlu0 %v930, 64
      %v1789 = vpop.permute.xlu0 %1788
      %1790 = vrot.lane.b32.xlu0 %v933, 64
      %v1791 = vpop.permute.xlu0 %1790
      %1792 = vrot.lane.b32.xlu0 %v935, 64
      %v1793 = vpop.permute.xlu0 %1792
      %1794 = vrot.lane.b32.xlu0 %v938, 64
      %v1795 = vpop.permute.xlu0 %1794
      %1796 = vrot.lane.b32.xlu0 %v940, 64
      %v1797 = vpop.permute.xlu0 %1796
      %1798 = vrot.lane.b32.xlu0 %v943, 64
      %v1799 = vpop.permute.xlu0 %1798
      %1800 = vrot.lane.b32.xlu0 %v945, 64
      %v1801 = vpop.permute.xlu0 %1800
      %1802 = vrot.lane.b32.xlu0 %v1343, 64
      %v1803 = vpop.permute.xlu0 %1802
      %1804 = vrot.lane.b32.xlu0 %v1345, 64
      %v1805 = vpop.permute.xlu0 %1804
      %1806 = vrot.lane.b32.xlu0 %v1743, 64
      %v1807 = vpop.permute.xlu0 %1806
      %1808 = vrot.lane.b32.xlu0 %v1745, 64
      %v1809 = vpop.permute.xlu0 %1808
      %vm1842 = vcmask 589312
      %1843 = vst.msk [vmem:[#allocation3] sm:$0xff] %vm1842, %v1747
      %1844 = vst.msk [vmem:[#allocation3 + $0x8] sm:$0xff] %vm1842, %v1749
      %1845 = vst.msk [vmem:[#allocation3 + $0x10] sm:$0xff] %vm1842, %v1751
      %1846 = vst.msk [vmem:[#allocation3 + $0x18] sm:$0xff] %vm1842, %v1753
      %1847 = vst.msk [vmem:[#allocation3 + $0x20] sm:$0xff] %vm1842, %v1755
      %1848 = vst.msk [vmem:[#allocation3 + $0x28] sm:$0xff] %vm1842, %v1757
      %1849 = vst.msk [vmem:[#allocation3 + $0x30] sm:$0xff] %vm1842, %v1759
      %1850 = vst.msk [vmem:[#allocation3 + $0x38] sm:$0xff] %vm1842, %v1761
      %1851 = vst.msk [vmem:[#allocation3 + $0x40] sm:$0xff] %vm1842, %v1763
      %1852 = vst.msk [vmem:[#allocation3 + $0x48] sm:$0xff] %vm1842, %v1765
      %1853 = vst.msk [vmem:[#allocation3 + $0x50] sm:$0xff] %vm1842, %v1767
      %1854 = vst.msk [vmem:[#allocation3 + $0x58] sm:$0xff] %vm1842, %v1769
      %1855 = vst.msk [vmem:[#allocation3 + $0x60] sm:$0xff] %vm1842, %v1771
      %1856 = vst.msk [vmem:[#allocation3 + $0x68] sm:$0xff] %vm1842, %v1773
      %1857 = vst.msk [vmem:[#allocation3 + $0x70] sm:$0xff] %vm1842, %v1775
      %1858 = vst.msk [vmem:[#allocation3 + $0x78] sm:$0xff] %vm1842, %v1777
      %1859 = vst.msk [vmem:[#allocation3 + $0x80] sm:$0xff] %vm1842, %v1779
      %1860 = vst.msk [vmem:[#allocation3 + $0x88] sm:$0xff] %vm1842, %v1781
      %1861 = vst.msk [vmem:[#allocation3 + $0x90] sm:$0xff] %vm1842, %v1783
      %1862 = vst.msk [vmem:[#allocation3 + $0x98] sm:$0xff] %vm1842, %v1785
      %1863 = vst.msk [vmem:[#allocation3 + $0xa0] sm:$0xff] %vm1842, %v1787
      %1864 = vst.msk [vmem:[#allocation3 + $0xa8] sm:$0xff] %vm1842, %v1789
      %1865 = vst.msk [vmem:[#allocation3 + $0xb0] sm:$0xff] %vm1842, %v1791
      %1866 = vst.msk [vmem:[#allocation3 + $0xb8] sm:$0xff] %vm1842, %v1793
      %1867 = vst.msk [vmem:[#allocation3 + $0xc0] sm:$0xff] %vm1842, %v1795
      %1868 = vst.msk [vmem:[#allocation3 + $0xc8] sm:$0xff] %vm1842, %v1797
      %1869 = vst.msk [vmem:[#allocation3 + $0xd0] sm:$0xff] %vm1842, %v1799
      %1870 = vst.msk [vmem:[#allocation3 + $0xd8] sm:$0xff] %vm1842, %v1801
      %1871 = vst.msk [vmem:[#allocation3 + $0xe0] sm:$0xff] %vm1842, %v1803
      %1872 = vst.msk [vmem:[#allocation3 + $0xe8] sm:$0xff] %vm1842, %v1805
      %1873 = vst.msk [vmem:[#allocation3 + $0xf0] sm:$0xff] %vm1842, %v1807
      %1874 = vst.msk [vmem:[#allocation3 + $0xf8] sm:$0xff] %vm1842, %v1809
      %v1875 = vld [vmem:[#allocation3] sm:$0xff]
      %v1876 = vld [vmem:[#allocation3 + $0x8] sm:$0xff]
      %v1877 = vld [vmem:[#allocation3 + $0x10] sm:$0xff]
      %v1878 = vld [vmem:[#allocation3 + $0x18] sm:$0xff]
      %v1879 = vld [vmem:[#allocation3 + $0x20] sm:$0xff]
      %v1880 = vld [vmem:[#allocation3 + $0x28] sm:$0xff]
      %v1881 = vld [vmem:[#allocation3 + $0x30] sm:$0xff]
      %v1882 = vld [vmem:[#allocation3 + $0x38] sm:$0xff]
      %v1883 = vld [vmem:[#allocation3 + $0x40] sm:$0xff]
      %v1884 = vld [vmem:[#allocation3 + $0x48] sm:$0xff]
      %v1885 = vld [vmem:[#allocation3 + $0x50] sm:$0xff]
      %v1886 = vld [vmem:[#allocation3 + $0x58] sm:$0xff]
      %v1887 = vld [vmem:[#allocation3 + $0x60] sm:$0xff]
      %v1888 = vld [vmem:[#allocation3 + $0x68] sm:$0xff]
      %v1889 = vld [vmem:[#allocation3 + $0x70] sm:$0xff]
      %v1890 = vld [vmem:[#allocation3 + $0x78] sm:$0xff]
      %v1891 = vld [vmem:[#allocation3 + $0x80] sm:$0xff]
      %v1892 = vld [vmem:[#allocation3 + $0x88] sm:$0xff]
      %v1893 = vld [vmem:[#allocation3 + $0x90] sm:$0xff]
      %v1894 = vld [vmem:[#allocation3 + $0x98] sm:$0xff]
      %v1895 = vld [vmem:[#allocation3 + $0xa0] sm:$0xff]
      %v1896 = vld [vmem:[#allocation3 + $0xa8] sm:$0xff]
      %v1897 = vld [vmem:[#allocation3 + $0xb0] sm:$0xff]
      %v1898 = vld [vmem:[#allocation3 + $0xb8] sm:$0xff]
      %v1899 = vld [vmem:[#allocation3 + $0xc0] sm:$0xff]
      %v1900 = vld [vmem:[#allocation3 + $0xc8] sm:$0xff]
      %v1901 = vld [vmem:[#allocation3 + $0xd0] sm:$0xff]
      %v1902 = vld [vmem:[#allocation3 + $0xd8] sm:$0xff]
      %v1903 = vld [vmem:[#allocation3 + $0xe0] sm:$0xff]
      %v1904 = vld [vmem:[#allocation3 + $0xe8] sm:$0xff]
      %v1905 = vld [vmem:[#allocation3 + $0xf0] sm:$0xff]
      %v1906 = vld [vmem:[#allocation3 + $0xf8] sm:$0xff]
      %v1907 = vld [vmem:[%s3] sm:$0xff]
      %v1908 = vld [vmem:[%s3 + $0x8] sm:$0xff]
      %v1909 = vld [vmem:[%s3 + $0x10] sm:$0xff]
      %v1910 = vld [vmem:[%s3 + $0x18] sm:$0xff]
      %v1911 = vld [vmem:[%s3 + $0x20] sm:$0xff]
      %v1912 = vld [vmem:[%s3 + $0x28] sm:$0xff]
      %v1913 = vld [vmem:[%s3 + $0x30] sm:$0xff]
      %v1914 = vld [vmem:[%s3 + $0x38] sm:$0xff]
      %v1915 = vld [vmem:[%s3 + $0x40] sm:$0xff]
      %v1916 = vld [vmem:[%s4] sm:$0x1]
      %v1918 = vperm.slane %v1916, 0
      %vm1920 = vcmask 588800
      %v1922 = vsel %vm1920, %v1875, 0
      %v1925 = vsel %vm1920, %v1876, 0
      %v1928 = vsel %vm1920, %v1877, 0
      %v1931 = vsel %vm1920, %v1878, 0
      %v1934 = vsel %vm1920, %v1879, 0
      %v1937 = vsel %vm1920, %v1880, 0
      %v1940 = vsel %vm1920, %v1881, 0
      %v1943 = vsel %vm1920, %v1882, 0
      %v1946 = vsel %vm1920, %v1883, 0
      %v1949 = vsel %vm1920, %v1884, 0
      %v1952 = vsel %vm1920, %v1885, 0
      %v1955 = vsel %vm1920, %v1886, 0
      %v1958 = vsel %vm1920, %v1887, 0
      %v1961 = vsel %vm1920, %v1888, 0
      %v1964 = vsel %vm1920, %v1889, 0
      %v1967 = vsel %vm1920, %v1890, 0
      %v1970 = vsel %vm1920, %v1891, 0
      %v1973 = vsel %vm1920, %v1892, 0
      %v1976 = vsel %vm1920, %v1893, 0
      %v1979 = vsel %vm1920, %v1894, 0
      %v1982 = vsel %vm1920, %v1895, 0
      %v1985 = vsel %vm1920, %v1896, 0
      %v1988 = vsel %vm1920, %v1897, 0
      %v1991 = vsel %vm1920, %v1898, 0
      %v1994 = vsel %vm1920, %v1899, 0
      %v1997 = vsel %vm1920, %v1900, 0
      %v2000 = vsel %vm1920, %v1901, 0
      %v2003 = vsel %vm1920, %v1902, 0
      %v2006 = vsel %vm1920, %v1903, 0
      %v2009 = vsel %vm1920, %v1904, 0
      %v2012 = vsel %vm1920, %v1905, 0
      %v2015 = vsel %vm1920, %v1906, 0
      %2017 = vmatpush.msra.mxu0 0.0
      %2018 = vmatpush.msra.mxu0 0.0
      %2019 = vmatpush.msra.mxu0 0.0
      %2020 = vmatpush.msra.mxu0 0.0
      %2021 = vmatpush.msra.mxu0 0.0
      %2022 = vmatpush.msra.mxu0 0.0
      %2023 = vmatpush.msra.mxu0 0.0
      %2024 = vmatpush.msra.mxu0 %v1915
      %2025 = vmatpush.msra.mxu0 %v1914
      %2026 = vmatpush.msra.mxu0 %v1913
      %2027 = vmatpush.msra.mxu0 %v1912
      %2028 = vmatpush.msra.mxu0 %v1911
      %2029 = vmatpush.msra.mxu0 %v1910
      %2030 = vmatpush.msra.mxu0 %v1909
      %2031 = vmatpush.msra.mxu0 %v1908
      %2032 = vmatpush.msra.mxu0 %v1907
      %2033 = vmatmul.f32.gmra.mxu0 %v1922
      %v2034 = vpop.f32.mrf.mxu0
      %v2035 = vadd.f32 %v1918, %v2034
      %2036 = vmatmul.f32.gmra.mxu0 %v1925
      %v2037 = vpop.f32.mrf.mxu0
      %v2038 = vadd.f32 %v1918, %v2037
      %2039 = vmatmul.f32.gmra.mxu0 %v1928
      %v2040 = vpop.f32.mrf.mxu0
      %v2041 = vadd.f32 %v1918, %v2040
      %2042 = vmatmul.f32.gmra.mxu0 %v1931
      %v2043 = vpop.f32.mrf.mxu0
      %v2044 = vadd.f32 %v1918, %v2043
      %2045 = vmatmul.f32.gmra.mxu0 %v1934
      %v2046 = vpop.f32.mrf.mxu0
      %v2047 = vadd.f32 %v1918, %v2046
      %2048 = vmatmul.f32.gmra.mxu0 %v1937
      %v2049 = vpop.f32.mrf.mxu0
      %v2050 = vadd.f32 %v1918, %v2049
      %2051 = vmatmul.f32.gmra.mxu0 %v1940
      %v2052 = vpop.f32.mrf.mxu0
      %v2053 = vadd.f32 %v1918, %v2052
      %2054 = vmatmul.f32.gmra.mxu0 %v1943
      %v2055 = vpop.f32.mrf.mxu0
      %v2056 = vadd.f32 %v1918, %v2055
      %2057 = vmatmul.f32.gmra.mxu0 %v1946
      %v2058 = vpop.f32.mrf.mxu0
      %v2059 = vadd.f32 %v1918, %v2058
      %2060 = vmatmul.f32.gmra.mxu0 %v1949
      %v2061 = vpop.f32.mrf.mxu0
      %v2062 = vadd.f32 %v1918, %v2061
      %2063 = vmatmul.f32.gmra.mxu0 %v1952
      %v2064 = vpop.f32.mrf.mxu0
      %v2065 = vadd.f32 %v1918, %v2064
      %2066 = vmatmul.f32.gmra.mxu0 %v1955
      %v2067 = vpop.f32.mrf.mxu0
      %v2068 = vadd.f32 %v1918, %v2067
      %2069 = vmatmul.f32.gmra.mxu0 %v1958
      %v2070 = vpop.f32.mrf.mxu0
      %v2071 = vadd.f32 %v1918, %v2070
      %2072 = vmatmul.f32.gmra.mxu0 %v1961
      %v2073 = vpop.f32.mrf.mxu0
      %v2074 = vadd.f32 %v1918, %v2073
      %2075 = vmatmul.f32.gmra.mxu0 %v1964
      %v2076 = vpop.f32.mrf.mxu0
      %v2077 = vadd.f32 %v1918, %v2076
      %2078 = vmatmul.f32.gmra.mxu0 %v1967
      %v2079 = vpop.f32.mrf.mxu0
      %v2080 = vadd.f32 %v1918, %v2079
      %2081 = vmatmul.f32.gmra.mxu0 %v1970
      %v2082 = vpop.f32.mrf.mxu0
      %v2083 = vadd.f32 %v1918, %v2082
      %2084 = vmatmul.f32.gmra.mxu0 %v1973
      %v2085 = vpop.f32.mrf.mxu0
      %v2086 = vadd.f32 %v1918, %v2085
      %2087 = vmatmul.f32.gmra.mxu0 %v1976
      %v2088 = vpop.f32.mrf.mxu0
      %v2089 = vadd.f32 %v1918, %v2088
      %2090 = vmatmul.f32.gmra.mxu0 %v1979
      %v2091 = vpop.f32.mrf.mxu0
      %v2092 = vadd.f32 %v1918, %v2091
      %2093 = vmatmul.f32.gmra.mxu0 %v1982
      %v2094 = vpop.f32.mrf.mxu0
      %v2095 = vadd.f32 %v1918, %v2094
      %2096 = vmatmul.f32.gmra.mxu0 %v1985
      %v2097 = vpop.f32.mrf.mxu0
      %v2098 = vadd.f32 %v1918, %v2097
      %2099 = vmatmul.f32.gmra.mxu0 %v1988
      %v2100 = vpop.f32.mrf.mxu0
      %v2101 = vadd.f32 %v1918, %v2100
      %2102 = vmatmul.f32.gmra.mxu0 %v1991
      %v2103 = vpop.f32.mrf.mxu0
      %v2104 = vadd.f32 %v1918, %v2103
      %2105 = vmatmul.f32.gmra.mxu0 %v1994
      %v2106 = vpop.f32.mrf.mxu0
      %v2107 = vadd.f32 %v1918, %v2106
      %2108 = vmatmul.f32.gmra.mxu0 %v1997
      %v2109 = vpop.f32.mrf.mxu0
      %v2110 = vadd.f32 %v1918, %v2109
      %2111 = vmatmul.f32.gmra.mxu0 %v2000
      %v2112 = vpop.f32.mrf.mxu0
      %v2113 = vadd.f32 %v1918, %v2112
      %2114 = vmatmul.f32.gmra.mxu0 %v2003
      %v2115 = vpop.f32.mrf.mxu0
      %v2116 = vadd.f32 %v1918, %v2115
      %2117 = vmatmul.f32.gmra.mxu0 %v2006
      %v2118 = vpop.f32.mrf.mxu0
      %v2119 = vadd.f32 %v1918, %v2118
      %2120 = vmatmul.f32.gmra.mxu0 %v2009
      %v2121 = vpop.f32.mrf.mxu0
      %v2122 = vadd.f32 %v1918, %v2121
      %2123 = vmatmul.f32.gmra.mxu0 %v2012
      %v2124 = vpop.f32.mrf.mxu0
      %v2125 = vadd.f32 %v1918, %v2124
      %2126 = vmatmul.f32.gmra.mxu0 %v2015
      %v2127 = vpop.f32.mrf.mxu0
      %v2128 = vadd.f32 %v1918, %v2127
      %2129 = vdwg.mxu0
      %2130 = vst.msk [vmem:[%s289] sm:$0xff] %vm432, %v2035
      %2131 = vst.msk [vmem:[%s289 + $0x8] sm:$0xff] %vm432, %v2038
      %2132 = vst.msk [vmem:[%s289 + $0x10] sm:$0xff] %vm432, %v2041
      %2133 = vst.msk [vmem:[%s289 + $0x18] sm:$0xff] %vm432, %v2044
      %2134 = vst.msk [vmem:[%s289 + $0x20] sm:$0xff] %vm432, %v2047
      %2135 = vst.msk [vmem:[%s289 + $0x28] sm:$0xff] %vm432, %v2050
      %2136 = vst.msk [vmem:[%s289 + $0x30] sm:$0xff] %vm432, %v2053
      %2137 = vst.msk [vmem:[%s289 + $0x38] sm:$0xff] %vm432, %v2056
      %2138 = vst.msk [vmem:[%s289 + $0x40] sm:$0xff] %vm432, %v2059
      %2139 = vst.msk [vmem:[%s289 + $0x48] sm:$0xff] %vm432, %v2062
      %2140 = vst.msk [vmem:[%s289 + $0x50] sm:$0xff] %vm432, %v2065
      %2141 = vst.msk [vmem:[%s289 + $0x58] sm:$0xff] %vm432, %v2068
      %2142 = vst.msk [vmem:[%s289 + $0x60] sm:$0xff] %vm432, %v2071
      %2143 = vst.msk [vmem:[%s289 + $0x68] sm:$0xff] %vm432, %v2074
      %2144 = vst.msk [vmem:[%s289 + $0x70] sm:$0xff] %vm432, %v2077
      %2145 = vst.msk [vmem:[%s289 + $0x78] sm:$0xff] %vm432, %v2080
      %2146 = vst.msk [vmem:[%s289 + $0x80] sm:$0xff] %vm432, %v2083
      %2147 = vst.msk [vmem:[%s289 + $0x88] sm:$0xff] %vm432, %v2086
      %2148 = vst.msk [vmem:[%s289 + $0x90] sm:$0xff] %vm432, %v2089
      %2149 = vst.msk [vmem:[%s289 + $0x98] sm:$0xff] %vm432, %v2092
      %2150 = vst.msk [vmem:[%s289 + $0xa0] sm:$0xff] %vm432, %v2095
      %2151 = vst.msk [vmem:[%s289 + $0xa8] sm:$0xff] %vm432, %v2098
      %2152 = vst.msk [vmem:[%s289 + $0xb0] sm:$0xff] %vm432, %v2101
      %2153 = vst.msk [vmem:[%s289 + $0xb8] sm:$0xff] %vm432, %v2104
      %2154 = vst.msk [vmem:[%s289 + $0xc0] sm:$0xff] %vm432, %v2107
      %2155 = vst.msk [vmem:[%s289 + $0xc8] sm:$0xff] %vm432, %v2110
      %2156 = vst.msk [vmem:[%s289 + $0xd0] sm:$0xff] %vm432, %v2113
      %2157 = vst.msk [vmem:[%s289 + $0xd8] sm:$0xff] %vm432, %v2116
      %2158 = vst.msk [vmem:[%s289 + $0xe0] sm:$0xff] %vm432, %v2119
      %2159 = vst.msk [vmem:[%s289 + $0xe8] sm:$0xff] %vm432, %v2122
      %2160 = vst.msk [vmem:[%s289 + $0xf0] sm:$0xff] %vm432, %v2125
      %2161 = vst.msk [vmem:[%s289 + $0xf8] sm:$0xff] %vm432, %v2128
      %v2162 = vsel %vm432, %v2035, 0.0
      %v2163 = vsel %vm432, %v2038, 0.0
      %v2164 = vadd.f32 %v2162, %v2163
      %v2165 = vsel %vm432, %v2041, 0.0
      %v2166 = vadd.f32 %v2164, %v2165
      %v2167 = vsel %vm432, %v2044, 0.0
      %v2168 = vadd.f32 %v2166, %v2167
      %v2169 = vsel %vm432, %v2047, 0.0
      %v2170 = vadd.f32 %v2168, %v2169
      %v2171 = vsel %vm432, %v2050, 0.0
      %v2172 = vadd.f32 %v2170, %v2171
      %v2173 = vsel %vm432, %v2053, 0.0
      %v2174 = vadd.f32 %v2172, %v2173
      %v2175 = vsel %vm432, %v2056, 0.0
      %v2176 = vadd.f32 %v2174, %v2175
      %v2177 = vsel %vm432, %v2059, 0.0
      %v2178 = vadd.f32 %v2176, %v2177
      %v2179 = vsel %vm432, %v2062, 0.0
      %v2180 = vadd.f32 %v2178, %v2179
      %v2181 = vsel %vm432, %v2065, 0.0
      %v2182 = vadd.f32 %v2180, %v2181
      %v2183 = vsel %vm432, %v2068, 0.0
      %v2184 = vadd.f32 %v2182, %v2183
      %v2185 = vsel %vm432, %v2071, 0.0
      %v2186 = vadd.f32 %v2184, %v2185
      %v2187 = vsel %vm432, %v2074, 0.0
      %v2188 = vadd.f32 %v2186, %v2187
      %v2189 = vsel %vm432, %v2077, 0.0
      %v2190 = vadd.f32 %v2188, %v2189
      %v2191 = vsel %vm432, %v2080, 0.0
      %v2192 = vadd.f32 %v2190, %v2191
      %v2193 = vsel %vm432, %v2083, 0.0
      %v2194 = vadd.f32 %v2192, %v2193
      %v2195 = vsel %vm432, %v2086, 0.0
      %v2196 = vadd.f32 %v2194, %v2195
      %v2197 = vsel %vm432, %v2089, 0.0
      %v2198 = vadd.f32 %v2196, %v2197
      %v2199 = vsel %vm432, %v2092, 0.0
      %v2200 = vadd.f32 %v2198, %v2199
      %v2201 = vsel %vm432, %v2095, 0.0
      %v2202 = vadd.f32 %v2200, %v2201
      %v2203 = vsel %vm432, %v2098, 0.0
      %v2204 = vadd.f32 %v2202, %v2203
      %v2205 = vsel %vm432, %v2101, 0.0
      %v2206 = vadd.f32 %v2204, %v2205
      %v2207 = vsel %vm432, %v2104, 0.0
      %v2208 = vadd.f32 %v2206, %v2207
      %v2209 = vsel %vm432, %v2107, 0.0
      %v2210 = vadd.f32 %v2208, %v2209
      %v2211 = vsel %vm432, %v2110, 0.0
      %v2212 = vadd.f32 %v2210, %v2211
      %v2213 = vsel %vm432, %v2113, 0.0
      %v2214 = vadd.f32 %v2212, %v2213
      %v2215 = vsel %vm432, %v2116, 0.0
      %v2216 = vadd.f32 %v2214, %v2215
      %v2217 = vsel %vm432, %v2119, 0.0
      %v2218 = vadd.f32 %v2216, %v2217
      %v2219 = vsel %vm432, %v2122, 0.0
      %v2220 = vadd.f32 %v2218, %v2219
      %v2221 = vsel %vm432, %v2125, 0.0
      %v2222 = vadd.f32 %v2220, %v2221
      %v2223 = vsel %vm432, %v2128, 0.0
      %v2224 = vadd.f32 %v2222, %v2223
      %v2225 = vrot.slane %v2224, 4
      %v2226 = vadd.f32 %v2224, %v2225
      %v2227 = vrot.slane %v2226, 2
      %v2228 = vadd.f32 %v2226, %v2227
      %v2229 = vrot.slane %v2228, 1
      %v2230 = vadd.f32 %v2228, %v2229
      %vm2231 = vcmask 57344
      %2232 = vst.msk [vmem:[%s292] sm:$0x1] %vm2231, %v2230
      %v2233 = vmul.f32 %v2035, %v2035
      %v2234 = vmul.f32 %v2038, %v2038
      %v2235 = vmul.f32 %v2041, %v2041
      %v2236 = vmul.f32 %v2044, %v2044
      %v2237 = vmul.f32 %v2047, %v2047
      %v2238 = vmul.f32 %v2050, %v2050
      %v2239 = vmul.f32 %v2053, %v2053
      %v2240 = vmul.f32 %v2056, %v2056
      %v2241 = vmul.f32 %v2059, %v2059
      %v2242 = vmul.f32 %v2062, %v2062
      %v2243 = vmul.f32 %v2065, %v2065
      %v2244 = vmul.f32 %v2068, %v2068
      %v2245 = vmul.f32 %v2071, %v2071
      %v2246 = vmul.f32 %v2074, %v2074
      %v2247 = vmul.f32 %v2077, %v2077
      %v2248 = vmul.f32 %v2080, %v2080
      %v2249 = vmul.f32 %v2083, %v2083
      %v2250 = vmul.f32 %v2086, %v2086
      %v2251 = vmul.f32 %v2089, %v2089
      %v2252 = vmul.f32 %v2092, %v2092
      %v2253 = vmul.f32 %v2095, %v2095
      %v2254 = vmul.f32 %v2098, %v2098
      %v2255 = vmul.f32 %v2101, %v2101
      %v2256 = vmul.f32 %v2104, %v2104
      %v2257 = vmul.f32 %v2107, %v2107
      %v2258 = vmul.f32 %v2110, %v2110
      %v2259 = vmul.f32 %v2113, %v2113
      %v2260 = vmul.f32 %v2116, %v2116
      %v2261 = vmul.f32 %v2119, %v2119
      %v2262 = vmul.f32 %v2122, %v2122
      %v2263 = vmul.f32 %v2125, %v2125
      %v2264 = vmul.f32 %v2128, %v2128
      %v2265 = vsel %vm432, %v2233, 0.0
      %v2266 = vsel %vm432, %v2234, 0.0
      %v2267 = vadd.f32 %v2265, %v2266
      %v2268 = vsel %vm432, %v2235, 0.0
      %v2269 = vadd.f32 %v2267, %v2268
      %v2270 = vsel %vm432, %v2236, 0.0
      %v2271 = vadd.f32 %v2269, %v2270
      %v2272 = vsel %vm432, %v2237, 0.0
      %v2273 = vadd.f32 %v2271, %v2272
      %v2274 = vsel %vm432, %v2238, 0.0
      %v2275 = vadd.f32 %v2273, %v2274
      %v2276 = vsel %vm432, %v2239, 0.0
      %v2277 = vadd.f32 %v2275, %v2276
      %v2278 = vsel %vm432, %v2240, 0.0
      %v2279 = vadd.f32 %v2277, %v2278
      %v2280 = vsel %vm432, %v2241, 0.0
      %v2281 = vadd.f32 %v2279, %v2280
      %v2282 = vsel %vm432, %v2242, 0.0
      %v2283 = vadd.f32 %v2281, %v2282
      %v2284 = vsel %vm432, %v2243, 0.0
      %v2285 = vadd.f32 %v2283, %v2284
      %v2286 = vsel %vm432, %v2244, 0.0
      %v2287 = vadd.f32 %v2285, %v2286
      %v2288 = vsel %vm432, %v2245, 0.0
      %v2289 = vadd.f32 %v2287, %v2288
      %v2290 = vsel %vm432, %v2246, 0.0
      %v2291 = vadd.f32 %v2289, %v2290
      %v2292 = vsel %vm432, %v2247, 0.0
      %v2293 = vadd.f32 %v2291, %v2292
      %v2294 = vsel %vm432, %v2248, 0.0
      %v2295 = vadd.f32 %v2293, %v2294
      %v2296 = vsel %vm432, %v2249, 0.0
      %v2297 = vadd.f32 %v2295, %v2296
      %v2298 = vsel %vm432, %v2250, 0.0
      %v2299 = vadd.f32 %v2297, %v2298
      %v2300 = vsel %vm432, %v2251, 0.0
      %v2301 = vadd.f32 %v2299, %v2300
      %v2302 = vsel %vm432, %v2252, 0.0
      %v2303 = vadd.f32 %v2301, %v2302
      %v2304 = vsel %vm432, %v2253, 0.0
      %v2305 = vadd.f32 %v2303, %v2304
      %v2306 = vsel %vm432, %v2254, 0.0
      %v2307 = vadd.f32 %v2305, %v2306
      %v2308 = vsel %vm432, %v2255, 0.0
      %v2309 = vadd.f32 %v2307, %v2308
      %v2310 = vsel %vm432, %v2256, 0.0
      %v2311 = vadd.f32 %v2309, %v2310
      %v2312 = vsel %vm432, %v2257, 0.0
      %v2313 = vadd.f32 %v2311, %v2312
      %v2314 = vsel %vm432, %v2258, 0.0
      %v2315 = vadd.f32 %v2313, %v2314
      %v2316 = vsel %vm432, %v2259, 0.0
      %v2317 = vadd.f32 %v2315, %v2316
      %v2318 = vsel %vm432, %v2260, 0.0
      %v2319 = vadd.f32 %v2317, %v2318
      %v2320 = vsel %vm432, %v2261, 0.0
      %v2321 = vadd.f32 %v2319, %v2320
      %v2322 = vsel %vm432, %v2262, 0.0
      %v2323 = vadd.f32 %v2321, %v2322
      %v2324 = vsel %vm432, %v2263, 0.0
      %v2325 = vadd.f32 %v2323, %v2324
      %v2326 = vsel %vm432, %v2264, 0.0
      %v2327 = vadd.f32 %v2325, %v2326
      %v2328 = vrot.slane %v2327, 4
      %v2329 = vadd.f32 %v2327, %v2328
      %v2330 = vrot.slane %v2329, 2
      %v2331 = vadd.f32 %v2329, %v2330
      %v2332 = vrot.slane %v2331, 1
      %v2333 = vadd.f32 %v2331, %v2332
      %2334 = vst.msk [vmem:[%s295] sm:$0x1] %vm2231, %v2333
      %p2335 = scmp.lt.s32.totalorder %s19, 1
      %s2336 = scalar_select %p2335, %s19, 1
      %s2337 = smul.addr %s2336, 32
      %s2338 = smul.addr %s2337, 8
      %s2339 = scalar_lea.vmem %s5, %s2338
      %p2340 = scmp.lt.s32.totalorder %s19, 1
      %s2341 = scalar_select %p2340, %s19, 1
      %s2342 = scalar_lea.vmem %s6, %s2341
      %p2343 = scmp.lt.s32.totalorder %s19, 1
      %s2344 = scalar_select %p2343, %s19, 1
      %s2345 = scalar_lea.vmem %s7, %s2344
      // Predicated region
      $region41: #{double_conv_pallas.4} parent=39 // pred_check
        %p2346 = pneg %p147
      $region42: #{double_conv_pallas.4} parent=39 // pred_check_branch
        %2348 = sbr.rel (%p2346) target = $region44
      $region43: #{double_conv_pallas.4} parent=39 // pred_region
        _
      $region44: #{double_conv_pallas.4} parent=39 // pred_fallthru
        _
      // Predicated region
      $region45: #{double_conv_pallas.4} parent=39 // pred_check
        %p2349 = pneg %p173
      $region46: #{double_conv_pallas.4} parent=39 // pred_check_branch
        %2351 = sbr.rel (%p2349) target = $region48
      $region47: #{double_conv_pallas.4} parent=39 // pred_region
        _
      $region48: #{double_conv_pallas.4} parent=39 // pred_fallthru
        _
      // Predicated region
      $region49: #{double_conv_pallas.4} parent=39 // pred_check
        %p2352 = pneg %p199
      $region50: #{double_conv_pallas.4} parent=39 // pred_check_branch
        %2354 = sbr.rel (%p2352) target = $region52
      $region51: #{double_conv_pallas.4} parent=39 // pred_region
        _
      $region52: #{double_conv_pallas.4} parent=39 // pred_fallthru
        _
    $region40: #{double_conv_pallas.4} parent=5 // pred_fallthru
      _
    %p2355 = scmp.le.s32.totalorder 2, %s14
    // Predicated region
    $region53: #{double_conv_pallas.4} parent=5 // pred_check
      %p2356 = pneg %p2355
    $region54: #{double_conv_pallas.4} parent=5 // pred_check_branch
      %2358 = sbr.rel (%p2356) target = $region56
    $region55: #{double_conv_pallas.4} parent=5 // pred_region
      %s2359 = ssub.s32 %s14, 2
      // Predicated region
      $region57: #{double_conv_pallas.4} parent=55 // pred_check
        %p2360 = pneg %p153
      $region58: #{double_conv_pallas.4} parent=55 // pred_check_branch
        %2362 = sbr.rel (%p2360) target = $region60
      $region59: #{double_conv_pallas.4} parent=55 // pred_region
        %p2363 = scmp.lt.s32.totalorder %s20, 1
        %s2364 = scalar_select %p2363, %s20, 1
        %s2365 = smul.addr %s2364, 32
        %s2366 = smul.addr %s2365, 8
        %s2367 = scalar_lea.vmem %s5, %s2366
      $region60: #{double_conv_pallas.4} parent=55 // pred_fallthru
        _
      // Predicated region
      $region61: #{double_conv_pallas.4} parent=55 // pred_check
        %p2368 = pneg %p179
      $region62: #{double_conv_pallas.4} parent=55 // pred_check_branch
        %2370 = sbr.rel (%p2368) target = $region64
      $region63: #{double_conv_pallas.4} parent=55 // pred_region
        %p2371 = scmp.lt.s32.totalorder %s20, 1
        %s2372 = scalar_select %p2371, %s20, 1
        %s2373 = scalar_lea.vmem %s6, %s2372
      $region64: #{double_conv_pallas.4} parent=55 // pred_fallthru
        _
      // Predicated region
      $region65: #{double_conv_pallas.4} parent=55 // pred_check
        %p2374 = pneg %p205
      $region66: #{double_conv_pallas.4} parent=55 // pred_check_branch
        %2376 = sbr.rel (%p2374) target = $region68
      $region67: #{double_conv_pallas.4} parent=55 // pred_region
        %p2377 = scmp.lt.s32.totalorder %s20, 1
        %s2378 = scalar_select %p2377, %s20, 1
        %s2379 = scalar_lea.vmem %s7, %s2378
      $region68: #{double_conv_pallas.4} parent=55 // pred_fallthru
        _
    $region56: #{double_conv_pallas.4} parent=5 // pred_fallthru
      _
  $region6: #{double_conv_pallas.4} parent=0 // loop_footer
    %s18 = sadd.s32 1, %s14
  $region7: #{double_conv_pallas.4} parent=0 // loop_footer_branch
    %13 = sbr.rel target = $region3
  $region8: #{double_conv_pallas.4} parent=0 // loop_exit
    _

</llo_original>
